<compile_context>
chip_gen: v7x
topology: tpu7x:2x2x1
jax: 0.10.0
libtpu: 0.0.40
codegen_flags: <defaults>
</compile_context>

<pallas_src>
import numpy as np

import jax
import jax.numpy as jnp
from jax.experimental import pallas as pl
from jax.experimental.pallas import tpu as pltpu


# ----------------------------------------------------------------------------
# Parameters (deterministic synthetic init, PyTorch-style uniform(+-1/sqrt(fan_in)))
# ----------------------------------------------------------------------------
def init_params(key):
    def u(k, shape, fan_in):
        bound = 1.0 / np.sqrt(float(fan_in))
        return jax.random.uniform(k, shape, jnp.float32, -bound, bound)

    ks = jax.random.split(key, 10)
    p = {}
    # encoder (Conv2d weights: (Cout, Cin, kh, kw))
    p["enc1_w"] = u(ks[0], (16, 1, 3, 3), 1 * 3 * 3)
    p["enc1_b"] = u(ks[1], (16,), 1 * 3 * 3)
    p["enc2_w"] = u(ks[2], (8, 16, 3, 3), 16 * 3 * 3)
    p["enc2_b"] = u(ks[3], (8,), 16 * 3 * 3)
    # decoder (ConvTranspose2d weights: (Cin, Cout, kh, kw))
    p["dec1_w"] = u(ks[4], (8, 16, 3, 3), 8 * 3 * 3)
    p["dec1_b"] = u(ks[5], (16,), 8 * 3 * 3)
    p["dec2_w"] = u(ks[6], (16, 8, 5, 5), 16 * 5 * 5)
    p["dec2_b"] = u(ks[7], (8,), 16 * 5 * 5)
    p["dec3_w"] = u(ks[8], (8, 1, 2, 2), 8 * 2 * 2)
    p["dec3_b"] = u(ks[9], (1,), 8 * 2 * 2)
    return p


# ----------------------------------------------------------------------------
# One-time host-side repacking of the layers into matmul operands.
#
# Activations are lane-dense 2-D slabs X of shape (TB*H, W*C), row = b*H + h,
# column = w*C + c.  For every layer we build:
#   A_all : (kh*TB*Hout, TB*Hin)   0/1 row selector, tap-stacked + batch-block-diag
#                                  (encodes row stride / padding / convT scatter)
#   G     : (kh, Win*Cin, Wout*Cout)  banded weight matrices (W stride/pad + channels)
# so a layer is    act( sum_i  (A_all @ X)[i-th tap block] @ G[i]  + bias_row ).
# Max-pool uses the same structure with 0/1 selectors P_all (rows) / Q (cols) and a
# VPU max over the k*k candidate slabs.
# ----------------------------------------------------------------------------
def build_plan(params, H, W, TB):
    ops = []
    eye_tb = np.eye(TB, dtype=np.float32)

    def stack_taps(A):
        # A: (taps, hout, hin) -> (taps*TB*hout, TB*hin), tap-major row blocks,
        # each block batch-block-diagonal so rows follow the (b*H + h) slab layout.
        return np.concatenate([np.kron(eye_tb, A[i]) for i in range(A.shape[0])], axis=0)

    def add_conv(wkey, bkey, s, p, act, hin, win, cin, transposed):
        w = np.asarray(params[wkey], np.float32)
        b = np.asarray(params[bkey], np.float32)
        if transposed:
            _, cout, kh, kw = w.shape
            hout = (hin - 1) * s - 2 * p + kh
            wout = (win - 1) * s - 2 * p + kw
        else:
            cout, _, kh, kw = w.shape
            hout = (hin + 2 * p - kh) // s + 1
            wout = (win + 2 * p - kw) // s + 1
        A = np.zeros((kh, hout, hin), np.float32)
        G = np.zeros((kh, win * cin, wout * cout), np.float32)
        for i in range(kh):
            if transposed:
                for h in range(hin):
                    oh = s * h + i - p
                    if 0 <= oh < hout:
                        A[i, oh, h] = 1.0
            else:
                for ho in range(hout):
                    h = s * ho + i - p
                    if 0 <= h < hin:
                        A[i, ho, h] = 1.0
            for j in range(kw):
                if transposed:
                    for ww in range(win):
                        ow = s * ww + j - p
                        if 0 <= ow < wout:
                            G[i, ww * cin:(ww + 1) * cin,
                              ow * cout:(ow + 1) * cout] = w[:, :, i, j]
                else:
                    for wo in range(wout):
                        ww = s * wo + j - p
                        if 0 <= ww < win:
                            G[i, ww * cin:(ww + 1) * cin,
                              wo * cout:(wo + 1) * cout] = w[:, :, i, j].T
        A_all = stack_taps(A)
        brow = np.tile(b, wout).reshape(1, wout * cout).astype(np.float32)
        m = TB * hout
        K, N = win * cin, wout * cout
        flops = 2 * A_all.shape[0] * A_all.shape[1] * K + kh * 2 * m * K * N
        ops.append(dict(kind="conv", act=act, n_taps=kh, rows=m, flops=int(flops),
                        arrays=[(A_all, jnp.bfloat16),
                                (G, jnp.bfloat16),
                                (brow, jnp.float32)]))
        return hout, wout, cout

    def add_pool(k, s, hin, win, c):
        hout = (hin - k) // s + 1
        wout = (win - k) // s + 1
        P = np.zeros((k, hout, hin), np.float32)
        Q = np.zeros((k, win * c, wout * c), np.float32)
        eye_c = np.eye(c, dtype=np.float32)
        for d in range(k):
            for a in range(hout):
                P[d, a, s * a + d] = 1.0
            for bq in range(wout):
                w0 = s * bq + d
                Q[d, w0 * c:(w0 + 1) * c, bq * c:(bq + 1) * c] = eye_c
        P_all = stack_taps(P)
        m = TB * hout
        flops = (2 * P_all.shape[0] * P_all.shape[1] * (win * c)
                 + k * k * 2 * m * (win * c) * (wout * c))
        ops.append(dict(kind="pool", n_taps=k, rows=m, flops=int(flops),
                        arrays=[(P_all, jnp.bfloat16), (Q, jnp.bfloat16)]))
        return hout, wout, c

    h, w_, c = H, W, 1
    # encoder
    h, w_, c = add_conv("enc1_w", "enc1_b", 3, 1, "relu", h, w_, c, transposed=False)
    h, w_, c = add_pool(2, 2, h, w_, c)
    h, w_, c = add_conv("enc2_w", "enc2_b", 2, 1, "relu", h, w_, c, transposed=False)
    h, w_, c = add_pool(2, 1, h, w_, c)
    # decoder
    h, w_, c = add_conv("dec1_w", "dec1_b", 2, 0, "relu", h, w_, c, transposed=True)
    h, w_, c = add_conv("dec2_w", "dec2_b", 3, 1, "relu", h, w_, c, transposed=True)
    h, w_, c = add_conv("dec3_w", "dec3_b", 2, 1, "tanh", h, w_, c, transposed=True)
    return ops, (h, w_, c)


# ----------------------------------------------------------------------------
# The single fused Pallas kernel (entire forward pass, TB images per grid step)
# ----------------------------------------------------------------------------
def make_forward(ops, out_hwc, H, W, TB):
    operands = [jnp.asarray(a, dtype=dt) for op in ops for (a, dt) in op["arrays"]]
    Ho, Wo, Co = out_hwc

    def kernel(x_ref, *refs):
        out_ref = refs[-1]
        prefs = refs[:-1]
        y = x_ref[...]                                  # (TB*H, W*Cin) bf16, Cin == 1
        idx = 0
        for op in ops:
            yb = y.astype(jnp.bfloat16)                 # bf16 MXU operands, f32 accum
            m = op["rows"]                              # TB * Hout (multiple of 8)
            if op["kind"] == "conv":
                a_ref, g_ref, b_ref = prefs[idx], prefs[idx + 1], prefs[idx + 2]
                idx += 3
                # One stacked row-selector matmul covering all kh taps.
                r = jnp.dot(a_ref[...], yb, preferred_element_type=jnp.float32)
                acc = None
                for i in range(op["n_taps"]):
                    ri = r[i * m:(i + 1) * m].astype(jnp.bfloat16)   # aligned f32 slice
                    term = jnp.dot(ri, g_ref[i], preferred_element_type=jnp.float32)
                    acc = term if acc is None else acc + term
                acc = acc + b_ref[...]
                if op["act"] == "relu":
                    acc = jnp.maximum(acc, 0.0)
                elif op["act"] == "tanh":
                    acc = jnp.tanh(acc)
                y = acc
            else:  # fused max-pool: 1 stacked row-selector matmul + k^2 col matmuls
                p_ref, q_ref = prefs[idx], prefs[idx + 1]
                idx += 2
                r = jnp.dot(p_ref[...], yb, preferred_element_type=jnp.float32)
                best = None
                for di in range(op["n_taps"]):
                    rows = r[di * m:(di + 1) * m].astype(jnp.bfloat16)
                    for dj in range(op["n_taps"]):
                        slab = jnp.dot(rows, q_ref[dj],
                                       preferred_element_type=jnp.float32)
                        best = slab if best is None else jnp.maximum(best, slab)
                y = best
        out_ref[...] = y.astype(out_ref.dtype)          # (TB*Ho, Wo*Co), no reshape

    def _const_map(nd):
        return lambda b: (0,) * nd

    flops_step = sum(op["flops"] for op in ops)
    tanh_step = TB * Ho * Wo * Co

    def forward(x_nchw, operands):
        assert x_nchw.shape[1] == 1, "first conv expects a single input channel"
        B = x_nchw.shape[0]
        n_steps = max(1, -(-B // TB))
        Bp = n_steps * TB
        x2d = x_nchw.astype(jnp.bfloat16).reshape(B, H, W)
        if Bp != B:
            x2d = jnp.concatenate(
                [x2d, jnp.zeros((Bp - B, H, W), x2d.dtype)], axis=0)
        x2d = x2d.reshape(Bp * H, W)                    # (Bp*H, W*Cin), Cin == 1

        operand_bytes = sum(int(np.prod(a.shape)) * a.dtype.itemsize for a in operands)
        cost = pl.CostEstimate(
            flops=int(flops_step * n_steps),
            transcendentals=int(tanh_step * n_steps),
            bytes_accessed=int(x2d.size * 2 + Bp * Ho * Wo * Co * 4 + operand_bytes))

        in_specs = [pl.BlockSpec((TB * H, W), lambda b: (b, 0))]
        in_specs += [pl.BlockSpec(a.shape, _const_map(a.ndim)) for a in operands]
        out = pl.pallas_call(
            kernel,
            out_shape=jax.ShapeDtypeStruct((Bp * Ho, Wo * Co), jnp.float32),
            grid=(n_steps,),
            in_specs=in_specs,
            out_specs=pl.BlockSpec((TB * Ho, Wo * Co), lambda b: (b, 0)),
            compiler_params=pltpu.CompilerParams(
                dimension_semantics=("parallel",)),
            cost_estimate=cost,
        )(x2d, *operands)
        # (Bp*Ho, Wo*Co) lane-dense slab -> NCHW
        out = out.reshape(Bp, Ho, Wo, Co)[:B]
        return jnp.transpose(out, (0, 3, 1, 2))

    return forward, operands


# ----------------------------------------------------------------------------
# Pure-XLA reference of the same PyTorch module (for numerical validation)
# ----------------------------------------------------------------------------
def reference_forward(x, params):
    def conv(x, w, b, s, p):
        y = jax.lax.conv_general_dilated(
            x, w, window_strides=(s, s), padding=((p, p), (p, p)),
            dimension_numbers=("NCHW", "OIHW", "NCHW"))
        return y + b.reshape(1, -1, 1, 1)

    def convt(x, w, b, s, p):
        k = w.shape[2]
        w_conv = jnp.flip(jnp.transpose(w, (1, 0, 2, 3)), (2, 3))
        y = jax.lax.conv_general_dilated(
            x, w_conv, window_strides=(1, 1),
            padding=((k - 1 - p, k - 1 - p), (k - 1 - p, k - 1 - p)),
            lhs_dilation=(s, s), dimension_numbers=("NCHW", "OIHW", "NCHW"))
        return y + b.reshape(1, -1, 1, 1)

    def pool(x, k, s):
        return jax.lax.reduce_window(
            x, -jnp.inf, jax.lax.max, (1, 1, k, k), (1, 1, s, s), "VALID")

    y = jax.nn.relu(conv(x, params["enc1_w"], params["enc1_b"], 3, 1))
    y = pool(y, 2, 2)
    y = jax.nn.relu(conv(y, params["enc2_w"], params["enc2_b"], 2, 1))
    y = pool(y, 2, 1)
    y = jax.nn.relu(convt(y, params["dec1_w"], params["dec1_b"], 2, 0))
    y = jax.nn.relu(convt(y, params["dec2_w"], params["dec2_b"], 3, 1))
    y = jnp.tanh(convt(y, params["dec3_w"], params["dec3_b"], 2, 1))
    return y


if __name__ == "__main__":
    key = jax.random.PRNGKey(0)
    k_x, k_p = jax.random.split(key)

    B, H, W = 16, 28, 28          # MNIST-style input the module implies
    TB = 8                        # batch tile: 2 grid steps so v7x's 2 TCs both get work
    x = jax.random.normal(k_x, (B, 1, H, W), jnp.float32)
    params = init_params(k_p)

    # one-time host-side weight repacking; forward = a single fused Pallas kernel
    ops, out_hwc = build_plan(params, H, W, TB)
    forward, operands = make_forward(ops, out_hwc, H, W, TB)
    forward_jit = jax.jit(forward)

    out = jax.block_until_ready(forward_jit(x, operands))

    assert out.shape == (B, 1, H, W), out.shape
    assert out.dtype == jnp.float32
    assert bool(jnp.all(jnp.isfinite(out)))
    assert bool(jnp.all(jnp.abs(out) <= 1.0))            # tanh output range

    # numerical check against a pure-XLA f32 reference of the same module
    ref = jax.block_until_ready(jax.jit(reference_forward)(x, params))
    max_err = float(jnp.max(jnp.abs(out - ref)))
    tol = 5e-2 * float(jnp.max(jnp.abs(ref))) + 2e-3     # bf16 operands, f32 accumulation
    assert max_err <= tol, f"max |out - ref| = {max_err} (tol {tol})"

    print("KERNEL_OK")
</pallas_src>

<mosaic_0001>
module attributes {stable_mosaic.version = 11 : i64} {
  func.func @kernel(%arg0: i32, %arg1: memref<224x28xbf16, #tpu.memory_space<vmem>>, %arg2: memref<240x224xbf16, #tpu.memory_space<vmem>>, %arg3: memref<3x28x160xbf16, #tpu.memory_space<vmem>>, %arg4: memref<1x160xf32, #tpu.memory_space<vmem>>, %arg5: memref<80x80xbf16, #tpu.memory_space<vmem>>, %arg6: memref<2x160x80xbf16, #tpu.memory_space<vmem>>, %arg7: memref<72x40xbf16, #tpu.memory_space<vmem>>, %arg8: memref<3x80x24xbf16, #tpu.memory_space<vmem>>, %arg9: memref<1x24xf32, #tpu.memory_space<vmem>>, %arg10: memref<32x24xbf16, #tpu.memory_space<vmem>>, %arg11: memref<2x24x16xbf16, #tpu.memory_space<vmem>>, %arg12: memref<120x16xbf16, #tpu.memory_space<vmem>>, %arg13: memref<3x16x80xbf16, #tpu.memory_space<vmem>>, %arg14: memref<1x80xf32, #tpu.memory_space<vmem>>, %arg15: memref<600x40xbf16, #tpu.memory_space<vmem>>, %arg16: memref<5x80x120xbf16, #tpu.memory_space<vmem>>, %arg17: memref<1x120xf32, #tpu.memory_space<vmem>>, %arg18: memref<448x120xbf16, #tpu.memory_space<vmem>>, %arg19: memref<2x120x28xbf16, #tpu.memory_space<vmem>>, %arg20: memref<1x28xf32, #tpu.memory_space<vmem>>, %arg21: memref<224x28xf32, #tpu.memory_space<vmem>>) attributes {dimension_semantics = [#tpu.dimension_semantics<parallel>], iteration_bounds = array<i64: 2>, scalar_prefetch = 0 : i64, scratch_operands = 0 : i64, tpu.core_type = #tpu.core_type<tc>, window_params = [{transform_indices = @transform_0, window_bounds = array<i64: 224, 28>}, {pipeline_mode = #tpu.pipeline_mode<synchronous>, transform_indices = @transform_1, window_bounds = array<i64: 240, 224>}, {pipeline_mode = #tpu.pipeline_mode<synchronous>, transform_indices = @transform_2, window_bounds = array<i64: 3, 28, 160>}, {pipeline_mode = #tpu.pipeline_mode<synchronous>, transform_indices = @transform_3, window_bounds = array<i64: 1, 160>}, {pipeline_mode = #tpu.pipeline_mode<synchronous>, transform_indices = @transform_4, window_bounds = array<i64: 80, 80>}, {pipeline_mode = #tpu.pipeline_mode<synchronous>, transform_indices = @transform_5, window_bounds = array<i64: 2, 160, 80>}, {pipeline_mode = #tpu.pipeline_mode<synchronous>, transform_indices = @transform_6, window_bounds = array<i64: 72, 40>}, {pipeline_mode = #tpu.pipeline_mode<synchronous>, transform_indices = @transform_7, window_bounds = array<i64: 3, 80, 24>}, {pipeline_mode = #tpu.pipeline_mode<synchronous>, transform_indices = @transform_8, window_bounds = array<i64: 1, 24>}, {pipeline_mode = #tpu.pipeline_mode<synchronous>, transform_indices = @transform_9, window_bounds = array<i64: 32, 24>}, {pipeline_mode = #tpu.pipeline_mode<synchronous>, transform_indices = @transform_10, window_bounds = array<i64: 2, 24, 16>}, {pipeline_mode = #tpu.pipeline_mode<synchronous>, transform_indices = @transform_11, window_bounds = array<i64: 120, 16>}, {pipeline_mode = #tpu.pipeline_mode<synchronous>, transform_indices = @transform_12, window_bounds = array<i64: 3, 16, 80>}, {pipeline_mode = #tpu.pipeline_mode<synchronous>, transform_indices = @transform_13, window_bounds = array<i64: 1, 80>}, {pipeline_mode = #tpu.pipeline_mode<synchronous>, transform_indices = @transform_14, window_bounds = array<i64: 600, 40>}, {pipeline_mode = #tpu.pipeline_mode<synchronous>, transform_indices = @transform_15, window_bounds = array<i64: 5, 80, 120>}, {pipeline_mode = #tpu.pipeline_mode<synchronous>, transform_indices = @transform_16, window_bounds = array<i64: 1, 120>}, {pipeline_mode = #tpu.pipeline_mode<synchronous>, transform_indices = @transform_17, window_bounds = array<i64: 448, 120>}, {pipeline_mode = #tpu.pipeline_mode<synchronous>, transform_indices = @transform_18, window_bounds = array<i64: 2, 120, 28>}, {pipeline_mode = #tpu.pipeline_mode<synchronous>, transform_indices = @transform_19, window_bounds = array<i64: 1, 28>}, {transform_indices = @transform_20, window_bounds = array<i64: 224, 28>}]} {
    %c0 = arith.constant 0 : index
    %c0_0 = arith.constant 0 : index
    %0 = vector.load %arg1[%c0, %c0_0] : memref<224x28xbf16, #tpu.memory_space<vmem>>, vector<224x28xbf16>
    %c0_1 = arith.constant 0 : index
    %c0_2 = arith.constant 0 : index
    %1 = vector.load %arg2[%c0_1, %c0_2] : memref<240x224xbf16, #tpu.memory_space<vmem>>, vector<240x224xbf16>
    %cst = arith.constant dense<0.000000e+00> : vector<240x28xf32>
    %2 = tpu.matmul %1, %0, %cst {dimension_numbers = #tpu.dot_dimension_numbers<[1], [0], [0], [1], [0, 0, 1, 1], [], []>} : vector<240x224xbf16>, vector<224x28xbf16>, vector<240x28xf32> -> vector<240x28xf32>
    %3 = vector.extract_strided_slice %2 {offsets = [0, 0], sizes = [80, 28], strides = [1, 1]} : vector<240x28xf32> to vector<80x28xf32>
    %4 = arith.truncf %3 : vector<80x28xf32> to vector<80x28xbf16>
    %c0_3 = arith.constant 0 : index
    %c0_4 = arith.constant 0 : index
    %c0_5 = arith.constant 0 : index
    %5 = vector.load %arg3[%c0_3, %c0_4, %c0_5] : memref<3x28x160xbf16, #tpu.memory_space<vmem>>, vector<1x28x160xbf16>
    %6 = vector.shape_cast %5 : vector<1x28x160xbf16> to vector<28x160xbf16>
    %cst_6 = arith.constant dense<0.000000e+00> : vector<80x160xf32>
    %7 = tpu.matmul %4, %6, %cst_6 {dimension_numbers = #tpu.dot_dimension_numbers<[1], [0], [0], [1], [0, 0, 1, 1], [], []>} : vector<80x28xbf16>, vector<28x160xbf16>, vector<80x160xf32> -> vector<80x160xf32>
    %8 = vector.extract_strided_slice %2 {offsets = [80, 0], sizes = [80, 28], strides = [1, 1]} : vector<240x28xf32> to vector<80x28xf32>
    %9 = arith.truncf %8 : vector<80x28xf32> to vector<80x28xbf16>
    %c1 = arith.constant 1 : index
    %c0_7 = arith.constant 0 : index
    %c0_8 = arith.constant 0 : index
    %10 = vector.load %arg3[%c1, %c0_7, %c0_8] : memref<3x28x160xbf16, #tpu.memory_space<vmem>>, vector<1x28x160xbf16>
    %11 = vector.shape_cast %10 : vector<1x28x160xbf16> to vector<28x160xbf16>
    %cst_9 = arith.constant dense<0.000000e+00> : vector<80x160xf32>
    %12 = tpu.matmul %9, %11, %cst_9 {dimension_numbers = #tpu.dot_dimension_numbers<[1], [0], [0], [1], [0, 0, 1, 1], [], []>} : vector<80x28xbf16>, vector<28x160xbf16>, vector<80x160xf32> -> vector<80x160xf32>
    %13 = arith.addf %7, %12 : vector<80x160xf32>
    %14 = vector.extract_strided_slice %2 {offsets = [160, 0], sizes = [80, 28], strides = [1, 1]} : vector<240x28xf32> to vector<80x28xf32>
    %15 = arith.truncf %14 : vector<80x28xf32> to vector<80x28xbf16>
    %c2 = arith.constant 2 : index
    %c0_10 = arith.constant 0 : index
    %c0_11 = arith.constant 0 : index
    %16 = vector.load %arg3[%c2, %c0_10, %c0_11] : memref<3x28x160xbf16, #tpu.memory_space<vmem>>, vector<1x28x160xbf16>
    %17 = vector.shape_cast %16 : vector<1x28x160xbf16> to vector<28x160xbf16>
    %cst_12 = arith.constant dense<0.000000e+00> : vector<80x160xf32>
    %18 = tpu.matmul %15, %17, %cst_12 {dimension_numbers = #tpu.dot_dimension_numbers<[1], [0], [0], [1], [0, 0, 1, 1], [], []>} : vector<80x28xbf16>, vector<28x160xbf16>, vector<80x160xf32> -> vector<80x160xf32>
    %19 = arith.addf %13, %18 : vector<80x160xf32>
    %c0_13 = arith.constant 0 : index
    %c0_14 = arith.constant 0 : index
    %20 = vector.load %arg4[%c0_13, %c0_14] : memref<1x160xf32, #tpu.memory_space<vmem>>, vector<1x160xf32>
    %21 = vector.broadcast %20 : vector<1x160xf32> to vector<80x160xf32>
    %22 = arith.addf %19, %21 : vector<80x160xf32>
    %cst_15 = arith.constant 0.000000e+00 : f32
    %23 = vector.broadcast %cst_15 : f32 to vector<80x160xf32>
    %24 = arith.maximumf %22, %23 : vector<80x160xf32>
    %25 = arith.truncf %24 : vector<80x160xf32> to vector<80x160xbf16>
    %c0_16 = arith.constant 0 : index
    %c0_17 = arith.constant 0 : index
    %26 = vector.load %arg5[%c0_16, %c0_17] : memref<80x80xbf16, #tpu.memory_space<vmem>>, vector<80x80xbf16>
    %cst_18 = arith.constant dense<0.000000e+00> : vector<80x160xf32>
    %27 = tpu.matmul %26, %25, %cst_18 {dimension_numbers = #tpu.dot_dimension_numbers<[1], [0], [0], [1], [0, 0, 1, 1], [], []>} : vector<80x80xbf16>, vector<80x160xbf16>, vector<80x160xf32> -> vector<80x160xf32>
    %28 = vector.extract_strided_slice %27 {offsets = [0, 0], sizes = [40, 160], strides = [1, 1]} : vector<80x160xf32> to vector<40x160xf32>
    %29 = arith.truncf %28 : vector<40x160xf32> to vector<40x160xbf16>
    %c0_19 = arith.constant 0 : index
    %c0_20 = arith.constant 0 : index
    %c0_21 = arith.constant 0 : index
    %30 = vector.load %arg6[%c0_19, %c0_20, %c0_21] : memref<2x160x80xbf16, #tpu.memory_space<vmem>>, vector<1x160x80xbf16>
    %31 = vector.shape_cast %30 : vector<1x160x80xbf16> to vector<160x80xbf16>
    %cst_22 = arith.constant dense<0.000000e+00> : vector<40x80xf32>
    %32 = tpu.matmul %29, %31, %cst_22 {dimension_numbers = #tpu.dot_dimension_numbers<[1], [0], [0], [1], [0, 0, 1, 1], [], []>} : vector<40x160xbf16>, vector<160x80xbf16>, vector<40x80xf32> -> vector<40x80xf32>
    %c1_23 = arith.constant 1 : index
    %c0_24 = arith.constant 0 : index
    %c0_25 = arith.constant 0 : index
    %33 = vector.load %arg6[%c1_23, %c0_24, %c0_25] : memref<2x160x80xbf16, #tpu.memory_space<vmem>>, vector<1x160x80xbf16>
    %34 = vector.shape_cast %33 : vector<1x160x80xbf16> to vector<160x80xbf16>
    %cst_26 = arith.constant dense<0.000000e+00> : vector<40x80xf32>
    %35 = tpu.matmul %29, %34, %cst_26 {dimension_numbers = #tpu.dot_dimension_numbers<[1], [0], [0], [1], [0, 0, 1, 1], [], []>} : vector<40x160xbf16>, vector<160x80xbf16>, vector<40x80xf32> -> vector<40x80xf32>
    %36 = arith.maximumf %32, %35 : vector<40x80xf32>
    %37 = vector.extract_strided_slice %27 {offsets = [40, 0], sizes = [40, 160], strides = [1, 1]} : vector<80x160xf32> to vector<40x160xf32>
    %38 = arith.truncf %37 : vector<40x160xf32> to vector<40x160xbf16>
    %c0_27 = arith.constant 0 : index
    %c0_28 = arith.constant 0 : index
    %c0_29 = arith.constant 0 : index
    %39 = vector.load %arg6[%c0_27, %c0_28, %c0_29] : memref<2x160x80xbf16, #tpu.memory_space<vmem>>, vector<1x160x80xbf16>
    %40 = vector.shape_cast %39 : vector<1x160x80xbf16> to vector<160x80xbf16>
    %cst_30 = arith.constant dense<0.000000e+00> : vector<40x80xf32>
    %41 = tpu.matmul %38, %40, %cst_30 {dimension_numbers = #tpu.dot_dimension_numbers<[1], [0], [0], [1], [0, 0, 1, 1], [], []>} : vector<40x160xbf16>, vector<160x80xbf16>, vector<40x80xf32> -> vector<40x80xf32>
    %42 = arith.maximumf %36, %41 : vector<40x80xf32>
    %c1_31 = arith.constant 1 : index
    %c0_32 = arith.constant 0 : index
    %c0_33 = arith.constant 0 : index
    %43 = vector.load %arg6[%c1_31, %c0_32, %c0_33] : memref<2x160x80xbf16, #tpu.memory_space<vmem>>, vector<1x160x80xbf16>
    %44 = vector.shape_cast %43 : vector<1x160x80xbf16> to vector<160x80xbf16>
    %cst_34 = arith.constant dense<0.000000e+00> : vector<40x80xf32>
    %45 = tpu.matmul %38, %44, %cst_34 {dimension_numbers = #tpu.dot_dimension_numbers<[1], [0], [0], [1], [0, 0, 1, 1], [], []>} : vector<40x160xbf16>, vector<160x80xbf16>, vector<40x80xf32> -> vector<40x80xf32>
    %46 = arith.maximumf %42, %45 : vector<40x80xf32>
    %47 = arith.truncf %46 : vector<40x80xf32> to vector<40x80xbf16>
    %c0_35 = arith.constant 0 : index
    %c0_36 = arith.constant 0 : index
    %48 = vector.load %arg7[%c0_35, %c0_36] : memref<72x40xbf16, #tpu.memory_space<vmem>>, vector<72x40xbf16>
    %cst_37 = arith.constant dense<0.000000e+00> : vector<72x80xf32>
    %49 = tpu.matmul %48, %47, %cst_37 {dimension_numbers = #tpu.dot_dimension_numbers<[1], [0], [0], [1], [0, 0, 1, 1], [], []>} : vector<72x40xbf16>, vector<40x80xbf16>, vector<72x80xf32> -> vector<72x80xf32>
    %50 = vector.extract_strided_slice %49 {offsets = [0, 0], sizes = [24, 80], strides = [1, 1]} : vector<72x80xf32> to vector<24x80xf32>
    %51 = arith.truncf %50 : vector<24x80xf32> to vector<24x80xbf16>
    %c0_38 = arith.constant 0 : index
    %c0_39 = arith.constant 0 : index
    %c0_40 = arith.constant 0 : index
    %52 = vector.load %arg8[%c0_38, %c0_39, %c0_40] : memref<3x80x24xbf16, #tpu.memory_space<vmem>>, vector<1x80x24xbf16>
    %53 = vector.shape_cast %52 : vector<1x80x24xbf16> to vector<80x24xbf16>
    %cst_41 = arith.constant dense<0.000000e+00> : vector<24x24xf32>
    %54 = tpu.matmul %51, %53, %cst_41 {dimension_numbers = #tpu.dot_dimension_numbers<[1], [0], [0], [1], [0, 0, 1, 1], [], []>} : vector<24x80xbf16>, vector<80x24xbf16>, vector<24x24xf32> -> vector<24x24xf32>
    %55 = vector.extract_strided_slice %49 {offsets = [24, 0], sizes = [24, 80], strides = [1, 1]} : vector<72x80xf32> to vector<24x80xf32>
    %56 = arith.truncf %55 : vector<24x80xf32> to vector<24x80xbf16>
    %c1_42 = arith.constant 1 : index
    %c0_43 = arith.constant 0 : index
    %c0_44 = arith.constant 0 : index
    %57 = vector.load %arg8[%c1_42, %c0_43, %c0_44] : memref<3x80x24xbf16, #tpu.memory_space<vmem>>, vector<1x80x24xbf16>
    %58 = vector.shape_cast %57 : vector<1x80x24xbf16> to vector<80x24xbf16>
    %cst_45 = arith.constant dense<0.000000e+00> : vector<24x24xf32>
    %59 = tpu.matmul %56, %58, %cst_45 {dimension_numbers = #tpu.dot_dimension_numbers<[1], [0], [0], [1], [0, 0, 1, 1], [], []>} : vector<24x80xbf16>, vector<80x24xbf16>, vector<24x24xf32> -> vector<24x24xf32>
    %60 = arith.addf %54, %59 : vector<24x24xf32>
    %61 = vector.extract_strided_slice %49 {offsets = [48, 0], sizes = [24, 80], strides = [1, 1]} : vector<72x80xf32> to vector<24x80xf32>
    %62 = arith.truncf %61 : vector<24x80xf32> to vector<24x80xbf16>
    %c2_46 = arith.constant 2 : index
    %c0_47 = arith.constant 0 : index
    %c0_48 = arith.constant 0 : index
    %63 = vector.load %arg8[%c2_46, %c0_47, %c0_48] : memref<3x80x24xbf16, #tpu.memory_space<vmem>>, vector<1x80x24xbf16>
    %64 = vector.shape_cast %63 : vector<1x80x24xbf16> to vector<80x24xbf16>
    %cst_49 = arith.constant dense<0.000000e+00> : vector<24x24xf32>
    %65 = tpu.matmul %62, %64, %cst_49 {dimension_numbers = #tpu.dot_dimension_numbers<[1], [0], [0], [1], [0, 0, 1, 1], [], []>} : vector<24x80xbf16>, vector<80x24xbf16>, vector<24x24xf32> -> vector<24x24xf32>
    %66 = arith.addf %60, %65 : vector<24x24xf32>
    %c0_50 = arith.constant 0 : index
    %c0_51 = arith.constant 0 : index
    %67 = vector.load %arg9[%c0_50, %c0_51] : memref<1x24xf32, #tpu.memory_space<vmem>>, vector<1x24xf32>
    %68 = vector.broadcast %67 : vector<1x24xf32> to vector<24x24xf32>
    %69 = arith.addf %66, %68 : vector<24x24xf32>
    %cst_52 = arith.constant 0.000000e+00 : f32
    %70 = vector.broadcast %cst_52 : f32 to vector<24x24xf32>
    %71 = arith.maximumf %69, %70 : vector<24x24xf32>
    %72 = arith.truncf %71 : vector<24x24xf32> to vector<24x24xbf16>
    %c0_53 = arith.constant 0 : index
    %c0_54 = arith.constant 0 : index
    %73 = vector.load %arg10[%c0_53, %c0_54] : memref<32x24xbf16, #tpu.memory_space<vmem>>, vector<32x24xbf16>
    %cst_55 = arith.constant dense<0.000000e+00> : vector<32x24xf32>
    %74 = tpu.matmul %73, %72, %cst_55 {dimension_numbers = #tpu.dot_dimension_numbers<[1], [0], [0], [1], [0, 0, 1, 1], [], []>} : vector<32x24xbf16>, vector<24x24xbf16>, vector<32x24xf32> -> vector<32x24xf32>
    %75 = vector.extract_strided_slice %74 {offsets = [0, 0], sizes = [16, 24], strides = [1, 1]} : vector<32x24xf32> to vector<16x24xf32>
    %76 = arith.truncf %75 : vector<16x24xf32> to vector<16x24xbf16>
    %c0_56 = arith.constant 0 : index
    %c0_57 = arith.constant 0 : index
    %c0_58 = arith.constant 0 : index
    %77 = vector.load %arg11[%c0_56, %c0_57, %c0_58] : memref<2x24x16xbf16, #tpu.memory_space<vmem>>, vector<1x24x16xbf16>
    %78 = vector.shape_cast %77 : vector<1x24x16xbf16> to vector<24x16xbf16>
    %cst_59 = arith.constant dense<0.000000e+00> : vector<16x16xf32>
    %79 = tpu.matmul %76, %78, %cst_59 {dimension_numbers = #tpu.dot_dimension_numbers<[1], [0], [0], [1], [0, 0, 1, 1], [], []>} : vector<16x24xbf16>, vector<24x16xbf16>, vector<16x16xf32> -> vector<16x16xf32>
    %c1_60 = arith.constant 1 : index
    %c0_61 = arith.constant 0 : index
    %c0_62 = arith.constant 0 : index
    %80 = vector.load %arg11[%c1_60, %c0_61, %c0_62] : memref<2x24x16xbf16, #tpu.memory_space<vmem>>, vector<1x24x16xbf16>
    %81 = vector.shape_cast %80 : vector<1x24x16xbf16> to vector<24x16xbf16>
    %cst_63 = arith.constant dense<0.000000e+00> : vector<16x16xf32>
    %82 = tpu.matmul %76, %81, %cst_63 {dimension_numbers = #tpu.dot_dimension_numbers<[1], [0], [0], [1], [0, 0, 1, 1], [], []>} : vector<16x24xbf16>, vector<24x16xbf16>, vector<16x16xf32> -> vector<16x16xf32>
    %83 = arith.maximumf %79, %82 : vector<16x16xf32>
    %84 = vector.extract_strided_slice %74 {offsets = [16, 0], sizes = [16, 24], strides = [1, 1]} : vector<32x24xf32> to vector<16x24xf32>
    %85 = arith.truncf %84 : vector<16x24xf32> to vector<16x24xbf16>
    %c0_64 = arith.constant 0 : index
    %c0_65 = arith.constant 0 : index
    %c0_66 = arith.constant 0 : index
    %86 = vector.load %arg11[%c0_64, %c0_65, %c0_66] : memref<2x24x16xbf16, #tpu.memory_space<vmem>>, vector<1x24x16xbf16>
    %87 = vector.shape_cast %86 : vector<1x24x16xbf16> to vector<24x16xbf16>
    %cst_67 = arith.constant dense<0.000000e+00> : vector<16x16xf32>
    %88 = tpu.matmul %85, %87, %cst_67 {dimension_numbers = #tpu.dot_dimension_numbers<[1], [0], [0], [1], [0, 0, 1, 1], [], []>} : vector<16x24xbf16>, vector<24x16xbf16>, vector<16x16xf32> -> vector<16x16xf32>
    %89 = arith.maximumf %83, %88 : vector<16x16xf32>
    %c1_68 = arith.constant 1 : index
    %c0_69 = arith.constant 0 : index
    %c0_70 = arith.constant 0 : index
    %90 = vector.load %arg11[%c1_68, %c0_69, %c0_70] : memref<2x24x16xbf16, #tpu.memory_space<vmem>>, vector<1x24x16xbf16>
    %91 = vector.shape_cast %90 : vector<1x24x16xbf16> to vector<24x16xbf16>
    %cst_71 = arith.constant dense<0.000000e+00> : vector<16x16xf32>
    %92 = tpu.matmul %85, %91, %cst_71 {dimension_numbers = #tpu.dot_dimension_numbers<[1], [0], [0], [1], [0, 0, 1, 1], [], []>} : vector<16x24xbf16>, vector<24x16xbf16>, vector<16x16xf32> -> vector<16x16xf32>
    %93 = arith.maximumf %89, %92 : vector<16x16xf32>
    %94 = arith.truncf %93 : vector<16x16xf32> to vector<16x16xbf16>
    %c0_72 = arith.constant 0 : index
    %c0_73 = arith.constant 0 : index
    %95 = vector.load %arg12[%c0_72, %c0_73] : memref<120x16xbf16, #tpu.memory_space<vmem>>, vector<120x16xbf16>
    %cst_74 = arith.constant dense<0.000000e+00> : vector<120x16xf32>
    %96 = tpu.matmul %95, %94, %cst_74 {dimension_numbers = #tpu.dot_dimension_numbers<[1], [0], [0], [1], [0, 0, 1, 1], [], []>} : vector<120x16xbf16>, vector<16x16xbf16>, vector<120x16xf32> -> vector<120x16xf32>
    %97 = vector.extract_strided_slice %96 {offsets = [0, 0], sizes = [40, 16], strides = [1, 1]} : vector<120x16xf32> to vector<40x16xf32>
    %98 = arith.truncf %97 : vector<40x16xf32> to vector<40x16xbf16>
    %c0_75 = arith.constant 0 : index
    %c0_76 = arith.constant 0 : index
    %c0_77 = arith.constant 0 : index
    %99 = vector.load %arg13[%c0_75, %c0_76, %c0_77] : memref<3x16x80xbf16, #tpu.memory_space<vmem>>, vector<1x16x80xbf16>
    %100 = vector.shape_cast %99 : vector<1x16x80xbf16> to vector<16x80xbf16>
    %cst_78 = arith.constant dense<0.000000e+00> : vector<40x80xf32>
    %101 = tpu.matmul %98, %100, %cst_78 {dimension_numbers = #tpu.dot_dimension_numbers<[1], [0], [0], [1], [0, 0, 1, 1], [], []>} : vector<40x16xbf16>, vector<16x80xbf16>, vector<40x80xf32> -> vector<40x80xf32>
    %102 = vector.extract_strided_slice %96 {offsets = [40, 0], sizes = [40, 16], strides = [1, 1]} : vector<120x16xf32> to vector<40x16xf32>
    %103 = arith.truncf %102 : vector<40x16xf32> to vector<40x16xbf16>
    %c1_79 = arith.constant 1 : index
    %c0_80 = arith.constant 0 : index
    %c0_81 = arith.constant 0 : index
    %104 = vector.load %arg13[%c1_79, %c0_80, %c0_81] : memref<3x16x80xbf16, #tpu.memory_space<vmem>>, vector<1x16x80xbf16>
    %105 = vector.shape_cast %104 : vector<1x16x80xbf16> to vector<16x80xbf16>
    %cst_82 = arith.constant dense<0.000000e+00> : vector<40x80xf32>
    %106 = tpu.matmul %103, %105, %cst_82 {dimension_numbers = #tpu.dot_dimension_numbers<[1], [0], [0], [1], [0, 0, 1, 1], [], []>} : vector<40x16xbf16>, vector<16x80xbf16>, vector<40x80xf32> -> vector<40x80xf32>
    %107 = arith.addf %101, %106 : vector<40x80xf32>
    %108 = vector.extract_strided_slice %96 {offsets = [80, 0], sizes = [40, 16], strides = [1, 1]} : vector<120x16xf32> to vector<40x16xf32>
    %109 = arith.truncf %108 : vector<40x16xf32> to vector<40x16xbf16>
    %c2_83 = arith.constant 2 : index
    %c0_84 = arith.constant 0 : index
    %c0_85 = arith.constant 0 : index
    %110 = vector.load %arg13[%c2_83, %c0_84, %c0_85] : memref<3x16x80xbf16, #tpu.memory_space<vmem>>, vector<1x16x80xbf16>
    %111 = vector.shape_cast %110 : vector<1x16x80xbf16> to vector<16x80xbf16>
    %cst_86 = arith.constant dense<0.000000e+00> : vector<40x80xf32>
    %112 = tpu.matmul %109, %111, %cst_86 {dimension_numbers = #tpu.dot_dimension_numbers<[1], [0], [0], [1], [0, 0, 1, 1], [], []>} : vector<40x16xbf16>, vector<16x80xbf16>, vector<40x80xf32> -> vector<40x80xf32>
    %113 = arith.addf %107, %112 : vector<40x80xf32>
    %c0_87 = arith.constant 0 : index
    %c0_88 = arith.constant 0 : index
    %114 = vector.load %arg14[%c0_87, %c0_88] : memref<1x80xf32, #tpu.memory_space<vmem>>, vector<1x80xf32>
    %115 = vector.broadcast %114 : vector<1x80xf32> to vector<40x80xf32>
    %116 = arith.addf %113, %115 : vector<40x80xf32>
    %cst_89 = arith.constant 0.000000e+00 : f32
    %117 = vector.broadcast %cst_89 : f32 to vector<40x80xf32>
    %118 = arith.maximumf %116, %117 : vector<40x80xf32>
    %119 = arith.truncf %118 : vector<40x80xf32> to vector<40x80xbf16>
    %c0_90 = arith.constant 0 : index
    %c0_91 = arith.constant 0 : index
    %120 = vector.load %arg15[%c0_90, %c0_91] : memref<600x40xbf16, #tpu.memory_space<vmem>>, vector<600x40xbf16>
    %cst_92 = arith.constant dense<0.000000e+00> : vector<600x80xf32>
    %121 = tpu.matmul %120, %119, %cst_92 {dimension_numbers = #tpu.dot_dimension_numbers<[1], [0], [0], [1], [0, 0, 1, 1], [], []>} : vector<600x40xbf16>, vector<40x80xbf16>, vector<600x80xf32> -> vector<600x80xf32>
    %122 = vector.extract_strided_slice %121 {offsets = [0, 0], sizes = [120, 80], strides = [1, 1]} : vector<600x80xf32> to vector<120x80xf32>
    %123 = arith.truncf %122 : vector<120x80xf32> to vector<120x80xbf16>
    %c0_93 = arith.constant 0 : index
    %c0_94 = arith.constant 0 : index
    %c0_95 = arith.constant 0 : index
    %124 = vector.load %arg16[%c0_93, %c0_94, %c0_95] : memref<5x80x120xbf16, #tpu.memory_space<vmem>>, vector<1x80x120xbf16>
    %125 = vector.shape_cast %124 : vector<1x80x120xbf16> to vector<80x120xbf16>
    %cst_96 = arith.constant dense<0.000000e+00> : vector<120x120xf32>
    %126 = tpu.matmul %123, %125, %cst_96 {dimension_numbers = #tpu.dot_dimension_numbers<[1], [0], [0], [1], [0, 0, 1, 1], [], []>} : vector<120x80xbf16>, vector<80x120xbf16>, vector<120x120xf32> -> vector<120x120xf32>
    %127 = vector.extract_strided_slice %121 {offsets = [120, 0], sizes = [120, 80], strides = [1, 1]} : vector<600x80xf32> to vector<120x80xf32>
    %128 = arith.truncf %127 : vector<120x80xf32> to vector<120x80xbf16>
    %c1_97 = arith.constant 1 : index
    %c0_98 = arith.constant 0 : index
    %c0_99 = arith.constant 0 : index
    %129 = vector.load %arg16[%c1_97, %c0_98, %c0_99] : memref<5x80x120xbf16, #tpu.memory_space<vmem>>, vector<1x80x120xbf16>
    %130 = vector.shape_cast %129 : vector<1x80x120xbf16> to vector<80x120xbf16>
    %cst_100 = arith.constant dense<0.000000e+00> : vector<120x120xf32>
    %131 = tpu.matmul %128, %130, %cst_100 {dimension_numbers = #tpu.dot_dimension_numbers<[1], [0], [0], [1], [0, 0, 1, 1], [], []>} : vector<120x80xbf16>, vector<80x120xbf16>, vector<120x120xf32> -> vector<120x120xf32>
    %132 = arith.addf %126, %131 : vector<120x120xf32>
    %133 = vector.extract_strided_slice %121 {offsets = [240, 0], sizes = [120, 80], strides = [1, 1]} : vector<600x80xf32> to vector<120x80xf32>
    %134 = arith.truncf %133 : vector<120x80xf32> to vector<120x80xbf16>
    %c2_101 = arith.constant 2 : index
    %c0_102 = arith.constant 0 : index
    %c0_103 = arith.constant 0 : index
    %135 = vector.load %arg16[%c2_101, %c0_102, %c0_103] : memref<5x80x120xbf16, #tpu.memory_space<vmem>>, vector<1x80x120xbf16>
    %136 = vector.shape_cast %135 : vector<1x80x120xbf16> to vector<80x120xbf16>
    %cst_104 = arith.constant dense<0.000000e+00> : vector<120x120xf32>
    %137 = tpu.matmul %134, %136, %cst_104 {dimension_numbers = #tpu.dot_dimension_numbers<[1], [0], [0], [1], [0, 0, 1, 1], [], []>} : vector<120x80xbf16>, vector<80x120xbf16>, vector<120x120xf32> -> vector<120x120xf32>
    %138 = arith.addf %132, %137 : vector<120x120xf32>
    %139 = vector.extract_strided_slice %121 {offsets = [360, 0], sizes = [120, 80], strides = [1, 1]} : vector<600x80xf32> to vector<120x80xf32>
    %140 = arith.truncf %139 : vector<120x80xf32> to vector<120x80xbf16>
    %c3 = arith.constant 3 : index
    %c0_105 = arith.constant 0 : index
    %c0_106 = arith.constant 0 : index
    %141 = vector.load %arg16[%c3, %c0_105, %c0_106] : memref<5x80x120xbf16, #tpu.memory_space<vmem>>, vector<1x80x120xbf16>
    %142 = vector.shape_cast %141 : vector<1x80x120xbf16> to vector<80x120xbf16>
    %cst_107 = arith.constant dense<0.000000e+00> : vector<120x120xf32>
    %143 = tpu.matmul %140, %142, %cst_107 {dimension_numbers = #tpu.dot_dimension_numbers<[1], [0], [0], [1], [0, 0, 1, 1], [], []>} : vector<120x80xbf16>, vector<80x120xbf16>, vector<120x120xf32> -> vector<120x120xf32>
    %144 = arith.addf %138, %143 : vector<120x120xf32>
    %145 = vector.extract_strided_slice %121 {offsets = [480, 0], sizes = [120, 80], strides = [1, 1]} : vector<600x80xf32> to vector<120x80xf32>
    %146 = arith.truncf %145 : vector<120x80xf32> to vector<120x80xbf16>
    %c4 = arith.constant 4 : index
    %c0_108 = arith.constant 0 : index
    %c0_109 = arith.constant 0 : index
    %147 = vector.load %arg16[%c4, %c0_108, %c0_109] : memref<5x80x120xbf16, #tpu.memory_space<vmem>>, vector<1x80x120xbf16>
    %148 = vector.shape_cast %147 : vector<1x80x120xbf16> to vector<80x120xbf16>
    %cst_110 = arith.constant dense<0.000000e+00> : vector<120x120xf32>
    %149 = tpu.matmul %146, %148, %cst_110 {dimension_numbers = #tpu.dot_dimension_numbers<[1], [0], [0], [1], [0, 0, 1, 1], [], []>} : vector<120x80xbf16>, vector<80x120xbf16>, vector<120x120xf32> -> vector<120x120xf32>
    %150 = arith.addf %144, %149 : vector<120x120xf32>
    %c0_111 = arith.constant 0 : index
    %c0_112 = arith.constant 0 : index
    %151 = vector.load %arg17[%c0_111, %c0_112] : memref<1x120xf32, #tpu.memory_space<vmem>>, vector<1x120xf32>
    %152 = vector.broadcast %151 : vector<1x120xf32> to vector<120x120xf32>
    %153 = arith.addf %150, %152 : vector<120x120xf32>
    %cst_113 = arith.constant 0.000000e+00 : f32
    %154 = vector.broadcast %cst_113 : f32 to vector<120x120xf32>
    %155 = arith.maximumf %153, %154 : vector<120x120xf32>
    %156 = arith.truncf %155 : vector<120x120xf32> to vector<120x120xbf16>
    %c0_114 = arith.constant 0 : index
    %c0_115 = arith.constant 0 : index
    %157 = vector.load %arg18[%c0_114, %c0_115] : memref<448x120xbf16, #tpu.memory_space<vmem>>, vector<448x120xbf16>
    %cst_116 = arith.constant dense<0.000000e+00> : vector<448x120xf32>
    %158 = tpu.matmul %157, %156, %cst_116 {dimension_numbers = #tpu.dot_dimension_numbers<[1], [0], [0], [1], [0, 0, 1, 1], [], []>} : vector<448x120xbf16>, vector<120x120xbf16>, vector<448x120xf32> -> vector<448x120xf32>
    %159 = vector.extract_strided_slice %158 {offsets = [0, 0], sizes = [224, 120], strides = [1, 1]} : vector<448x120xf32> to vector<224x120xf32>
    %160 = arith.truncf %159 : vector<224x120xf32> to vector<224x120xbf16>
    %c0_117 = arith.constant 0 : index
    %c0_118 = arith.constant 0 : index
    %c0_119 = arith.constant 0 : index
    %161 = vector.load %arg19[%c0_117, %c0_118, %c0_119] : memref<2x120x28xbf16, #tpu.memory_space<vmem>>, vector<1x120x28xbf16>
    %162 = vector.shape_cast %161 : vector<1x120x28xbf16> to vector<120x28xbf16>
    %cst_120 = arith.constant dense<0.000000e+00> : vector<224x28xf32>
    %163 = tpu.matmul %160, %162, %cst_120 {dimension_numbers = #tpu.dot_dimension_numbers<[1], [0], [0], [1], [0, 0, 1, 1], [], []>} : vector<224x120xbf16>, vector<120x28xbf16>, vector<224x28xf32> -> vector<224x28xf32>
    %164 = vector.extract_strided_slice %158 {offsets = [224, 0], sizes = [224, 120], strides = [1, 1]} : vector<448x120xf32> to vector<224x120xf32>
    %165 = arith.truncf %164 : vector<224x120xf32> to vector<224x120xbf16>
    %c1_121 = arith.constant 1 : index
    %c0_122 = arith.constant 0 : index
    %c0_123 = arith.constant 0 : index
    %166 = vector.load %arg19[%c1_121, %c0_122, %c0_123] : memref<2x120x28xbf16, #tpu.memory_space<vmem>>, vector<1x120x28xbf16>
    %167 = vector.shape_cast %166 : vector<1x120x28xbf16> to vector<120x28xbf16>
    %cst_124 = arith.constant dense<0.000000e+00> : vector<224x28xf32>
    %168 = tpu.matmul %165, %167, %cst_124 {dimension_numbers = #tpu.dot_dimension_numbers<[1], [0], [0], [1], [0, 0, 1, 1], [], []>} : vector<224x120xbf16>, vector<120x28xbf16>, vector<224x28xf32> -> vector<224x28xf32>
    %169 = arith.addf %163, %168 : vector<224x28xf32>
    %c0_125 = arith.constant 0 : index
    %c0_126 = arith.constant 0 : index
    %170 = vector.load %arg20[%c0_125, %c0_126] : memref<1x28xf32, #tpu.memory_space<vmem>>, vector<1x28xf32>
    %171 = vector.broadcast %170 : vector<1x28xf32> to vector<224x28xf32>
    %172 = arith.addf %169, %171 : vector<224x28xf32>
    %173 = math.tanh %172 : vector<224x28xf32>
    %c0_127 = arith.constant 0 : index
    %c0_128 = arith.constant 0 : index
    %174 = vector.load %arg21[%c0_127, %c0_128] : memref<224x28xf32, #tpu.memory_space<vmem>>, vector<224x28xf32>
    tpu.vector_store %arg21[%c0_127, %c0_128], %173 {strides = array<i32>} : memref<224x28xf32, #tpu.memory_space<vmem>>, vector<224x28xf32>,
    return
  }
  func.func @transform_0(%arg0: i32) -> (i32, i32) {
    %c0_i32 = arith.constant 0 : i32
    %c0_i32_0 = arith.constant 0 : i32
    return %arg0, %c0_i32 : i32, i32
  }
  func.func @transform_1(%arg0: i32) -> (i32, i32) {
    %c0_i32 = arith.constant 0 : i32
    %c0_i32_0 = arith.constant 0 : i32
    %c0_i32_1 = arith.constant 0 : i32
    return %c0_i32, %c0_i32_0 : i32, i32
  }
  func.func @transform_2(%arg0: i32) -> (i32, i32, i32) {
    %c0_i32 = arith.constant 0 : i32
    %c0_i32_0 = arith.constant 0 : i32
    %c0_i32_1 = arith.constant 0 : i32
    %c0_i32_2 = arith.constant 0 : i32
    return %c0_i32, %c0_i32_0, %c0_i32_1 : i32, i32, i32
  }
  func.func @transform_3(%arg0: i32) -> (i32, i32) {
    %c0_i32 = arith.constant 0 : i32
    %c0_i32_0 = arith.constant 0 : i32
    %c0_i32_1 = arith.constant 0 : i32
    return %c0_i32, %c0_i32_0 : i32, i32
  }
  func.func @transform_4(%arg0: i32) -> (i32, i32) {
    %c0_i32 = arith.constant 0 : i32
    %c0_i32_0 = arith.constant 0 : i32
    %c0_i32_1 = arith.constant 0 : i32
    return %c0_i32, %c0_i32_0 : i32, i32
  }
  func.func @transform_5(%arg0: i32) -> (i32, i32, i32) {
    %c0_i32 = arith.constant 0 : i32
    %c0_i32_0 = arith.constant 0 : i32
    %c0_i32_1 = arith.constant 0 : i32
    %c0_i32_2 = arith.constant 0 : i32
    return %c0_i32, %c0_i32_0, %c0_i32_1 : i32, i32, i32
  }
  func.func @transform_6(%arg0: i32) -> (i32, i32) {
    %c0_i32 = arith.constant 0 : i32
    %c0_i32_0 = arith.constant 0 : i32
    %c0_i32_1 = arith.constant 0 : i32
    return %c0_i32, %c0_i32_0 : i32, i32
  }
  func.func @transform_7(%arg0: i32) -> (i32, i32, i32) {
    %c0_i32 = arith.constant 0 : i32
    %c0_i32_0 = arith.constant 0 : i32
    %c0_i32_1 = arith.constant 0 : i32
    %c0_i32_2 = arith.constant 0 : i32
    return %c0_i32, %c0_i32_0, %c0_i32_1 : i32, i32, i32
  }
  func.func @transform_8(%arg0: i32) -> (i32, i32) {
    %c0_i32 = arith.constant 0 : i32
    %c0_i32_0 = arith.constant 0 : i32
    %c0_i32_1 = arith.constant 0 : i32
    return %c0_i32, %c0_i32_0 : i32, i32
  }
  func.func @transform_9(%arg0: i32) -> (i32, i32) {
    %c0_i32 = arith.constant 0 : i32
    %c0_i32_0 = arith.constant 0 : i32
    %c0_i32_1 = arith.constant 0 : i32
    return %c0_i32, %c0_i32_0 : i32, i32
  }
  func.func @transform_10(%arg0: i32) -> (i32, i32, i32) {
    %c0_i32 = arith.constant 0 : i32
    %c0_i32_0 = arith.constant 0 : i32
    %c0_i32_1 = arith.constant 0 : i32
    %c0_i32_2 = arith.constant 0 : i32
    return %c0_i32, %c0_i32_0, %c0_i32_1 : i32, i32, i32
  }
  func.func @transform_11(%arg0: i32) -> (i32, i32) {
    %c0_i32 = arith.constant 0 : i32
    %c0_i32_0 = arith.constant 0 : i32
    %c0_i32_1 = arith.constant 0 : i32
    return %c0_i32, %c0_i32_0 : i32, i32
  }
  func.func @transform_12(%arg0: i32) -> (i32, i32, i32) {
    %c0_i32 = arith.constant 0 : i32
    %c0_i32_0 = arith.constant 0 : i32
    %c0_i32_1 = arith.constant 0 : i32
    %c0_i32_2 = arith.constant 0 : i32
    return %c0_i32, %c0_i32_0, %c0_i32_1 : i32, i32, i32
  }
  func.func @transform_13(%arg0: i32) -> (i32, i32) {
    %c0_i32 = arith.constant 0 : i32
    %c0_i32_0 = arith.constant 0 : i32
    %c0_i32_1 = arith.constant 0 : i32
    return %c0_i32, %c0_i32_0 : i32, i32
  }
  func.func @transform_14(%arg0: i32) -> (i32, i32) {
    %c0_i32 = arith.constant 0 : i32
    %c0_i32_0 = arith.constant 0 : i32
    %c0_i32_1 = arith.constant 0 : i32
    return %c0_i32, %c0_i32_0 : i32, i32
  }
  func.func @transform_15(%arg0: i32) -> (i32, i32, i32) {
    %c0_i32 = arith.constant 0 : i32
    %c0_i32_0 = arith.constant 0 : i32
    %c0_i32_1 = arith.constant 0 : i32
    %c0_i32_2 = arith.constant 0 : i32
    return %c0_i32, %c0_i32_0, %c0_i32_1 : i32, i32, i32
  }
  func.func @transform_16(%arg0: i32) -> (i32, i32) {
    %c0_i32 = arith.constant 0 : i32
    %c0_i32_0 = arith.constant 0 : i32
    %c0_i32_1 = arith.constant 0 : i32
    return %c0_i32, %c0_i32_0 : i32, i32
  }
  func.func @transform_17(%arg0: i32) -> (i32, i32) {
    %c0_i32 = arith.constant 0 : i32
    %c0_i32_0 = arith.constant 0 : i32
    %c0_i32_1 = arith.constant 0 : i32
    return %c0_i32, %c0_i32_0 : i32, i32
  }
  func.func @transform_18(%arg0: i32) -> (i32, i32, i32) {
    %c0_i32 = arith.constant 0 : i32
    %c0_i32_0 = arith.constant 0 : i32
    %c0_i32_1 = arith.constant 0 : i32
    %c0_i32_2 = arith.constant 0 : i32
    return %c0_i32, %c0_i32_0, %c0_i32_1 : i32, i32, i32
  }
  func.func @transform_19(%arg0: i32) -> (i32, i32) {
    %c0_i32 = arith.constant 0 : i32
    %c0_i32_0 = arith.constant 0 : i32
    %c0_i32_1 = arith.constant 0 : i32
    return %c0_i32, %c0_i32_0 : i32, i32
  }
  func.func @transform_20(%arg0: i32) -> (i32, i32) {
    %c0_i32 = arith.constant 0 : i32
    %c0_i32_0 = arith.constant 0 : i32
    return %arg0, %c0_i32 : i32, i32
  }
}

</mosaic_0001>

<llo_original>
// kernel: forward.1
$region0: #{forward.1}
  #allocation0 [shape = 'u32[]', space=smem, size = 0x4, offset = 0x4, fixed_abs, tag = 'smem constant byte address 0x4 - core index']
  #allocation1 [shape = 'u32[144,128]{1,0:T(1,128)}', space=vmem, size = 0x12000, scoped, tag = 'internal scratch']
  %s0 = inlined_call_operand.vmem [shape: bf16[448,28], index: 0, kind: input, shape index: {}]
  %s1 = inlined_call_operand.vmem [shape: bf16[240,224], index: 1, kind: input, shape index: {}]
  %s2 = inlined_call_operand.vmem [shape: bf16[3,28,160], index: 2, kind: input, shape index: {}]
  %s3 = inlined_call_operand.vmem [shape: f32[1,160], index: 3, kind: input, shape index: {}]
  %s4 = inlined_call_operand.vmem [shape: bf16[80,80], index: 4, kind: input, shape index: {}]
  %s5 = inlined_call_operand.vmem [shape: bf16[2,160,80], index: 5, kind: input, shape index: {}]
  %s6 = inlined_call_operand.vmem [shape: bf16[72,40], index: 6, kind: input, shape index: {}]
  %s7 = inlined_call_operand.vmem [shape: bf16[3,80,24], index: 7, kind: input, shape index: {}]
  %s8 = inlined_call_operand.vmem [shape: f32[1,24], index: 8, kind: input, shape index: {}]
  %s9 = inlined_call_operand.vmem [shape: bf16[32,24], index: 9, kind: input, shape index: {}]
  %s10 = inlined_call_operand.vmem [shape: bf16[2,24,16], index: 10, kind: input, shape index: {}]
  %s11 = inlined_call_operand.vmem [shape: bf16[120,16], index: 11, kind: input, shape index: {}]
  %s12 = inlined_call_operand.vmem [shape: bf16[3,16,80], index: 12, kind: input, shape index: {}]
  %s13 = inlined_call_operand.vmem [shape: f32[1,80], index: 13, kind: input, shape index: {}]
  %s14 = inlined_call_operand.vmem [shape: bf16[600,40], index: 14, kind: input, shape index: {}]
  %s15 = inlined_call_operand.vmem [shape: bf16[5,80,120], index: 15, kind: input, shape index: {}]
  %s16 = inlined_call_operand.vmem [shape: f32[1,120], index: 16, kind: input, shape index: {}]
  %s17 = inlined_call_operand.vmem [shape: bf16[448,120], index: 17, kind: input, shape index: {}]
  %s18 = inlined_call_operand.vmem [shape: bf16[2,120,28], index: 18, kind: input, shape index: {}]
  %s19 = inlined_call_operand.vmem [shape: f32[1,28], index: 19, kind: input, shape index: {}]
  %s20 = inlined_call_operand.hbm [shape: f32[448,28], index: 20, kind: output, shape index: {}]
  %s21 = sld [smem:[#allocation0]]
  $region113: #{forward.1} parent=0
    _
  %s23 = ssub.s32 1, %s21
  %s24 = scalar_select 0, %s23, %s21
  $region1: #{forward.1} parent=0
    #allocation2 [shape = 'u8[229376]{0}', space=vmem, size = 0x38000, scoped, tag = 'output window, operand 0']
    #allocation3 [shape = 's32[2]{0}', space=sflag, size = 0x8, scoped, tag = 'scoped memory for forward.1']
    %25 = vsyncpa [#allocation3], 0
    %s26 = scalar_lea.sflag [#allocation3], 1
    %27 = vsyncpa %s26, 0
    loop: start=0, step=1, limit=4
    $region2: #{forward.1} parent=1 // loop_pre_header
      _
    $region3: #{forward.1} parent=1 // loop_header
      %s29 = sphi 0, %s33
      %p30 = scmp.ge.s32.totalorder %s29, 4
      %s39 = sphi 0, %s41
      %s42 = sphi 0, %s39
      %s43 = sphi 0, %s42
      %s59 = sphi 0, %s43
      %s63 = sphi 0, %s63
      %s65 = sphi 0, %s63
      %s66 = sphi 0, %s65
      %s80 = sphi 0, %s66
      %s84 = sphi 0, %s84
      %s86 = sphi 0, %s84
      %s87 = sphi 0, %s86
      %s101 = sphi 0, %s87
      %s105 = sphi 0, %s105
      %s107 = sphi 0, %s105
      %s108 = sphi 0, %s107
      %s122 = sphi 0, %s108
      %s126 = sphi 0, %s126
      %s128 = sphi 0, %s126
      %s129 = sphi 0, %s128
      %s143 = sphi 0, %s129
      %s147 = sphi 0, %s147
      %s149 = sphi 0, %s147
      %s150 = sphi 0, %s149
      %s164 = sphi 0, %s150
      %s168 = sphi 0, %s168
      %s170 = sphi 0, %s168
      %s171 = sphi 0, %s170
      %s185 = sphi 0, %s171
      %s189 = sphi 0, %s189
      %s191 = sphi 0, %s189
      %s192 = sphi 0, %s191
      %s206 = sphi 0, %s192
      %s210 = sphi 0, %s210
      %s212 = sphi 0, %s210
      %s213 = sphi 0, %s212
      %s227 = sphi 0, %s213
      %s231 = sphi 0, %s231
      %s233 = sphi 0, %s231
      %s234 = sphi 0, %s233
      %s248 = sphi 0, %s234
      %s252 = sphi 0, %s252
      %s254 = sphi 0, %s252
      %s255 = sphi 0, %s254
      %s269 = sphi 0, %s255
      %s273 = sphi 0, %s273
      %s275 = sphi 0, %s273
      %s276 = sphi 0, %s275
      %s290 = sphi 0, %s276
      %s294 = sphi 0, %s294
      %s296 = sphi 0, %s294
      %s297 = sphi 0, %s296
      %s311 = sphi 0, %s297
      %s315 = sphi 0, %s315
      %s317 = sphi 0, %s315
      %s318 = sphi 0, %s317
      %s332 = sphi 0, %s318
      %s336 = sphi 0, %s336
      %s338 = sphi 0, %s336
      %s339 = sphi 0, %s338
      %s353 = sphi 0, %s339
      %s357 = sphi 0, %s357
      %s359 = sphi 0, %s357
      %s360 = sphi 0, %s359
      %s374 = sphi 0, %s360
      %s378 = sphi 0, %s378
      %s380 = sphi 0, %s378
      %s381 = sphi 0, %s380
      %s395 = sphi 0, %s381
      %s399 = sphi 0, %s399
      %s401 = sphi 0, %s399
      %s402 = sphi 0, %s401
      %s416 = sphi 0, %s402
      %s420 = sphi 0, %s420
      %s422 = sphi 0, %s420
      %s423 = sphi 0, %s422
      %s437 = sphi 0, %s423
      %s441 = sphi 0, %s441
      %s443 = sphi 0, %s441
      %s444 = sphi 0, %s443
      %s458 = sphi 0, %s444
      %s464 = sphi 0, %s466
      %s467 = sphi 0, %s464
      %s468 = sphi 0, %s467
      %s484 = sphi 0, %s468
    $region4: #{forward.1} parent=1 // loop_header_branch
      %32 = sbr.rel (%p30) target = $region8
    $region5: #{forward.1} parent=1 // loop_body
      %s34 = ssub.s32 %s29, 1
      %s35 = ssub.s32 %s29, 2
      %s36 = sadd.s32 %s29, 1
      %s37 = ssub.s32 %s29, %s36
      %p38 = scmp.eq.s32.totalorder %s37, 0
      %s40 = sadd.s32 %s39, 1
      %s41 = scalar_select %p38, %s39, %s40
      %p44 = pneg %p38
      %p45 = scmp.eq.s32.totalorder %s29, 1
      %p46 = por %p44, %p45
      %p47 = scmp.ne.s32.totalorder %s39, %s42
      %p48 = scmp.eq.s32.totalorder %s29, 0
      %p49 = por %p47, %p48
      %p50 = scmp.ne.s32.totalorder %s39, %s42
      %p51 = scmp.eq.s32.totalorder %s34, 1
      %p52 = por %p50, %p51
      %p53 = scmp.ne.s32.totalorder %s42, %s43
      %p54 = scmp.eq.s32.totalorder %s34, 0
      %p55 = por %p53, %p54
      %p56 = scmp.ne.s32.totalorder %s42, %s43
      %p57 = scmp.eq.s32.totalorder %s35, 1
      %p58 = por %p56, %p57
      %p60 = scmp.ne.s32.totalorder %s43, %s59
      %p61 = scmp.eq.s32.totalorder %s35, 0
      %p62 = por %p60, %p61
      %s64 = sadd.s32 %s63, 1
      %p67 = scmp.eq.s32.totalorder %s29, 1
      %p68 = scmp.ne.s32.totalorder %s63, %s65
      %p69 = scmp.eq.s32.totalorder %s29, 0
      %p70 = por %p68, %p69
      %p71 = scmp.ne.s32.totalorder %s63, %s65
      %p72 = scmp.eq.s32.totalorder %s34, 1
      %p73 = por %p71, %p72
      %p74 = scmp.ne.s32.totalorder %s65, %s66
      %p75 = scmp.eq.s32.totalorder %s34, 0
      %p76 = por %p74, %p75
      %p77 = scmp.ne.s32.totalorder %s65, %s66
      %p78 = scmp.eq.s32.totalorder %s35, 1
      %p79 = por %p77, %p78
      %p81 = scmp.ne.s32.totalorder %s66, %s80
      %p82 = scmp.eq.s32.totalorder %s35, 0
      %p83 = por %p81, %p82
      %s85 = sadd.s32 %s84, 1
      %p88 = scmp.eq.s32.totalorder %s29, 1
      %p89 = scmp.ne.s32.totalorder %s84, %s86
      %p90 = scmp.eq.s32.totalorder %s29, 0
      %p91 = por %p89, %p90
      %p92 = scmp.ne.s32.totalorder %s84, %s86
      %p93 = scmp.eq.s32.totalorder %s34, 1
      %p94 = por %p92, %p93
      %p95 = scmp.ne.s32.totalorder %s86, %s87
      %p96 = scmp.eq.s32.totalorder %s34, 0
      %p97 = por %p95, %p96
      %p98 = scmp.ne.s32.totalorder %s86, %s87
      %p99 = scmp.eq.s32.totalorder %s35, 1
      %p100 = por %p98, %p99
      %p102 = scmp.ne.s32.totalorder %s87, %s101
      %p103 = scmp.eq.s32.totalorder %s35, 0
      %p104 = por %p102, %p103
      %s106 = sadd.s32 %s105, 1
      %p109 = scmp.eq.s32.totalorder %s29, 1
      %p110 = scmp.ne.s32.totalorder %s105, %s107
      %p111 = scmp.eq.s32.totalorder %s29, 0
      %p112 = por %p110, %p111
      %p113 = scmp.ne.s32.totalorder %s105, %s107
      %p114 = scmp.eq.s32.totalorder %s34, 1
      %p115 = por %p113, %p114
      %p116 = scmp.ne.s32.totalorder %s107, %s108
      %p117 = scmp.eq.s32.totalorder %s34, 0
      %p118 = por %p116, %p117
      %p119 = scmp.ne.s32.totalorder %s107, %s108
      %p120 = scmp.eq.s32.totalorder %s35, 1
      %p121 = por %p119, %p120
      %p123 = scmp.ne.s32.totalorder %s108, %s122
      %p124 = scmp.eq.s32.totalorder %s35, 0
      %p125 = por %p123, %p124
      %s127 = sadd.s32 %s126, 1
      %p130 = scmp.eq.s32.totalorder %s29, 1
      %p131 = scmp.ne.s32.totalorder %s126, %s128
      %p132 = scmp.eq.s32.totalorder %s29, 0
      %p133 = por %p131, %p132
      %p134 = scmp.ne.s32.totalorder %s126, %s128
      %p135 = scmp.eq.s32.totalorder %s34, 1
      %p136 = por %p134, %p135
      %p137 = scmp.ne.s32.totalorder %s128, %s129
      %p138 = scmp.eq.s32.totalorder %s34, 0
      %p139 = por %p137, %p138
      %p140 = scmp.ne.s32.totalorder %s128, %s129
      %p141 = scmp.eq.s32.totalorder %s35, 1
      %p142 = por %p140, %p141
      %p144 = scmp.ne.s32.totalorder %s129, %s143
      %p145 = scmp.eq.s32.totalorder %s35, 0
      %p146 = por %p144, %p145
      %s148 = sadd.s32 %s147, 1
      %p151 = scmp.eq.s32.totalorder %s29, 1
      %p152 = scmp.ne.s32.totalorder %s147, %s149
      %p153 = scmp.eq.s32.totalorder %s29, 0
      %p154 = por %p152, %p153
      %p155 = scmp.ne.s32.totalorder %s147, %s149
      %p156 = scmp.eq.s32.totalorder %s34, 1
      %p157 = por %p155, %p156
      %p158 = scmp.ne.s32.totalorder %s149, %s150
      %p159 = scmp.eq.s32.totalorder %s34, 0
      %p160 = por %p158, %p159
      %p161 = scmp.ne.s32.totalorder %s149, %s150
      %p162 = scmp.eq.s32.totalorder %s35, 1
      %p163 = por %p161, %p162
      %p165 = scmp.ne.s32.totalorder %s150, %s164
      %p166 = scmp.eq.s32.totalorder %s35, 0
      %p167 = por %p165, %p166
      %s169 = sadd.s32 %s168, 1
      %p172 = scmp.eq.s32.totalorder %s29, 1
      %p173 = scmp.ne.s32.totalorder %s168, %s170
      %p174 = scmp.eq.s32.totalorder %s29, 0
      %p175 = por %p173, %p174
      %p176 = scmp.ne.s32.totalorder %s168, %s170
      %p177 = scmp.eq.s32.totalorder %s34, 1
      %p178 = por %p176, %p177
      %p179 = scmp.ne.s32.totalorder %s170, %s171
      %p180 = scmp.eq.s32.totalorder %s34, 0
      %p181 = por %p179, %p180
      %p182 = scmp.ne.s32.totalorder %s170, %s171
      %p183 = scmp.eq.s32.totalorder %s35, 1
      %p184 = por %p182, %p183
      %p186 = scmp.ne.s32.totalorder %s171, %s185
      %p187 = scmp.eq.s32.totalorder %s35, 0
      %p188 = por %p186, %p187
      %s190 = sadd.s32 %s189, 1
      %p193 = scmp.eq.s32.totalorder %s29, 1
      %p194 = scmp.ne.s32.totalorder %s189, %s191
      %p195 = scmp.eq.s32.totalorder %s29, 0
      %p196 = por %p194, %p195
      %p197 = scmp.ne.s32.totalorder %s189, %s191
      %p198 = scmp.eq.s32.totalorder %s34, 1
      %p199 = por %p197, %p198
      %p200 = scmp.ne.s32.totalorder %s191, %s192
      %p201 = scmp.eq.s32.totalorder %s34, 0
      %p202 = por %p200, %p201
      %p203 = scmp.ne.s32.totalorder %s191, %s192
      %p204 = scmp.eq.s32.totalorder %s35, 1
      %p205 = por %p203, %p204
      %p207 = scmp.ne.s32.totalorder %s192, %s206
      %p208 = scmp.eq.s32.totalorder %s35, 0
      %p209 = por %p207, %p208
      %s211 = sadd.s32 %s210, 1
      %p214 = scmp.eq.s32.totalorder %s29, 1
      %p215 = scmp.ne.s32.totalorder %s210, %s212
      %p216 = scmp.eq.s32.totalorder %s29, 0
      %p217 = por %p215, %p216
      %p218 = scmp.ne.s32.totalorder %s210, %s212
      %p219 = scmp.eq.s32.totalorder %s34, 1
      %p220 = por %p218, %p219
      %p221 = scmp.ne.s32.totalorder %s212, %s213
      %p222 = scmp.eq.s32.totalorder %s34, 0
      %p223 = por %p221, %p222
      %p224 = scmp.ne.s32.totalorder %s212, %s213
      %p225 = scmp.eq.s32.totalorder %s35, 1
      %p226 = por %p224, %p225
      %p228 = scmp.ne.s32.totalorder %s213, %s227
      %p229 = scmp.eq.s32.totalorder %s35, 0
      %p230 = por %p228, %p229
      %s232 = sadd.s32 %s231, 1
      %p235 = scmp.eq.s32.totalorder %s29, 1
      %p236 = scmp.ne.s32.totalorder %s231, %s233
      %p237 = scmp.eq.s32.totalorder %s29, 0
      %p238 = por %p236, %p237
      %p239 = scmp.ne.s32.totalorder %s231, %s233
      %p240 = scmp.eq.s32.totalorder %s34, 1
      %p241 = por %p239, %p240
      %p242 = scmp.ne.s32.totalorder %s233, %s234
      %p243 = scmp.eq.s32.totalorder %s34, 0
      %p244 = por %p242, %p243
      %p245 = scmp.ne.s32.totalorder %s233, %s234
      %p246 = scmp.eq.s32.totalorder %s35, 1
      %p247 = por %p245, %p246
      %p249 = scmp.ne.s32.totalorder %s234, %s248
      %p250 = scmp.eq.s32.totalorder %s35, 0
      %p251 = por %p249, %p250
      %s253 = sadd.s32 %s252, 1
      %p256 = scmp.eq.s32.totalorder %s29, 1
      %p257 = scmp.ne.s32.totalorder %s252, %s254
      %p258 = scmp.eq.s32.totalorder %s29, 0
      %p259 = por %p257, %p258
      %p260 = scmp.ne.s32.totalorder %s252, %s254
      %p261 = scmp.eq.s32.totalorder %s34, 1
      %p262 = por %p260, %p261
      %p263 = scmp.ne.s32.totalorder %s254, %s255
      %p264 = scmp.eq.s32.totalorder %s34, 0
      %p265 = por %p263, %p264
      %p266 = scmp.ne.s32.totalorder %s254, %s255
      %p267 = scmp.eq.s32.totalorder %s35, 1
      %p268 = por %p266, %p267
      %p270 = scmp.ne.s32.totalorder %s255, %s269
      %p271 = scmp.eq.s32.totalorder %s35, 0
      %p272 = por %p270, %p271
      %s274 = sadd.s32 %s273, 1
      %p277 = scmp.eq.s32.totalorder %s29, 1
      %p278 = scmp.ne.s32.totalorder %s273, %s275
      %p279 = scmp.eq.s32.totalorder %s29, 0
      %p280 = por %p278, %p279
      %p281 = scmp.ne.s32.totalorder %s273, %s275
      %p282 = scmp.eq.s32.totalorder %s34, 1
      %p283 = por %p281, %p282
      %p284 = scmp.ne.s32.totalorder %s275, %s276
      %p285 = scmp.eq.s32.totalorder %s34, 0
      %p286 = por %p284, %p285
      %p287 = scmp.ne.s32.totalorder %s275, %s276
      %p288 = scmp.eq.s32.totalorder %s35, 1
      %p289 = por %p287, %p288
      %p291 = scmp.ne.s32.totalorder %s276, %s290
      %p292 = scmp.eq.s32.totalorder %s35, 0
      %p293 = por %p291, %p292
      %s295 = sadd.s32 %s294, 1
      %p298 = scmp.eq.s32.totalorder %s29, 1
      %p299 = scmp.ne.s32.totalorder %s294, %s296
      %p300 = scmp.eq.s32.totalorder %s29, 0
      %p301 = por %p299, %p300
      %p302 = scmp.ne.s32.totalorder %s294, %s296
      %p303 = scmp.eq.s32.totalorder %s34, 1
      %p304 = por %p302, %p303
      %p305 = scmp.ne.s32.totalorder %s296, %s297
      %p306 = scmp.eq.s32.totalorder %s34, 0
      %p307 = por %p305, %p306
      %p308 = scmp.ne.s32.totalorder %s296, %s297
      %p309 = scmp.eq.s32.totalorder %s35, 1
      %p310 = por %p308, %p309
      %p312 = scmp.ne.s32.totalorder %s297, %s311
      %p313 = scmp.eq.s32.totalorder %s35, 0
      %p314 = por %p312, %p313
      %s316 = sadd.s32 %s315, 1
      %p319 = scmp.eq.s32.totalorder %s29, 1
      %p320 = scmp.ne.s32.totalorder %s315, %s317
      %p321 = scmp.eq.s32.totalorder %s29, 0
      %p322 = por %p320, %p321
      %p323 = scmp.ne.s32.totalorder %s315, %s317
      %p324 = scmp.eq.s32.totalorder %s34, 1
      %p325 = por %p323, %p324
      %p326 = scmp.ne.s32.totalorder %s317, %s318
      %p327 = scmp.eq.s32.totalorder %s34, 0
      %p328 = por %p326, %p327
      %p329 = scmp.ne.s32.totalorder %s317, %s318
      %p330 = scmp.eq.s32.totalorder %s35, 1
      %p331 = por %p329, %p330
      %p333 = scmp.ne.s32.totalorder %s318, %s332
      %p334 = scmp.eq.s32.totalorder %s35, 0
      %p335 = por %p333, %p334
      %s337 = sadd.s32 %s336, 1
      %p340 = scmp.eq.s32.totalorder %s29, 1
      %p341 = scmp.ne.s32.totalorder %s336, %s338
      %p342 = scmp.eq.s32.totalorder %s29, 0
      %p343 = por %p341, %p342
      %p344 = scmp.ne.s32.totalorder %s336, %s338
      %p345 = scmp.eq.s32.totalorder %s34, 1
      %p346 = por %p344, %p345
      %p347 = scmp.ne.s32.totalorder %s338, %s339
      %p348 = scmp.eq.s32.totalorder %s34, 0
      %p349 = por %p347, %p348
      %p350 = scmp.ne.s32.totalorder %s338, %s339
      %p351 = scmp.eq.s32.totalorder %s35, 1
      %p352 = por %p350, %p351
      %p354 = scmp.ne.s32.totalorder %s339, %s353
      %p355 = scmp.eq.s32.totalorder %s35, 0
      %p356 = por %p354, %p355
      %s358 = sadd.s32 %s357, 1
      %p361 = scmp.eq.s32.totalorder %s29, 1
      %p362 = scmp.ne.s32.totalorder %s357, %s359
      %p363 = scmp.eq.s32.totalorder %s29, 0
      %p364 = por %p362, %p363
      %p365 = scmp.ne.s32.totalorder %s357, %s359
      %p366 = scmp.eq.s32.totalorder %s34, 1
      %p367 = por %p365, %p366
      %p368 = scmp.ne.s32.totalorder %s359, %s360
      %p369 = scmp.eq.s32.totalorder %s34, 0
      %p370 = por %p368, %p369
      %p371 = scmp.ne.s32.totalorder %s359, %s360
      %p372 = scmp.eq.s32.totalorder %s35, 1
      %p373 = por %p371, %p372
      %p375 = scmp.ne.s32.totalorder %s360, %s374
      %p376 = scmp.eq.s32.totalorder %s35, 0
      %p377 = por %p375, %p376
      %s379 = sadd.s32 %s378, 1
      %p382 = scmp.eq.s32.totalorder %s29, 1
      %p383 = scmp.ne.s32.totalorder %s378, %s380
      %p384 = scmp.eq.s32.totalorder %s29, 0
      %p385 = por %p383, %p384
      %p386 = scmp.ne.s32.totalorder %s378, %s380
      %p387 = scmp.eq.s32.totalorder %s34, 1
      %p388 = por %p386, %p387
      %p389 = scmp.ne.s32.totalorder %s380, %s381
      %p390 = scmp.eq.s32.totalorder %s34, 0
      %p391 = por %p389, %p390
      %p392 = scmp.ne.s32.totalorder %s380, %s381
      %p393 = scmp.eq.s32.totalorder %s35, 1
      %p394 = por %p392, %p393
      %p396 = scmp.ne.s32.totalorder %s381, %s395
      %p397 = scmp.eq.s32.totalorder %s35, 0
      %p398 = por %p396, %p397
      %s400 = sadd.s32 %s399, 1
      %p403 = scmp.eq.s32.totalorder %s29, 1
      %p404 = scmp.ne.s32.totalorder %s399, %s401
      %p405 = scmp.eq.s32.totalorder %s29, 0
      %p406 = por %p404, %p405
      %p407 = scmp.ne.s32.totalorder %s399, %s401
      %p408 = scmp.eq.s32.totalorder %s34, 1
      %p409 = por %p407, %p408
      %p410 = scmp.ne.s32.totalorder %s401, %s402
      %p411 = scmp.eq.s32.totalorder %s34, 0
      %p412 = por %p410, %p411
      %p413 = scmp.ne.s32.totalorder %s401, %s402
      %p414 = scmp.eq.s32.totalorder %s35, 1
      %p415 = por %p413, %p414
      %p417 = scmp.ne.s32.totalorder %s402, %s416
      %p418 = scmp.eq.s32.totalorder %s35, 0
      %p419 = por %p417, %p418
      %s421 = sadd.s32 %s420, 1
      %p424 = scmp.eq.s32.totalorder %s29, 1
      %p425 = scmp.ne.s32.totalorder %s420, %s422
      %p426 = scmp.eq.s32.totalorder %s29, 0
      %p427 = por %p425, %p426
      %p428 = scmp.ne.s32.totalorder %s420, %s422
      %p429 = scmp.eq.s32.totalorder %s34, 1
      %p430 = por %p428, %p429
      %p431 = scmp.ne.s32.totalorder %s422, %s423
      %p432 = scmp.eq.s32.totalorder %s34, 0
      %p433 = por %p431, %p432
      %p434 = scmp.ne.s32.totalorder %s422, %s423
      %p435 = scmp.eq.s32.totalorder %s35, 1
      %p436 = por %p434, %p435
      %p438 = scmp.ne.s32.totalorder %s423, %s437
      %p439 = scmp.eq.s32.totalorder %s35, 0
      %p440 = por %p438, %p439
      %s442 = sadd.s32 %s441, 1
      %p445 = scmp.eq.s32.totalorder %s29, 1
      %p446 = scmp.ne.s32.totalorder %s441, %s443
      %p447 = scmp.eq.s32.totalorder %s29, 0
      %p448 = por %p446, %p447
      %p449 = scmp.ne.s32.totalorder %s441, %s443
      %p450 = scmp.eq.s32.totalorder %s34, 1
      %p451 = por %p449, %p450
      %p452 = scmp.ne.s32.totalorder %s443, %s444
      %p453 = scmp.eq.s32.totalorder %s34, 0
      %p454 = por %p452, %p453
      %p455 = scmp.ne.s32.totalorder %s443, %s444
      %p456 = scmp.eq.s32.totalorder %s35, 1
      %p457 = por %p455, %p456
      %p459 = scmp.ne.s32.totalorder %s444, %s458
      %p460 = scmp.eq.s32.totalorder %s35, 0
      %p461 = por %p459, %p460
      %s462 = ssub.s32 %s29, %s36
      %p463 = scmp.eq.s32.totalorder %s462, 0
      %s465 = sadd.s32 %s464, 1
      %s466 = scalar_select %p463, %s464, %s465
      %p469 = pneg %p463
      %p470 = scmp.eq.s32.totalorder %s29, 1
      %p471 = por %p469, %p470
      %p472 = scmp.ne.s32.totalorder %s464, %s467
      %p473 = scmp.eq.s32.totalorder %s29, 0
      %p474 = por %p472, %p473
      %p475 = scmp.ne.s32.totalorder %s464, %s467
      %p476 = scmp.eq.s32.totalorder %s34, 1
      %p477 = por %p475, %p476
      %p478 = scmp.ne.s32.totalorder %s467, %s468
      %p479 = scmp.eq.s32.totalorder %s34, 0
      %p480 = por %p478, %p479
      %p481 = scmp.ne.s32.totalorder %s467, %s468
      %p482 = scmp.eq.s32.totalorder %s35, 1
      %p483 = por %p481, %p482
      %p485 = scmp.ne.s32.totalorder %s468, %s484
      %p486 = scmp.eq.s32.totalorder %s35, 0
      %p487 = por %p485, %p486
      %p488 = scmp.le.s32.totalorder 1, %s29
      %p489 = scmp.lt.s32.totalorder %s29, 3
      %p490 = pnand %p488, %p489
      %p491 = pneg %p490
      // Predicated region
      $region9: #{forward.1} parent=5 // pred_check
        _
      $region10: #{forward.1} parent=5 // pred_check_branch
        %493 = sbr.rel (%p490) target = $region12
      $region11: #{forward.1} parent=5 // pred_region
        %s494 = ssub.s32 %s29, 1
        // Predicated region
        $region13: #{forward.1} parent=11 // pred_check
          %p495 = pneg %p76
        $region14: #{forward.1} parent=11 // pred_check_branch
          %497 = sbr.rel (%p495) target = $region16
        $region15: #{forward.1} parent=11 // pred_region
          _
        $region16: #{forward.1} parent=11 // pred_fallthru
          _
        // Predicated region
        $region17: #{forward.1} parent=11 // pred_check
          %p498 = pneg %p97
        $region18: #{forward.1} parent=11 // pred_check_branch
          %500 = sbr.rel (%p498) target = $region20
        $region19: #{forward.1} parent=11 // pred_region
          _
        $region20: #{forward.1} parent=11 // pred_fallthru
          _
        // Predicated region
        $region21: #{forward.1} parent=11 // pred_check
          %p501 = pneg %p118
        $region22: #{forward.1} parent=11 // pred_check_branch
          %503 = sbr.rel (%p501) target = $region24
        $region23: #{forward.1} parent=11 // pred_region
          _
        $region24: #{forward.1} parent=11 // pred_fallthru
          _
        // Predicated region
        $region25: #{forward.1} parent=11 // pred_check
          %p504 = pneg %p139
        $region26: #{forward.1} parent=11 // pred_check_branch
          %506 = sbr.rel (%p504) target = $region28
        $region27: #{forward.1} parent=11 // pred_region
          _
        $region28: #{forward.1} parent=11 // pred_fallthru
          _
        // Predicated region
        $region29: #{forward.1} parent=11 // pred_check
          %p507 = pneg %p160
        $region30: #{forward.1} parent=11 // pred_check_branch
          %509 = sbr.rel (%p507) target = $region32
        $region31: #{forward.1} parent=11 // pred_region
          _
        $region32: #{forward.1} parent=11 // pred_fallthru
          _
        // Predicated region
        $region33: #{forward.1} parent=11 // pred_check
          %p510 = pneg %p181
        $region34: #{forward.1} parent=11 // pred_check_branch
          %512 = sbr.rel (%p510) target = $region36
        $region35: #{forward.1} parent=11 // pred_region
          _
        $region36: #{forward.1} parent=11 // pred_fallthru
          _
        // Predicated region
        $region37: #{forward.1} parent=11 // pred_check
          %p513 = pneg %p202
        $region38: #{forward.1} parent=11 // pred_check_branch
          %515 = sbr.rel (%p513) target = $region40
        $region39: #{forward.1} parent=11 // pred_region
          _
        $region40: #{forward.1} parent=11 // pred_fallthru
          _
        // Predicated region
        $region41: #{forward.1} parent=11 // pred_check
          %p516 = pneg %p223
        $region42: #{forward.1} parent=11 // pred_check_branch
          %518 = sbr.rel (%p516) target = $region44
        $region43: #{forward.1} parent=11 // pred_region
          _
        $region44: #{forward.1} parent=11 // pred_fallthru
          _
        // Predicated region
        $region45: #{forward.1} parent=11 // pred_check
          %p519 = pneg %p244
        $region46: #{forward.1} parent=11 // pred_check_branch
          %521 = sbr.rel (%p519) target = $region48
        $region47: #{forward.1} parent=11 // pred_region
          _
        $region48: #{forward.1} parent=11 // pred_fallthru
          _
        // Predicated region
        $region49: #{forward.1} parent=11 // pred_check
          %p522 = pneg %p265
        $region50: #{forward.1} parent=11 // pred_check_branch
          %524 = sbr.rel (%p522) target = $region52
        $region51: #{forward.1} parent=11 // pred_region
          _
        $region52: #{forward.1} parent=11 // pred_fallthru
          _
        // Predicated region
        $region53: #{forward.1} parent=11 // pred_check
          %p525 = pneg %p286
        $region54: #{forward.1} parent=11 // pred_check_branch
          %527 = sbr.rel (%p525) target = $region56
        $region55: #{forward.1} parent=11 // pred_region
          _
        $region56: #{forward.1} parent=11 // pred_fallthru
          _
        // Predicated region
        $region57: #{forward.1} parent=11 // pred_check
          %p528 = pneg %p307
        $region58: #{forward.1} parent=11 // pred_check_branch
          %530 = sbr.rel (%p528) target = $region60
        $region59: #{forward.1} parent=11 // pred_region
          _
        $region60: #{forward.1} parent=11 // pred_fallthru
          _
        // Predicated region
        $region61: #{forward.1} parent=11 // pred_check
          %p531 = pneg %p328
        $region62: #{forward.1} parent=11 // pred_check_branch
          %533 = sbr.rel (%p531) target = $region64
        $region63: #{forward.1} parent=11 // pred_region
          _
        $region64: #{forward.1} parent=11 // pred_fallthru
          _
        // Predicated region
        $region65: #{forward.1} parent=11 // pred_check
          %p534 = pneg %p349
        $region66: #{forward.1} parent=11 // pred_check_branch
          %536 = sbr.rel (%p534) target = $region68
        $region67: #{forward.1} parent=11 // pred_region
          _
        $region68: #{forward.1} parent=11 // pred_fallthru
          _
        // Predicated region
        $region69: #{forward.1} parent=11 // pred_check
          %p537 = pneg %p370
        $region70: #{forward.1} parent=11 // pred_check_branch
          %539 = sbr.rel (%p537) target = $region72
        $region71: #{forward.1} parent=11 // pred_region
          _
        $region72: #{forward.1} parent=11 // pred_fallthru
          _
        // Predicated region
        $region73: #{forward.1} parent=11 // pred_check
          %p540 = pneg %p391
        $region74: #{forward.1} parent=11 // pred_check_branch
          %542 = sbr.rel (%p540) target = $region76
        $region75: #{forward.1} parent=11 // pred_region
          _
        $region76: #{forward.1} parent=11 // pred_fallthru
          _
        // Predicated region
        $region77: #{forward.1} parent=11 // pred_check
          %p543 = pneg %p412
        $region78: #{forward.1} parent=11 // pred_check_branch
          %545 = sbr.rel (%p543) target = $region80
        $region79: #{forward.1} parent=11 // pred_region
          _
        $region80: #{forward.1} parent=11 // pred_fallthru
          _
        // Predicated region
        $region81: #{forward.1} parent=11 // pred_check
          %p546 = pneg %p433
        $region82: #{forward.1} parent=11 // pred_check_branch
          %548 = sbr.rel (%p546) target = $region84
        $region83: #{forward.1} parent=11 // pred_region
          _
        $region84: #{forward.1} parent=11 // pred_fallthru
          _
        // Predicated region
        $region85: #{forward.1} parent=11 // pred_check
          %p549 = pneg %p454
        $region86: #{forward.1} parent=11 // pred_check_branch
          %551 = sbr.rel (%p549) target = $region88
        $region87: #{forward.1} parent=11 // pred_region
          _
        $region88: #{forward.1} parent=11 // pred_fallthru
          _
      $region12: #{forward.1} parent=5 // pred_fallthru
        _
      %p552 = scmp.lt.s32.totalorder %s29, 2
      // Predicated region
      $region89: #{forward.1} parent=5 // pred_check
        %p553 = pneg %p552
      $region90: #{forward.1} parent=5 // pred_check_branch
        %555 = sbr.rel (%p553) target = $region92
      $region91: #{forward.1} parent=5 // pred_region
        // Predicated region
        $region93: #{forward.1} parent=91 // pred_check
          %p556 = pneg %p49
        $region94: #{forward.1} parent=91 // pred_check_branch
          %558 = sbr.rel (%p556) target = $region96
        $region95: #{forward.1} parent=91 // pred_region
          %s559 = smul.u32 28, %s29
          %p560 = scmp.lt.s32.totalorder %s559, 55
          %s561 = scalar_select %p560, %s559, 55
          %s562 = smul.addr %s561, 4
          %s563 = scalar_lea.vmem %s0, %s562
          %s564 = smul.u32 28, %s29
        $region96: #{forward.1} parent=91 // pred_fallthru
          _
      $region92: #{forward.1} parent=5 // pred_fallthru
        _
      %p565 = scmp.le.s32.totalorder 1, %s29
      %p566 = scmp.lt.s32.totalorder %s29, 3
      %p567 = pnand %p565, %p566
      %p568 = pneg %p567
      // Predicated region
      $region97: #{forward.1} parent=5 // pred_check
        _
      $region98: #{forward.1} parent=5 // pred_check_branch
        %570 = sbr.rel (%p567) target = $region100
      $region99: #{forward.1} parent=5 // pred_region
        %s571 = ssub.s32 %s29, 1
        %s572 = smul.u32 28, %s34
        %p573 = scmp.lt.s32.totalorder %s572, 55
        %s574 = scalar_select %p573, %s572, 55
        %s575 = smul.addr %s574, 4
        %s576 = scalar_lea.vmem %s0, %s575
        %p577 = pneg %p55
        %p578 = pneg %p52
        %p579 = pneg %p76
        %p580 = pneg %p73
        %p581 = pneg %p97
        %p582 = pneg %p94
        %p583 = pneg %p118
        %p584 = pneg %p115
        %p585 = pneg %p139
        %p586 = pneg %p136
        %p587 = pneg %p160
        %p588 = pneg %p157
        %p589 = pneg %p181
        %p590 = pneg %p178
        %p591 = pneg %p202
        %p592 = pneg %p199
        %p593 = pneg %p223
        %p594 = pneg %p220
        %p595 = pneg %p244
        %p596 = pneg %p241
        %p597 = pneg %p265
        %p598 = pneg %p262
        %p599 = pneg %p286
        %p600 = pneg %p283
        %p601 = pneg %p307
        %p602 = pneg %p304
        %p603 = pneg %p328
        %p604 = pneg %p325
        %p605 = pneg %p349
        %p606 = pneg %p346
        %p607 = pneg %p370
        %p608 = pneg %p367
        %p609 = pneg %p391
        %p610 = pneg %p388
        %p611 = pneg %p412
        %p612 = pneg %p409
        %p613 = pneg %p433
        %p614 = pneg %p430
        %p615 = pneg %p454
        %p616 = pneg %p451
        %p617 = pneg %p480
        %p618 = pneg %p477
        %s619 = sand.u32 %s467, 1
        %s620 = scalar_lea.sflag [#allocation3], %s619
        %s621 = sand.u32 %s467, 1
        %s622 = smul.addr %s621, 224
        %s623 = scalar_lea.vmem [#allocation2], %s622
        %s624 = smul.u32 28, %s34
        %p625 = scmp.lt.s32.totalorder %s624, 55
        %s626 = scalar_select %p625, %s624, 55
        %s627 = smul.addr %s626, 4
        %s628 = scalar_lea.vmem %s0, %s627
        %s629 = smul.u32 28, %s34
        %s630 = smul.u32 28, %s34
        %v632 = vld [vmem:[%s628] sm:$0xf]
        %v633 = vld [vmem:[%s628 + $0x4] sm:$0xf]
        %v634 = vld [vmem:[%s628 + $0x8] sm:$0xf]
        %v635 = vld [vmem:[%s628 + $0xc] sm:$0xf]
        %v636 = vld [vmem:[%s628 + $0x10] sm:$0xf]
        %v637 = vld [vmem:[%s628 + $0x14] sm:$0xf]
        %v638 = vld [vmem:[%s628 + $0x18] sm:$0xf]
        %v639 = vld [vmem:[%s628 + $0x1c] sm:$0xf]
        %v640 = vld [vmem:[%s628 + $0x20] sm:$0xf]
        %v641 = vld [vmem:[%s628 + $0x24] sm:$0xf]
        %v642 = vld [vmem:[%s628 + $0x28] sm:$0xf]
        %v643 = vld [vmem:[%s628 + $0x2c] sm:$0xf]
        %v644 = vld [vmem:[%s628 + $0x30] sm:$0xf]
        %v645 = vld [vmem:[%s628 + $0x34] sm:$0xf]
        %v646 = vld [vmem:[%s628 + $0x38] sm:$0xf]
        %v647 = vld [vmem:[%s628 + $0x3c] sm:$0xf]
        %v648 = vld [vmem:[%s628 + $0x40] sm:$0xf]
        %v649 = vld [vmem:[%s628 + $0x44] sm:$0xf]
        %v650 = vld [vmem:[%s628 + $0x48] sm:$0xf]
        %v651 = vld [vmem:[%s628 + $0x4c] sm:$0xf]
        %v652 = vld [vmem:[%s628 + $0x50] sm:$0xf]
        %v653 = vld [vmem:[%s628 + $0x54] sm:$0xf]
        %v654 = vld [vmem:[%s628 + $0x58] sm:$0xf]
        %v655 = vld [vmem:[%s628 + $0x5c] sm:$0xf]
        %v656 = vld [vmem:[%s628 + $0x60] sm:$0xf]
        %v657 = vld [vmem:[%s628 + $0x64] sm:$0xf]
        %v658 = vld [vmem:[%s628 + $0x68] sm:$0xf]
        %v659 = vld [vmem:[%s628 + $0x6c] sm:$0xf]
        %v660 = vld [vmem:[%s1] sm:$0xff]
        %v661 = vld [vmem:[%s1 + $0x8] sm:$0xff]
        %v662 = vld [vmem:[%s1 + $0x10] sm:$0xff]
        %v663 = vld [vmem:[%s1 + $0x18] sm:$0xff]
        %v664 = vld [vmem:[%s1 + $0x20] sm:$0xff]
        %v665 = vld [vmem:[%s1 + $0x28] sm:$0xff]
        %v666 = vld [vmem:[%s1 + $0x30] sm:$0xff]
        %v667 = vld [vmem:[%s1 + $0x38] sm:$0xff]
        %v668 = vld [vmem:[%s1 + $0x40] sm:$0xff]
        %v669 = vld [vmem:[%s1 + $0x48] sm:$0xff]
        %v670 = vld [vmem:[%s1 + $0x50] sm:$0xff]
        %v671 = vld [vmem:[%s1 + $0x58] sm:$0xff]
        %v672 = vld [vmem:[%s1 + $0x60] sm:$0xff]
        %v673 = vld [vmem:[%s1 + $0x68] sm:$0xff]
        %v674 = vld [vmem:[%s1 + $0x70] sm:$0xff]
        %v675 = vld [vmem:[%s1 + $0x78] sm:$0xff]
        %v676 = vld [vmem:[%s1 + $0x80] sm:$0xff]
        %v677 = vld [vmem:[%s1 + $0x88] sm:$0xff]
        %v678 = vld [vmem:[%s1 + $0x90] sm:$0xff]
        %v679 = vld [vmem:[%s1 + $0x98] sm:$0xff]
        %v680 = vld [vmem:[%s1 + $0xa0] sm:$0xff]
        %v681 = vld [vmem:[%s1 + $0xa8] sm:$0xff]
        %v682 = vld [vmem:[%s1 + $0xb0] sm:$0xff]
        %v683 = vld [vmem:[%s1 + $0xb8] sm:$0xff]
        %v684 = vld [vmem:[%s1 + $0xc0] sm:$0xff]
        %v685 = vld [vmem:[%s1 + $0xc8] sm:$0xff]
        %v686 = vld [vmem:[%s1 + $0xd0] sm:$0xff]
        %v687 = vld [vmem:[%s1 + $0xd8] sm:$0xff]
        %v688 = vld [vmem:[%s1 + $0xe0] sm:$0xff]
        %v689 = vld [vmem:[%s1 + $0xe8] sm:$0xff]
        %v720 = vunpack.c.l.b16 %v660
        %v721 = vunpack.c.h.b16 %v660
        %v722 = vunpack.c.l.b16 %v661
        %v723 = vunpack.c.h.b16 %v661
        %v724 = vunpack.c.l.b16 %v662
        %v725 = vunpack.c.h.b16 %v662
        %v726 = vunpack.c.l.b16 %v663
        %v727 = vunpack.c.h.b16 %v663
        %v728 = vunpack.c.l.b16 %v664
        %v729 = vunpack.c.h.b16 %v664
        %v730 = vunpack.c.l.b16 %v665
        %v731 = vunpack.c.h.b16 %v665
        %v732 = vunpack.c.l.b16 %v666
        %v733 = vunpack.c.h.b16 %v666
        %v734 = vunpack.c.l.b16 %v667
        %v735 = vunpack.c.h.b16 %v667
        %v736 = vunpack.c.l.b16 %v668
        %v737 = vunpack.c.h.b16 %v668
        %v738 = vunpack.c.l.b16 %v669
        %v739 = vunpack.c.h.b16 %v669
        %v740 = vunpack.c.l.b16 %v670
        %v741 = vunpack.c.h.b16 %v670
        %v742 = vunpack.c.l.b16 %v671
        %v743 = vunpack.c.h.b16 %v671
        %v744 = vunpack.c.l.b16 %v672
        %v745 = vunpack.c.h.b16 %v672
        %v746 = vunpack.c.l.b16 %v673
        %v747 = vunpack.c.h.b16 %v673
        %v748 = vunpack.c.l.b16 %v674
        %v749 = vunpack.c.h.b16 %v674
        %v750 = vunpack.c.l.b16 %v675
        %v751 = vunpack.c.h.b16 %v675
        %v752 = vunpack.c.l.b16 %v676
        %v753 = vunpack.c.h.b16 %v676
        %v754 = vunpack.c.l.b16 %v677
        %v755 = vunpack.c.h.b16 %v677
        %v756 = vunpack.c.l.b16 %v678
        %v757 = vunpack.c.h.b16 %v678
        %v758 = vunpack.c.l.b16 %v679
        %v759 = vunpack.c.h.b16 %v679
        %v760 = vunpack.c.l.b16 %v680
        %v761 = vunpack.c.h.b16 %v680
        %v762 = vunpack.c.l.b16 %v681
        %v763 = vunpack.c.h.b16 %v681
        %v764 = vunpack.c.l.b16 %v682
        %v765 = vunpack.c.h.b16 %v682
        %v766 = vunpack.c.l.b16 %v683
        %v767 = vunpack.c.h.b16 %v683
        %v768 = vunpack.c.l.b16 %v684
        %v769 = vunpack.c.h.b16 %v684
        %v770 = vunpack.c.l.b16 %v685
        %v771 = vunpack.c.h.b16 %v685
        %v772 = vunpack.c.l.b16 %v686
        %v773 = vunpack.c.h.b16 %v686
        %v774 = vunpack.c.l.b16 %v687
        %v775 = vunpack.c.h.b16 %v687
        %v776 = vunpack.c.l.b16 %v688
        %v777 = vunpack.c.h.b16 %v688
        %v778 = vunpack.c.l.b16 %v689
        %v779 = vunpack.c.h.b16 %v689
        %v780 = vpack.c.b16 %v722, %v720
        %v781 = vpack.c.b16 %v723, %v721
        %v782 = vpack.c.b16 %v726, %v724
        %v783 = vpack.c.b16 %v727, %v725
        %v784 = vpack.c.b16 %v730, %v728
        %v785 = vpack.c.b16 %v731, %v729
        %v786 = vpack.c.b16 %v734, %v732
        %v787 = vpack.c.b16 %v735, %v733
        %v788 = vpack.c.b16 %v738, %v736
        %v789 = vpack.c.b16 %v739, %v737
        %v790 = vpack.c.b16 %v742, %v740
        %v791 = vpack.c.b16 %v743, %v741
        %v792 = vpack.c.b16 %v746, %v744
        %v793 = vpack.c.b16 %v747, %v745
        %v794 = vpack.c.b16 %v750, %v748
        %v795 = vpack.c.b16 %v751, %v749
        %v796 = vpack.c.b16 %v754, %v752
        %v797 = vpack.c.b16 %v755, %v753
        %v798 = vpack.c.b16 %v758, %v756
        %v799 = vpack.c.b16 %v759, %v757
        %v800 = vpack.c.b16 %v762, %v760
        %v801 = vpack.c.b16 %v763, %v761
        %v802 = vpack.c.b16 %v766, %v764
        %v803 = vpack.c.b16 %v767, %v765
        %v804 = vpack.c.b16 %v770, %v768
        %v805 = vpack.c.b16 %v771, %v769
        %v806 = vpack.c.b16 %v774, %v772
        %v807 = vpack.c.b16 %v775, %v773
        %v808 = vpack.c.b16 %v778, %v776
        %v809 = vpack.c.b16 %v779, %v777
        %v853 = vunpack.c.l.b16 %v632
        %v854 = vunpack.c.l.b16 %v633
        %v855 = vunpack.c.l.b16 %v634
        %v856 = vunpack.c.l.b16 %v635
        %v857 = vunpack.c.l.b16 %v636
        %v858 = vunpack.c.l.b16 %v637
        %v859 = vunpack.c.l.b16 %v638
        %v860 = vunpack.c.l.b16 %v639
        %v861 = vunpack.c.l.b16 %v640
        %v862 = vunpack.c.l.b16 %v641
        %v863 = vunpack.c.l.b16 %v642
        %v864 = vunpack.c.l.b16 %v643
        %v865 = vunpack.c.l.b16 %v644
        %v866 = vunpack.c.l.b16 %v645
        %v867 = vunpack.c.l.b16 %v646
        %v868 = vunpack.c.l.b16 %v647
        %v869 = vunpack.c.l.b16 %v648
        %v870 = vunpack.c.l.b16 %v649
        %v871 = vunpack.c.l.b16 %v650
        %v872 = vunpack.c.l.b16 %v651
        %v873 = vunpack.c.l.b16 %v652
        %v874 = vunpack.c.l.b16 %v653
        %v875 = vunpack.c.l.b16 %v654
        %v876 = vunpack.c.l.b16 %v655
        %v877 = vunpack.c.l.b16 %v656
        %v878 = vunpack.c.l.b16 %v657
        %v879 = vunpack.c.l.b16 %v658
        %v880 = vunpack.c.l.b16 %v659
        %v881 = vpack.c.b16 %v854, %v853
        %v882 = vpack.c.b16 %v856, %v855
        %v883 = vpack.c.b16 %v858, %v857
        %v884 = vpack.c.b16 %v860, %v859
        %v885 = vpack.c.b16 %v862, %v861
        %v886 = vpack.c.b16 %v864, %v863
        %v887 = vpack.c.b16 %v866, %v865
        %v888 = vpack.c.b16 %v868, %v867
        %v889 = vpack.c.b16 %v870, %v869
        %v890 = vpack.c.b16 %v872, %v871
        %v891 = vpack.c.b16 %v874, %v873
        %v892 = vpack.c.b16 %v876, %v875
        %v893 = vpack.c.b16 %v878, %v877
        %v894 = vpack.c.b16 %v880, %v879
        %vm909 = vcmask 785408
        %v911 = vsel %vm909, %v781, 0
        %v914 = vsel %vm909, %v783, 0
        %v917 = vsel %vm909, %v785, 0
        %v920 = vsel %vm909, %v787, 0
        %v923 = vsel %vm909, %v789, 0
        %v926 = vsel %vm909, %v791, 0
        %v929 = vsel %vm909, %v793, 0
        %v932 = vsel %vm909, %v795, 0
        %v935 = vsel %vm909, %v797, 0
        %v938 = vsel %vm909, %v799, 0
        %v941 = vsel %vm909, %v801, 0
        %v944 = vsel %vm909, %v803, 0
        %v947 = vsel %vm909, %v805, 0
        %v950 = vsel %vm909, %v807, 0
        %v953 = vsel %vm909, %v809, 0
        %955 = vmatprep.subr.bf16.mxu0 0
        %956 = vmatpush1.bf16.msra.mxu0 %v881
        %957 = vmatprep.subr.bf16.mxu0 0
        %958 = vmatpush1.bf16.msra.mxu0 %v882
        %959 = vmatprep.subr.bf16.mxu0 0
        %960 = vmatpush1.bf16.msra.mxu0 %v883
        %961 = vmatprep.subr.bf16.mxu0 0
        %962 = vmatpush1.bf16.msra.mxu0 %v884
        %963 = vmatprep.subr.bf16.mxu0 0
        %964 = vmatpush1.bf16.msra.mxu0 %v885
        %965 = vmatprep.subr.bf16.mxu0 0
        %966 = vmatpush1.bf16.msra.mxu0 %v886
        %967 = vmatprep.subr.bf16.mxu0 0
        %968 = vmatpush1.bf16.msra.mxu0 %v887
        %969 = vmatprep.subr.bf16.mxu0 0
        %970 = vmatpush1.bf16.msra.mxu0 %v888
        %971 = vmatprep.subr.bf16.mxu0 0
        %972 = vmatpush1.bf16.msra.mxu0 %v889
        %973 = vmatprep.subr.bf16.mxu0 0
        %974 = vmatpush1.bf16.msra.mxu0 %v890
        %975 = vmatprep.subr.bf16.mxu0 0
        %976 = vmatpush1.bf16.msra.mxu0 %v891
        %977 = vmatprep.subr.bf16.mxu0 0
        %978 = vmatpush1.bf16.msra.mxu0 %v892
        %979 = vmatprep.subr.bf16.mxu0 0
        %980 = vmatpush1.bf16.msra.mxu0 %v893
        %981 = vmatprep.subr.bf16.mxu0 0
        %982 = vmatpush1.bf16.msra.mxu0 %v894
        %983 = vmatprep.subr.bf16.mxu0 0
        %984 = vmatpush1.bf16.msra.mxu0 0
        %985 = vmatprep.subr.bf16.mxu0 0
        %986 = vmatpush1.bf16.msra.mxu0 0
        %987 = vmatprep.mubr.bf16.mxu0 %v911
        %988 = vmatmul.mubr.bf16.gmra.mrb[0].mxu0 %v780
        %v989 = vpop.f32.mrb[0].mxu0
        %v990 = vadd.f32 0.0, %v989
        %v991 = vpop.f32.mrb[0].mxu0
        %v992 = vpop.f32.mrb[0].mxu0
        %v993 = vadd.f32 0.0, %v992
        %v994 = vpop.f32.mrb[0].mxu0
        %995 = vmatprep.mubr.bf16.mxu0 %v914
        %996 = vmatmul.mubr.bf16.gmra.mrb[0].mxu0 %v782
        %v997 = vpop.f32.mrb[0].mxu0
        %v998 = vadd.f32 0.0, %v997
        %v999 = vpop.f32.mrb[0].mxu0
        %v1000 = vpop.f32.mrb[0].mxu0
        %v1001 = vadd.f32 0.0, %v1000
        %v1002 = vpop.f32.mrb[0].mxu0
        %1003 = vmatprep.mubr.bf16.mxu0 %v917
        %1004 = vmatmul.mubr.bf16.gmra.mrb[0].mxu0 %v784
        %v1005 = vpop.f32.mrb[0].mxu0
        %v1006 = vadd.f32 0.0, %v1005
        %v1007 = vpop.f32.mrb[0].mxu0
        %v1008 = vpop.f32.mrb[0].mxu0
        %v1009 = vadd.f32 0.0, %v1008
        %v1010 = vpop.f32.mrb[0].mxu0
        %1011 = vmatprep.mubr.bf16.mxu0 %v920
        %1012 = vmatmul.mubr.bf16.gmra.mrb[0].mxu0 %v786
        %v1013 = vpop.f32.mrb[0].mxu0
        %v1014 = vadd.f32 0.0, %v1013
        %v1015 = vpop.f32.mrb[0].mxu0
        %v1016 = vpop.f32.mrb[0].mxu0
        %v1017 = vadd.f32 0.0, %v1016
        %v1018 = vpop.f32.mrb[0].mxu0
        %1019 = vmatprep.mubr.bf16.mxu0 %v923
        %1020 = vmatmul.mubr.bf16.gmra.mrb[0].mxu0 %v788
        %v1021 = vpop.f32.mrb[0].mxu0
        %v1022 = vadd.f32 0.0, %v1021
        %v1023 = vpop.f32.mrb[0].mxu0
        %v1024 = vpop.f32.mrb[0].mxu0
        %v1025 = vadd.f32 0.0, %v1024
        %v1026 = vpop.f32.mrb[0].mxu0
        %1027 = vmatprep.mubr.bf16.mxu0 %v926
        %1028 = vmatmul.mubr.bf16.gmra.mrb[0].mxu0 %v790
        %v1029 = vpop.f32.mrb[0].mxu0
        %v1030 = vadd.f32 0.0, %v1029
        %v1031 = vpop.f32.mrb[0].mxu0
        %v1032 = vpop.f32.mrb[0].mxu0
        %v1033 = vadd.f32 0.0, %v1032
        %v1034 = vpop.f32.mrb[0].mxu0
        %1035 = vmatprep.mubr.bf16.mxu0 %v929
        %1036 = vmatmul.mubr.bf16.gmra.mrb[0].mxu0 %v792
        %v1037 = vpop.f32.mrb[0].mxu0
        %v1038 = vadd.f32 0.0, %v1037
        %v1039 = vpop.f32.mrb[0].mxu0
        %v1040 = vpop.f32.mrb[0].mxu0
        %v1041 = vadd.f32 0.0, %v1040
        %v1042 = vpop.f32.mrb[0].mxu0
        %1043 = vmatprep.mubr.bf16.mxu0 %v932
        %1044 = vmatmul.mubr.bf16.gmra.mrb[0].mxu0 %v794
        %v1045 = vpop.f32.mrb[0].mxu0
        %v1046 = vadd.f32 0.0, %v1045
        %v1047 = vpop.f32.mrb[0].mxu0
        %v1048 = vpop.f32.mrb[0].mxu0
        %v1049 = vadd.f32 0.0, %v1048
        %v1050 = vpop.f32.mrb[0].mxu0
        %1051 = vmatprep.mubr.bf16.mxu0 %v935
        %1052 = vmatmul.mubr.bf16.gmra.mrb[0].mxu0 %v796
        %v1053 = vpop.f32.mrb[0].mxu0
        %v1054 = vadd.f32 0.0, %v1053
        %v1055 = vpop.f32.mrb[0].mxu0
        %v1056 = vpop.f32.mrb[0].mxu0
        %v1057 = vadd.f32 0.0, %v1056
        %v1058 = vpop.f32.mrb[0].mxu0
        %1059 = vmatprep.mubr.bf16.mxu0 %v938
        %1060 = vmatmul.mubr.bf16.gmra.mrb[0].mxu0 %v798
        %v1061 = vpop.f32.mrb[0].mxu0
        %v1062 = vadd.f32 0.0, %v1061
        %v1063 = vpop.f32.mrb[0].mxu0
        %v1064 = vpop.f32.mrb[0].mxu0
        %v1065 = vadd.f32 0.0, %v1064
        %v1066 = vpop.f32.mrb[0].mxu0
        %1067 = vmatprep.mubr.bf16.mxu0 %v941
        %1068 = vmatmul.mubr.bf16.gmra.mrb[0].mxu0 %v800
        %v1069 = vpop.f32.mrb[0].mxu0
        %v1070 = vadd.f32 0.0, %v1069
        %v1071 = vpop.f32.mrb[0].mxu0
        %v1072 = vpop.f32.mrb[0].mxu0
        %v1073 = vadd.f32 0.0, %v1072
        %v1074 = vpop.f32.mrb[0].mxu0
        %1075 = vmatprep.mubr.bf16.mxu0 %v944
        %1076 = vmatmul.mubr.bf16.gmra.mrb[0].mxu0 %v802
        %v1077 = vpop.f32.mrb[0].mxu0
        %v1078 = vadd.f32 0.0, %v1077
        %v1079 = vpop.f32.mrb[0].mxu0
        %v1080 = vpop.f32.mrb[0].mxu0
        %v1081 = vadd.f32 0.0, %v1080
        %v1082 = vpop.f32.mrb[0].mxu0
        %1083 = vmatprep.mubr.bf16.mxu0 %v947
        %1084 = vmatmul.mubr.bf16.gmra.mrb[0].mxu0 %v804
        %v1085 = vpop.f32.mrb[0].mxu0
        %v1086 = vadd.f32 0.0, %v1085
        %v1087 = vpop.f32.mrb[0].mxu0
        %v1088 = vpop.f32.mrb[0].mxu0
        %v1089 = vadd.f32 0.0, %v1088
        %v1090 = vpop.f32.mrb[0].mxu0
        %1091 = vmatprep.mubr.bf16.mxu0 %v950
        %1092 = vmatmul.mubr.bf16.gmra.mrb[0].mxu0 %v806
        %v1093 = vpop.f32.mrb[0].mxu0
        %v1094 = vadd.f32 0.0, %v1093
        %v1095 = vpop.f32.mrb[0].mxu0
        %v1096 = vpop.f32.mrb[0].mxu0
        %v1097 = vadd.f32 0.0, %v1096
        %v1098 = vpop.f32.mrb[0].mxu0
        %1099 = vmatprep.mubr.bf16.mxu0 %v953
        %1100 = vmatmul.mubr.bf16.gmra.mrb[0].mxu0 %v808
        %v1101 = vpop.f32.mrb[0].mxu0
        %v1102 = vadd.f32 0.0, %v1101
        %v1103 = vpop.f32.mrb[0].mxu0
        %v1104 = vpop.f32.mrb[0].mxu0
        %v1105 = vadd.f32 0.0, %v1104
        %v1106 = vpop.f32.mrb[0].mxu0
        %1107 = vdwg.mxu0
        %v1108 = vpack.c.bf16 %v993, %v990
        %v1109 = vpack.c.bf16 %v1001, %v998
        %v1110 = vpack.c.bf16 %v1009, %v1006
        %v1111 = vpack.c.bf16 %v1017, %v1014
        %v1112 = vpack.c.bf16 %v1025, %v1022
        %v1113 = vld [vmem:[%s2] sm:$0xff]
        %v1114 = vld [vmem:[%s2 + $0x8] sm:$0xff]
        %v1115 = vld [vmem:[%s2 + $0x10] sm:$0xff]
        %v1116 = vld [vmem:[%s2 + $0x18] sm:$0x33]
        %v1117 = vpack.c.bf16 %v1033, %v1030
        %v1118 = vpack.c.bf16 %v1041, %v1038
        %v1119 = vpack.c.bf16 %v1049, %v1046
        %v1120 = vpack.c.bf16 %v1057, %v1054
        %v1121 = vpack.c.bf16 %v1065, %v1062
        %s1122 = scalar_lea.vmem %s2, 32
        %v1123 = vld [vmem:[%s1122] sm:$0xff]
        %v1124 = vld [vmem:[%s1122 + $0x8] sm:$0xff]
        %v1125 = vld [vmem:[%s1122 + $0x10] sm:$0xff]
        %v1126 = vld [vmem:[%s1122 + $0x18] sm:$0x33]
        %v1131 = vunpack.c.l.b16 %v1123
        %v1132 = vunpack.c.h.b16 %v1123
        %v1133 = vunpack.c.l.b16 %v1124
        %v1134 = vunpack.c.h.b16 %v1124
        %v1135 = vunpack.c.l.b16 %v1125
        %v1136 = vunpack.c.h.b16 %v1125
        %v1137 = vunpack.c.l.b16 %v1126
        %v1138 = vunpack.c.h.b16 %v1126
        %v1139 = vpack.c.b16 %v1133, %v1131
        %v1140 = vpack.c.b16 %v1134, %v1132
        %v1141 = vpack.c.b16 %v1137, %v1135
        %v1142 = vpack.c.b16 %v1138, %v1136
        %vm1145 = vcmask 228352
        %v1147 = vsel %vm1145, %v1117, 0
        %v1150 = vsel %vm1145, %v1118, 0
        %v1153 = vsel %vm1145, %v1119, 0
        %v1156 = vsel %vm1145, %v1120, 0
        %v1159 = vsel %vm1145, %v1121, 0
        %vm1161 = vcmask 1045504
        %v1163 = vsel %vm1161, %v1141, 0
        %v1166 = vsel %vm1161, %v1142, 0
        %1168 = vmatprep.subr.bf16.mxu0 %v1140
        %1169 = vmatpush1.bf16.msra.mxu0 %v1139
        %1170 = vmatprep.subr.bf16.mxu0 %v1166
        %1171 = vmatpush1.bf16.msra.mxu0 %v1163
        %1172 = vmatprep.subr.bf16.mxu0 0
        %1173 = vmatpush1.bf16.msra.mxu0 0
        %1174 = vmatprep.subr.bf16.mxu0 0
        %1175 = vmatpush1.bf16.msra.mxu0 0
        %1176 = vmatprep.subr.bf16.mxu0 0
        %1177 = vmatpush1.bf16.msra.mxu0 0
        %1178 = vmatprep.subr.bf16.mxu0 0
        %1179 = vmatpush1.bf16.msra.mxu0 0
        %1180 = vmatprep.subr.bf16.mxu0 0
        %1181 = vmatpush1.bf16.msra.mxu0 0
        %1182 = vmatprep.subr.bf16.mxu0 0
        %1183 = vmatpush1.bf16.msra.mxu0 0
        %1184 = vmatprep.subr.bf16.mxu0 0
        %1185 = vmatpush1.bf16.msra.mxu0 0
        %1186 = vmatprep.subr.bf16.mxu0 0
        %1187 = vmatpush1.bf16.msra.mxu0 0
        %1188 = vmatprep.subr.bf16.mxu0 0
        %1189 = vmatpush1.bf16.msra.mxu0 0
        %1190 = vmatprep.subr.bf16.mxu0 0
        %1191 = vmatpush1.bf16.msra.mxu0 0
        %1192 = vmatprep.subr.bf16.mxu0 0
        %1193 = vmatpush1.bf16.msra.mxu0 0
        %1194 = vmatprep.subr.bf16.mxu0 0
        %1195 = vmatpush1.bf16.msra.mxu0 0
        %1196 = vmatprep.subr.bf16.mxu0 0
        %1197 = vmatpush1.bf16.msra.mxu0 0
        %1198 = vmatprep.subr.bf16.mxu0 0
        %1199 = vmatpush1.bf16.msra.mxu0 0
        %1200 = vmatprep.mubr.bf16.mxu0 0
        %1201 = vmatmul.mubr.bf16.gmra.mrb[0].mxu0 %v1147
        %v1202 = vpop.f32.mrb[0].mxu0
        %v1203 = vadd.f32 0.0, %v1202
        %v1204 = vpop.f32.mrb[0].mxu0
        %v1205 = vadd.f32 0.0, %v1204
        %v1206 = vpop.f32.mrb[0].mxu0
        %v1207 = vadd.f32 0.0, %v1206
        %v1208 = vpop.f32.mrb[0].mxu0
        %v1209 = vadd.f32 0.0, %v1208
        %1210 = vmatprep.mubr.bf16.mxu0 0
        %1211 = vmatmul.mubr.bf16.gmra.mrb[0].mxu0 %v1150
        %v1212 = vpop.f32.mrb[0].mxu0
        %v1213 = vadd.f32 0.0, %v1212
        %v1214 = vpop.f32.mrb[0].mxu0
        %v1215 = vadd.f32 0.0, %v1214
        %v1216 = vpop.f32.mrb[0].mxu0
        %v1217 = vadd.f32 0.0, %v1216
        %v1218 = vpop.f32.mrb[0].mxu0
        %v1219 = vadd.f32 0.0, %v1218
        %1220 = vmatprep.mubr.bf16.mxu0 0
        %1221 = vmatmul.mubr.bf16.gmra.mrb[0].mxu0 %v1153
        %v1222 = vpop.f32.mrb[0].mxu0
        %v1223 = vadd.f32 0.0, %v1222
        %v1224 = vpop.f32.mrb[0].mxu0
        %v1225 = vadd.f32 0.0, %v1224
        %v1226 = vpop.f32.mrb[0].mxu0
        %v1227 = vadd.f32 0.0, %v1226
        %v1228 = vpop.f32.mrb[0].mxu0
        %v1229 = vadd.f32 0.0, %v1228
        %1230 = vmatprep.mubr.bf16.mxu0 0
        %1231 = vmatmul.mubr.bf16.gmra.mrb[0].mxu0 %v1156
        %v1232 = vpop.f32.mrb[0].mxu0
        %v1233 = vadd.f32 0.0, %v1232
        %v1234 = vpop.f32.mrb[0].mxu0
        %v1235 = vadd.f32 0.0, %v1234
        %v1236 = vpop.f32.mrb[0].mxu0
        %v1237 = vadd.f32 0.0, %v1236
        %v1238 = vpop.f32.mrb[0].mxu0
        %v1239 = vadd.f32 0.0, %v1238
        %1240 = vmatprep.mubr.bf16.mxu0 0
        %1241 = vmatmul.mubr.bf16.gmra.mrb[0].mxu0 %v1159
        %v1242 = vpop.f32.mrb[0].mxu0
        %v1243 = vadd.f32 0.0, %v1242
        %v1244 = vpop.f32.mrb[0].mxu0
        %v1245 = vadd.f32 0.0, %v1244
        %v1246 = vpop.f32.mrb[0].mxu0
        %v1247 = vadd.f32 0.0, %v1246
        %v1248 = vpop.f32.mrb[0].mxu0
        %v1249 = vadd.f32 0.0, %v1248
        %1250 = vdwg.mxu0
        %v1255 = vunpack.c.l.b16 %v1113
        %v1256 = vunpack.c.h.b16 %v1113
        %v1257 = vunpack.c.l.b16 %v1114
        %v1258 = vunpack.c.h.b16 %v1114
        %v1259 = vunpack.c.l.b16 %v1115
        %v1260 = vunpack.c.h.b16 %v1115
        %v1261 = vunpack.c.l.b16 %v1116
        %v1262 = vunpack.c.h.b16 %v1116
        %v1263 = vpack.c.b16 %v1257, %v1255
        %v1264 = vpack.c.b16 %v1258, %v1256
        %v1265 = vpack.c.b16 %v1261, %v1259
        %v1266 = vpack.c.b16 %v1262, %v1260
        %v1270 = vsel %vm1145, %v1108, 0
        %v1273 = vsel %vm1145, %v1109, 0
        %v1276 = vsel %vm1145, %v1110, 0
        %v1279 = vsel %vm1145, %v1111, 0
        %v1282 = vsel %vm1145, %v1112, 0
        %v1285 = vsel %vm1161, %v1265, 0
        %v1288 = vsel %vm1161, %v1266, 0
        %1290 = vmatprep.subr.bf16.mxu0 %v1264
        %1291 = vmatpush1.bf16.msra.mxu0 %v1263
        %1292 = vmatprep.subr.bf16.mxu0 %v1288
        %1293 = vmatpush1.bf16.msra.mxu0 %v1285
        %1294 = vmatprep.subr.bf16.mxu0 0
        %1295 = vmatpush1.bf16.msra.mxu0 0
        %1296 = vmatprep.subr.bf16.mxu0 0
        %1297 = vmatpush1.bf16.msra.mxu0 0
        %1298 = vmatprep.subr.bf16.mxu0 0
        %1299 = vmatpush1.bf16.msra.mxu0 0
        %1300 = vmatprep.subr.bf16.mxu0 0
        %1301 = vmatpush1.bf16.msra.mxu0 0
        %1302 = vmatprep.subr.bf16.mxu0 0
        %1303 = vmatpush1.bf16.msra.mxu0 0
        %1304 = vmatprep.subr.bf16.mxu0 0
        %1305 = vmatpush1.bf16.msra.mxu0 0
        %1306 = vmatprep.subr.bf16.mxu0 0
        %1307 = vmatpush1.bf16.msra.mxu0 0
        %1308 = vmatprep.subr.bf16.mxu0 0
        %1309 = vmatpush1.bf16.msra.mxu0 0
        %1310 = vmatprep.subr.bf16.mxu0 0
        %1311 = vmatpush1.bf16.msra.mxu0 0
        %1312 = vmatprep.subr.bf16.mxu0 0
        %1313 = vmatpush1.bf16.msra.mxu0 0
        %1314 = vmatprep.subr.bf16.mxu0 0
        %1315 = vmatpush1.bf16.msra.mxu0 0
        %1316 = vmatprep.subr.bf16.mxu0 0
        %1317 = vmatpush1.bf16.msra.mxu0 0
        %1318 = vmatprep.subr.bf16.mxu0 0
        %1319 = vmatpush1.bf16.msra.mxu0 0
        %1320 = vmatprep.subr.bf16.mxu0 0
        %1321 = vmatpush1.bf16.msra.mxu0 0
        %1322 = vmatprep.mubr.bf16.mxu0 0
        %1323 = vmatmul.mubr.bf16.gmra.mrb[0].mxu0 %v1270
        %v1324 = vpop.f32.mrb[0].mxu0
        %v1325 = vadd.f32 %v1203, %v1324
        %v1326 = vpop.f32.mrb[0].mxu0
        %v1327 = vadd.f32 %v1205, %v1326
        %v1328 = vpop.f32.mrb[0].mxu0
        %v1329 = vadd.f32 %v1207, %v1328
        %v1330 = vpop.f32.mrb[0].mxu0
        %v1331 = vadd.f32 %v1209, %v1330
        %1332 = vmatprep.mubr.bf16.mxu0 0
        %1333 = vmatmul.mubr.bf16.gmra.mrb[0].mxu0 %v1273
        %v1334 = vpop.f32.mrb[0].mxu0
        %v1335 = vadd.f32 %v1213, %v1334
        %v1336 = vpop.f32.mrb[0].mxu0
        %v1337 = vadd.f32 %v1215, %v1336
        %v1338 = vpop.f32.mrb[0].mxu0
        %v1339 = vadd.f32 %v1217, %v1338
        %v1340 = vpop.f32.mrb[0].mxu0
        %v1341 = vadd.f32 %v1219, %v1340
        %1342 = vmatprep.mubr.bf16.mxu0 0
        %1343 = vmatmul.mubr.bf16.gmra.mrb[0].mxu0 %v1276
        %v1344 = vpop.f32.mrb[0].mxu0
        %v1345 = vadd.f32 %v1223, %v1344
        %v1346 = vpop.f32.mrb[0].mxu0
        %v1347 = vadd.f32 %v1225, %v1346
        %v1348 = vpop.f32.mrb[0].mxu0
        %v1349 = vadd.f32 %v1227, %v1348
        %v1350 = vpop.f32.mrb[0].mxu0
        %v1351 = vadd.f32 %v1229, %v1350
        %1352 = vmatprep.mubr.bf16.mxu0 0
        %1353 = vmatmul.mubr.bf16.gmra.mrb[0].mxu0 %v1279
        %v1354 = vpop.f32.mrb[0].mxu0
        %v1355 = vadd.f32 %v1233, %v1354
        %v1356 = vpop.f32.mrb[0].mxu0
        %v1357 = vadd.f32 %v1235, %v1356
        %v1358 = vpop.f32.mrb[0].mxu0
        %v1359 = vadd.f32 %v1237, %v1358
        %v1360 = vpop.f32.mrb[0].mxu0
        %v1361 = vadd.f32 %v1239, %v1360
        %1362 = vmatprep.mubr.bf16.mxu0 0
        %1363 = vmatmul.mubr.bf16.gmra.mrb[0].mxu0 %v1282
        %v1364 = vpop.f32.mrb[0].mxu0
        %v1365 = vadd.f32 %v1243, %v1364
        %v1366 = vpop.f32.mrb[0].mxu0
        %v1367 = vadd.f32 %v1245, %v1366
        %v1368 = vpop.f32.mrb[0].mxu0
        %v1369 = vadd.f32 %v1247, %v1368
        %v1370 = vpop.f32.mrb[0].mxu0
        %v1371 = vadd.f32 %v1249, %v1370
        %1372 = vdwg.mxu0
        %v1373 = vpack.c.bf16 %v1073, %v1070
        %v1374 = vpack.c.bf16 %v1081, %v1078
        %v1375 = vpack.c.bf16 %v1089, %v1086
        %v1376 = vpack.c.bf16 %v1097, %v1094
        %v1377 = vpack.c.bf16 %v1105, %v1102
        %s1378 = scalar_lea.vmem %s2, 64
        %v1379 = vld [vmem:[%s1378] sm:$0xff]
        %v1380 = vld [vmem:[%s1378 + $0x8] sm:$0xff]
        %v1381 = vld [vmem:[%s1378 + $0x10] sm:$0xff]
        %v1382 = vld [vmem:[%s1378 + $0x18] sm:$0x33]
        %v1387 = vunpack.c.l.b16 %v1379
        %v1388 = vunpack.c.h.b16 %v1379
        %v1389 = vunpack.c.l.b16 %v1380
        %v1390 = vunpack.c.h.b16 %v1380
        %v1391 = vunpack.c.l.b16 %v1381
        %v1392 = vunpack.c.h.b16 %v1381
        %v1393 = vunpack.c.l.b16 %v1382
        %v1394 = vunpack.c.h.b16 %v1382
        %v1395 = vpack.c.b16 %v1389, %v1387
        %v1396 = vpack.c.b16 %v1390, %v1388
        %v1397 = vpack.c.b16 %v1393, %v1391
        %v1398 = vpack.c.b16 %v1394, %v1392
        %v1402 = vsel %vm1145, %v1373, 0
        %v1405 = vsel %vm1145, %v1374, 0
        %v1408 = vsel %vm1145, %v1375, 0
        %v1411 = vsel %vm1145, %v1376, 0
        %v1414 = vsel %vm1145, %v1377, 0
        %v1417 = vsel %vm1161, %v1397, 0
        %v1420 = vsel %vm1161, %v1398, 0
        %1422 = vmatprep.subr.bf16.mxu0 %v1396
        %1423 = vmatpush1.bf16.msra.mxu0 %v1395
        %1424 = vmatprep.subr.bf16.mxu0 %v1420
        %1425 = vmatpush1.bf16.msra.mxu0 %v1417
        %1426 = vmatprep.subr.bf16.mxu0 0
        %1427 = vmatpush1.bf16.msra.mxu0 0
        %1428 = vmatprep.subr.bf16.mxu0 0
        %1429 = vmatpush1.bf16.msra.mxu0 0
        %1430 = vmatprep.subr.bf16.mxu0 0
        %1431 = vmatpush1.bf16.msra.mxu0 0
        %1432 = vmatprep.subr.bf16.mxu0 0
        %1433 = vmatpush1.bf16.msra.mxu0 0
        %1434 = vmatprep.subr.bf16.mxu0 0
        %1435 = vmatpush1.bf16.msra.mxu0 0
        %1436 = vmatprep.subr.bf16.mxu0 0
        %1437 = vmatpush1.bf16.msra.mxu0 0
        %1438 = vmatprep.subr.bf16.mxu0 0
        %1439 = vmatpush1.bf16.msra.mxu0 0
        %1440 = vmatprep.subr.bf16.mxu0 0
        %1441 = vmatpush1.bf16.msra.mxu0 0
        %1442 = vmatprep.subr.bf16.mxu0 0
        %1443 = vmatpush1.bf16.msra.mxu0 0
        %1444 = vmatprep.subr.bf16.mxu0 0
        %1445 = vmatpush1.bf16.msra.mxu0 0
        %1446 = vmatprep.subr.bf16.mxu0 0
        %1447 = vmatpush1.bf16.msra.mxu0 0
        %1448 = vmatprep.subr.bf16.mxu0 0
        %1449 = vmatpush1.bf16.msra.mxu0 0
        %1450 = vmatprep.subr.bf16.mxu0 0
        %1451 = vmatpush1.bf16.msra.mxu0 0
        %1452 = vmatprep.subr.bf16.mxu0 0
        %1453 = vmatpush1.bf16.msra.mxu0 0
        %1454 = vmatprep.mubr.bf16.mxu0 0
        %1455 = vmatmul.mubr.bf16.gmra.mrb[0].mxu0 %v1402
        %v1456 = vpop.f32.mrb[0].mxu0
        %v1457 = vadd.f32 0.0, %v1456
        %v1458 = vpop.f32.mrb[0].mxu0
        %v1459 = vadd.f32 0.0, %v1458
        %v1460 = vpop.f32.mrb[0].mxu0
        %v1461 = vadd.f32 0.0, %v1460
        %v1462 = vpop.f32.mrb[0].mxu0
        %v1463 = vadd.f32 0.0, %v1462
        %1464 = vmatprep.mubr.bf16.mxu0 0
        %1465 = vmatmul.mubr.bf16.gmra.mrb[0].mxu0 %v1405
        %v1466 = vpop.f32.mrb[0].mxu0
        %v1467 = vadd.f32 0.0, %v1466
        %v1468 = vpop.f32.mrb[0].mxu0
        %v1469 = vadd.f32 0.0, %v1468
        %v1470 = vpop.f32.mrb[0].mxu0
        %v1471 = vadd.f32 0.0, %v1470
        %v1472 = vpop.f32.mrb[0].mxu0
        %v1473 = vadd.f32 0.0, %v1472
        %1474 = vmatprep.mubr.bf16.mxu0 0
        %1475 = vmatmul.mubr.bf16.gmra.mrb[0].mxu0 %v1408
        %v1476 = vpop.f32.mrb[0].mxu0
        %v1477 = vadd.f32 0.0, %v1476
        %v1478 = vpop.f32.mrb[0].mxu0
        %v1479 = vadd.f32 0.0, %v1478
        %v1480 = vpop.f32.mrb[0].mxu0
        %v1481 = vadd.f32 0.0, %v1480
        %v1482 = vpop.f32.mrb[0].mxu0
        %v1483 = vadd.f32 0.0, %v1482
        %1484 = vmatprep.mubr.bf16.mxu0 0
        %1485 = vmatmul.mubr.bf16.gmra.mrb[0].mxu0 %v1411
        %v1486 = vpop.f32.mrb[0].mxu0
        %v1487 = vadd.f32 0.0, %v1486
        %v1488 = vpop.f32.mrb[0].mxu0
        %v1489 = vadd.f32 0.0, %v1488
        %v1490 = vpop.f32.mrb[0].mxu0
        %v1491 = vadd.f32 0.0, %v1490
        %v1492 = vpop.f32.mrb[0].mxu0
        %v1493 = vadd.f32 0.0, %v1492
        %1494 = vmatprep.mubr.bf16.mxu0 0
        %1495 = vmatmul.mubr.bf16.gmra.mrb[0].mxu0 %v1414
        %v1496 = vpop.f32.mrb[0].mxu0
        %v1497 = vadd.f32 0.0, %v1496
        %v1498 = vpop.f32.mrb[0].mxu0
        %v1499 = vadd.f32 0.0, %v1498
        %v1500 = vpop.f32.mrb[0].mxu0
        %v1501 = vadd.f32 0.0, %v1500
        %v1502 = vpop.f32.mrb[0].mxu0
        %v1503 = vadd.f32 0.0, %v1502
        %1504 = vdwg.mxu0
        %v1505 = vadd.f32 %v1325, %v1457
        %v1506 = vadd.f32 %v1327, %v1459
        %v1507 = vadd.f32 %v1329, %v1461
        %v1508 = vadd.f32 %v1331, %v1463
        %v1509 = vadd.f32 %v1335, %v1467
        %v1510 = vadd.f32 %v1337, %v1469
        %v1511 = vadd.f32 %v1339, %v1471
        %v1512 = vadd.f32 %v1341, %v1473
        %v1513 = vadd.f32 %v1345, %v1477
        %v1514 = vadd.f32 %v1347, %v1479
        %v1515 = vadd.f32 %v1349, %v1481
        %v1516 = vadd.f32 %v1351, %v1483
        %v1517 = vadd.f32 %v1355, %v1487
        %v1518 = vadd.f32 %v1357, %v1489
        %v1519 = vadd.f32 %v1359, %v1491
        %v1520 = vadd.f32 %v1361, %v1493
        %v1521 = vadd.f32 %v1365, %v1497
        %v1522 = vadd.f32 %v1367, %v1499
        %v1523 = vadd.f32 %v1369, %v1501
        %v1524 = vadd.f32 %v1371, %v1503
        %v1525 = vld [vmem:[%s3] sm:$0x3]
        %v1527 = vlaneseq
        %v1528 = vshrl.u32 %v1527, 7
        %v1529 = vsub.s32 0, %v1528
        %v1530 = vrot.slane %v1525, %v1529
        %v1531 = vlaneseq
        %v1532 = vshrl.u32 %v1531, 7
        %v1533 = vsub.s32 1, %v1532
        %v1534 = vrot.slane %v1525, %v1533
        %v1537 = vadd.f32 %v1505, %v1530
        %v1538 = vadd.f32 %v1506, %v1534
        %v1539 = vadd.f32 %v1507, %v1530
        %v1540 = vadd.f32 %v1508, %v1534
        %v1541 = vadd.f32 %v1509, %v1530
        %v1542 = vadd.f32 %v1510, %v1534
        %v1543 = vadd.f32 %v1511, %v1530
        %v1544 = vadd.f32 %v1512, %v1534
        %v1545 = vadd.f32 %v1513, %v1530
        %v1546 = vadd.f32 %v1514, %v1534
        %v1547 = vadd.f32 %v1515, %v1530
        %v1548 = vadd.f32 %v1516, %v1534
        %v1549 = vadd.f32 %v1517, %v1530
        %v1550 = vadd.f32 %v1518, %v1534
        %v1551 = vadd.f32 %v1519, %v1530
        %v1552 = vadd.f32 %v1520, %v1534
        %v1553 = vadd.f32 %v1521, %v1530
        %v1554 = vadd.f32 %v1522, %v1534
        %v1555 = vadd.f32 %v1523, %v1530
        %v1556 = vadd.f32 %v1524, %v1534
        %v1557 = vmax.f32 %v1537, 0.0
        %v1558 = vmax.f32 %v1538, 0.0
        %v1559 = vmax.f32 %v1539, 0.0
        %v1560 = vmax.f32 %v1540, 0.0
        %v1561 = vmax.f32 %v1541, 0.0
        %v1562 = vmax.f32 %v1542, 0.0
        %v1563 = vmax.f32 %v1543, 0.0
        %v1564 = vmax.f32 %v1544, 0.0
        %v1565 = vmax.f32 %v1545, 0.0
        %v1566 = vmax.f32 %v1546, 0.0
        %v1567 = vmax.f32 %v1547, 0.0
        %v1568 = vmax.f32 %v1548, 0.0
        %v1569 = vmax.f32 %v1549, 0.0
        %v1570 = vmax.f32 %v1550, 0.0
        %v1571 = vmax.f32 %v1551, 0.0
        %v1572 = vmax.f32 %v1552, 0.0
        %v1573 = vmax.f32 %v1553, 0.0
        %v1574 = vmax.f32 %v1554, 0.0
        %v1575 = vmax.f32 %v1555, 0.0
        %v1576 = vmax.f32 %v1556, 0.0
        %v1577 = vpack.c.bf16 %v1559, %v1557
        %v1578 = vpack.c.bf16 %v1560, %v1558
        %v1579 = vpack.c.bf16 %v1563, %v1561
        %v1580 = vpack.c.bf16 %v1564, %v1562
        %v1581 = vpack.c.bf16 %v1567, %v1565
        %v1582 = vpack.c.bf16 %v1568, %v1566
        %v1583 = vpack.c.bf16 %v1571, %v1569
        %v1584 = vpack.c.bf16 %v1572, %v1570
        %v1585 = vpack.c.bf16 %v1575, %v1573
        %v1586 = vpack.c.bf16 %v1576, %v1574
        %v1587 = vld [vmem:[%s4] sm:$0xf]
        %v1588 = vld [vmem:[%s4 + $0x4] sm:$0xf]
        %v1589 = vld [vmem:[%s4 + $0x8] sm:$0xf]
        %v1590 = vld [vmem:[%s4 + $0xc] sm:$0xf]
        %v1591 = vld [vmem:[%s4 + $0x10] sm:$0xf]
        %v1592 = vld [vmem:[%s4 + $0x14] sm:$0xf]
        %v1593 = vld [vmem:[%s4 + $0x18] sm:$0xf]
        %v1594 = vld [vmem:[%s4 + $0x1c] sm:$0xf]
        %v1595 = vld [vmem:[%s4 + $0x20] sm:$0xf]
        %v1596 = vld [vmem:[%s4 + $0x24] sm:$0xf]
        %v1607 = vunpack.c.l.b16 %v1587
        %v1608 = vunpack.c.l.b16 %v1588
        %v1609 = vunpack.c.l.b16 %v1589
        %v1610 = vunpack.c.l.b16 %v1590
        %v1611 = vunpack.c.l.b16 %v1591
        %v1612 = vunpack.c.l.b16 %v1592
        %v1613 = vunpack.c.l.b16 %v1593
        %v1614 = vunpack.c.l.b16 %v1594
        %v1615 = vunpack.c.l.b16 %v1595
        %v1616 = vunpack.c.l.b16 %v1596
        %v1617 = vpack.c.b16 %v1608, %v1607
        %v1618 = vpack.c.b16 %v1610, %v1609
        %v1619 = vpack.c.b16 %v1612, %v1611
        %v1620 = vpack.c.b16 %v1614, %v1613
        %v1621 = vpack.c.b16 %v1616, %v1615
        %vm1622 = vcmask 654336
        %v1624 = vsel %vm1622, %v1617, 0
        %v1627 = vsel %vm1622, %v1618, 0
        %v1630 = vsel %vm1622, %v1619, 0
        %v1633 = vsel %vm1622, %v1620, 0
        %v1636 = vsel %vm1622, %v1621, 0
        %1638 = vmatprep.subr.bf16.mxu0 %v1578
        %1639 = vmatpush1.bf16.msra.mxu0 %v1577
        %1640 = vmatprep.subr.bf16.mxu0 %v1580
        %1641 = vmatpush1.bf16.msra.mxu0 %v1579
        %1642 = vmatprep.subr.bf16.mxu0 %v1582
        %1643 = vmatpush1.bf16.msra.mxu0 %v1581
        %1644 = vmatprep.subr.bf16.mxu0 %v1584
        %1645 = vmatpush1.bf16.msra.mxu0 %v1583
        %1646 = vmatprep.subr.bf16.mxu0 %v1586
        %1647 = vmatpush1.bf16.msra.mxu0 %v1585
        %1648 = vmatprep.subr.bf16.mxu0 0
        %1649 = vmatpush1.bf16.msra.mxu0 0
        %1650 = vmatprep.subr.bf16.mxu0 0
        %1651 = vmatpush1.bf16.msra.mxu0 0
        %1652 = vmatprep.subr.bf16.mxu0 0
        %1653 = vmatpush1.bf16.msra.mxu0 0
        %1654 = vmatprep.subr.bf16.mxu0 0
        %1655 = vmatpush1.bf16.msra.mxu0 0
        %1656 = vmatprep.subr.bf16.mxu0 0
        %1657 = vmatpush1.bf16.msra.mxu0 0
        %1658 = vmatprep.subr.bf16.mxu0 0
        %1659 = vmatpush1.bf16.msra.mxu0 0
        %1660 = vmatprep.subr.bf16.mxu0 0
        %1661 = vmatpush1.bf16.msra.mxu0 0
        %1662 = vmatprep.subr.bf16.mxu0 0
        %1663 = vmatpush1.bf16.msra.mxu0 0
        %1664 = vmatprep.subr.bf16.mxu0 0
        %1665 = vmatpush1.bf16.msra.mxu0 0
        %1666 = vmatprep.subr.bf16.mxu0 0
        %1667 = vmatpush1.bf16.msra.mxu0 0
        %1668 = vmatprep.subr.bf16.mxu0 0
        %1669 = vmatpush1.bf16.msra.mxu0 0
        %1670 = vmatprep.mubr.bf16.mxu0 0
        %1671 = vmatmul.mubr.bf16.gmra.mrb[0].mxu0 %v1624
        %v1672 = vpop.f32.mrb[0].mxu0
        %v1673 = vadd.f32 0.0, %v1672
        %v1674 = vpop.f32.mrb[0].mxu0
        %v1675 = vadd.f32 0.0, %v1674
        %v1676 = vpop.f32.mrb[0].mxu0
        %v1677 = vadd.f32 0.0, %v1676
        %v1678 = vpop.f32.mrb[0].mxu0
        %v1679 = vadd.f32 0.0, %v1678
        %1680 = vmatprep.mubr.bf16.mxu0 0
        %1681 = vmatmul.mubr.bf16.gmra.mrb[0].mxu0 %v1627
        %v1682 = vpop.f32.mrb[0].mxu0
        %v1683 = vadd.f32 0.0, %v1682
        %v1684 = vpop.f32.mrb[0].mxu0
        %v1685 = vadd.f32 0.0, %v1684
        %v1686 = vpop.f32.mrb[0].mxu0
        %v1687 = vadd.f32 0.0, %v1686
        %v1688 = vpop.f32.mrb[0].mxu0
        %v1689 = vadd.f32 0.0, %v1688
        %1690 = vmatprep.mubr.bf16.mxu0 0
        %1691 = vmatmul.mubr.bf16.gmra.mrb[0].mxu0 %v1630
        %v1692 = vpop.f32.mrb[0].mxu0
        %v1693 = vadd.f32 0.0, %v1692
        %v1694 = vpop.f32.mrb[0].mxu0
        %v1695 = vadd.f32 0.0, %v1694
        %v1696 = vpop.f32.mrb[0].mxu0
        %v1697 = vadd.f32 0.0, %v1696
        %v1698 = vpop.f32.mrb[0].mxu0
        %v1699 = vadd.f32 0.0, %v1698
        %1700 = vmatprep.mubr.bf16.mxu0 0
        %1701 = vmatmul.mubr.bf16.gmra.mrb[0].mxu0 %v1633
        %v1702 = vpop.f32.mrb[0].mxu0
        %v1703 = vadd.f32 0.0, %v1702
        %v1704 = vpop.f32.mrb[0].mxu0
        %v1705 = vadd.f32 0.0, %v1704
        %v1706 = vpop.f32.mrb[0].mxu0
        %v1707 = vadd.f32 0.0, %v1706
        %v1708 = vpop.f32.mrb[0].mxu0
        %v1709 = vadd.f32 0.0, %v1708
        %1710 = vmatprep.mubr.bf16.mxu0 0
        %1711 = vmatmul.mubr.bf16.gmra.mrb[0].mxu0 %v1636
        %v1712 = vpop.f32.mrb[0].mxu0
        %v1713 = vadd.f32 0.0, %v1712
        %v1714 = vpop.f32.mrb[0].mxu0
        %v1715 = vadd.f32 0.0, %v1714
        %v1716 = vpop.f32.mrb[0].mxu0
        %v1717 = vadd.f32 0.0, %v1716
        %v1718 = vpop.f32.mrb[0].mxu0
        %v1719 = vadd.f32 0.0, %v1718
        %1720 = vdwg.mxu0
        %v1721 = vpack.c.bf16 %v1677, %v1673
        %v1722 = vpack.c.bf16 %v1679, %v1675
        %v1723 = vpack.c.bf16 %v1687, %v1683
        %v1724 = vpack.c.bf16 %v1689, %v1685
        %v1725 = vpack.c.bf16 %v1693, %v1693
        %v1726 = vpack.c.bf16 %v1695, %v1695
        %v1727 = vld [vmem:[%s5] sm:$0xf]
        %v1728 = vld [vmem:[%s5 + $0x4] sm:$0xf]
        %v1729 = vld [vmem:[%s5 + $0x8] sm:$0xf]
        %v1730 = vld [vmem:[%s5 + $0xc] sm:$0xf]
        %v1731 = vld [vmem:[%s5 + $0x10] sm:$0xf]
        %v1732 = vld [vmem:[%s5 + $0x14] sm:$0xf]
        %v1733 = vld [vmem:[%s5 + $0x18] sm:$0xf]
        %v1734 = vld [vmem:[%s5 + $0x1c] sm:$0xf]
        %v1735 = vld [vmem:[%s5 + $0x20] sm:$0xf]
        %v1736 = vld [vmem:[%s5 + $0x24] sm:$0xf]
        %v1737 = vld [vmem:[%s5 + $0x28] sm:$0xf]
        %v1738 = vld [vmem:[%s5 + $0x2c] sm:$0xf]
        %v1739 = vld [vmem:[%s5 + $0x30] sm:$0xf]
        %v1740 = vld [vmem:[%s5 + $0x34] sm:$0xf]
        %v1741 = vld [vmem:[%s5 + $0x38] sm:$0xf]
        %v1742 = vld [vmem:[%s5 + $0x3c] sm:$0xf]
        %v1743 = vld [vmem:[%s5 + $0x40] sm:$0xf]
        %v1744 = vld [vmem:[%s5 + $0x44] sm:$0xf]
        %v1745 = vld [vmem:[%s5 + $0x48] sm:$0xf]
        %v1746 = vld [vmem:[%s5 + $0x4c] sm:$0xf]
        %v1767 = vunpack.c.l.b16 %v1727
        %v1768 = vunpack.c.l.b16 %v1728
        %v1769 = vunpack.c.l.b16 %v1729
        %v1770 = vunpack.c.l.b16 %v1730
        %v1771 = vunpack.c.l.b16 %v1731
        %v1772 = vunpack.c.l.b16 %v1732
        %v1773 = vunpack.c.l.b16 %v1733
        %v1774 = vunpack.c.l.b16 %v1734
        %v1775 = vunpack.c.l.b16 %v1735
        %v1776 = vunpack.c.l.b16 %v1736
        %v1777 = vunpack.c.l.b16 %v1737
        %v1778 = vunpack.c.l.b16 %v1738
        %v1779 = vunpack.c.l.b16 %v1739
        %v1780 = vunpack.c.l.b16 %v1740
        %v1781 = vunpack.c.l.b16 %v1741
        %v1782 = vunpack.c.l.b16 %v1742
        %v1783 = vunpack.c.l.b16 %v1743
        %v1784 = vunpack.c.l.b16 %v1744
        %v1785 = vunpack.c.l.b16 %v1745
        %v1786 = vunpack.c.l.b16 %v1746
        %v1787 = vpack.c.b16 %v1768, %v1767
        %v1788 = vpack.c.b16 %v1770, %v1769
        %v1789 = vpack.c.b16 %v1772, %v1771
        %v1790 = vpack.c.b16 %v1774, %v1773
        %v1791 = vpack.c.b16 %v1776, %v1775
        %v1792 = vpack.c.b16 %v1778, %v1777
        %v1793 = vpack.c.b16 %v1780, %v1779
        %v1794 = vpack.c.b16 %v1782, %v1781
        %v1795 = vpack.c.b16 %v1784, %v1783
        %v1796 = vpack.c.b16 %v1786, %v1785
        %vm1807 = vcmask 261120
        %v1809 = vsel %vm1807, %v1722, 0
        %v1812 = vsel %vm1807, %v1724, 0
        %v1815 = vsel %vm1807, %v1726, 0
        %1817 = vmatprep.subr.bf16.mxu0 0
        %1818 = vmatpush1.bf16.msra.mxu0 %v1787
        %1819 = vmatprep.subr.bf16.mxu0 0
        %1820 = vmatpush1.bf16.msra.mxu0 %v1788
        %1821 = vmatprep.subr.bf16.mxu0 0
        %1822 = vmatpush1.bf16.msra.mxu0 %v1789
        %1823 = vmatprep.subr.bf16.mxu0 0
        %1824 = vmatpush1.bf16.msra.mxu0 %v1790
        %1825 = vmatprep.subr.bf16.mxu0 0
        %1826 = vmatpush1.bf16.msra.mxu0 %v1791
        %1827 = vmatprep.subr.bf16.mxu0 0
        %1828 = vmatpush1.bf16.msra.mxu0 %v1792
        %1829 = vmatprep.subr.bf16.mxu0 0
        %1830 = vmatpush1.bf16.msra.mxu0 %v1793
        %1831 = vmatprep.subr.bf16.mxu0 0
        %1832 = vmatpush1.bf16.msra.mxu0 %v1794
        %1833 = vmatprep.subr.bf16.mxu0 0
        %1834 = vmatpush1.bf16.msra.mxu0 %v1795
        %1835 = vmatprep.subr.bf16.mxu0 0
        %1836 = vmatpush1.bf16.msra.mxu0 %v1796
        %1837 = vmatprep.subr.bf16.mxu0 0
        %1838 = vmatpush1.bf16.msra.mxu0 0
        %1839 = vmatprep.subr.bf16.mxu0 0
        %1840 = vmatpush1.bf16.msra.mxu0 0
        %1841 = vmatprep.subr.bf16.mxu0 0
        %1842 = vmatpush1.bf16.msra.mxu0 0
        %1843 = vmatprep.subr.bf16.mxu0 0
        %1844 = vmatpush1.bf16.msra.mxu0 0
        %1845 = vmatprep.subr.bf16.mxu0 0
        %1846 = vmatpush1.bf16.msra.mxu0 0
        %1847 = vmatprep.subr.bf16.mxu0 0
        %1848 = vmatpush1.bf16.msra.mxu0 0
        %1849 = vmatprep.mubr.bf16.mxu0 %v1809
        %1850 = vmatmul.mubr.bf16.gmra.mrb[0].mxu0 %v1721
        %v1851 = vpop.f32.mrb[0].mxu0
        %v1852 = vadd.f32 0.0, %v1851
        %v1853 = vpop.f32.mrb[0].mxu0
        %v1854 = vpop.f32.mrb[0].mxu0
        %v1855 = vadd.f32 0.0, %v1854
        %v1856 = vpop.f32.mrb[0].mxu0
        %1857 = vmatprep.mubr.bf16.mxu0 %v1812
        %1858 = vmatmul.mubr.bf16.gmra.mrb[0].mxu0 %v1723
        %v1859 = vpop.f32.mrb[0].mxu0
        %v1860 = vadd.f32 0.0, %v1859
        %v1861 = vpop.f32.mrb[0].mxu0
        %v1862 = vpop.f32.mrb[0].mxu0
        %v1863 = vadd.f32 0.0, %v1862
        %v1864 = vpop.f32.mrb[0].mxu0
        %1865 = vmatprep.mubr.bf16.mxu0 %v1815
        %1866 = vmatmul.mubr.bf16.gmra.mrb[0].mxu0 %v1725
        %v1867 = vpop.f32.mrb[0].mxu0
        %v1868 = vadd.f32 0.0, %v1867
        %v1869 = vpop.f32.mrb[0].mxu0
        %v1870 = vpop.f32.mrb[0].mxu0
        %v1871 = vpop.f32.mrb[0].mxu0
        %1872 = vdwg.mxu0
        %s1873 = scalar_lea.vmem %s5, 80
        %v1874 = vld [vmem:[%s1873] sm:$0xf]
        %v1875 = vld [vmem:[%s1873 + $0x4] sm:$0xf]
        %v1876 = vld [vmem:[%s1873 + $0x8] sm:$0xf]
        %v1877 = vld [vmem:[%s1873 + $0xc] sm:$0xf]
        %v1878 = vld [vmem:[%s1873 + $0x10] sm:$0xf]
        %v1879 = vld [vmem:[%s1873 + $0x14] sm:$0xf]
        %v1880 = vld [vmem:[%s1873 + $0x18] sm:$0xf]
        %v1881 = vld [vmem:[%s1873 + $0x1c] sm:$0xf]
        %v1882 = vld [vmem:[%s1873 + $0x20] sm:$0xf]
        %v1883 = vld [vmem:[%s1873 + $0x24] sm:$0xf]
        %v1884 = vld [vmem:[%s1873 + $0x28] sm:$0xf]
        %v1885 = vld [vmem:[%s1873 + $0x2c] sm:$0xf]
        %v1886 = vld [vmem:[%s1873 + $0x30] sm:$0xf]
        %v1887 = vld [vmem:[%s1873 + $0x34] sm:$0xf]
        %v1888 = vld [vmem:[%s1873 + $0x38] sm:$0xf]
        %v1889 = vld [vmem:[%s1873 + $0x3c] sm:$0xf]
        %v1890 = vld [vmem:[%s1873 + $0x40] sm:$0xf]
        %v1891 = vld [vmem:[%s1873 + $0x44] sm:$0xf]
        %v1892 = vld [vmem:[%s1873 + $0x48] sm:$0xf]
        %v1893 = vld [vmem:[%s1873 + $0x4c] sm:$0xf]
        %v1914 = vunpack.c.l.b16 %v1874
        %v1915 = vunpack.c.l.b16 %v1875
        %v1916 = vunpack.c.l.b16 %v1876
        %v1917 = vunpack.c.l.b16 %v1877
        %v1918 = vunpack.c.l.b16 %v1878
        %v1919 = vunpack.c.l.b16 %v1879
        %v1920 = vunpack.c.l.b16 %v1880
        %v1921 = vunpack.c.l.b16 %v1881
        %v1922 = vunpack.c.l.b16 %v1882
        %v1923 = vunpack.c.l.b16 %v1883
        %v1924 = vunpack.c.l.b16 %v1884
        %v1925 = vunpack.c.l.b16 %v1885
        %v1926 = vunpack.c.l.b16 %v1886
        %v1927 = vunpack.c.l.b16 %v1887
        %v1928 = vunpack.c.l.b16 %v1888
        %v1929 = vunpack.c.l.b16 %v1889
        %v1930 = vunpack.c.l.b16 %v1890
        %v1931 = vunpack.c.l.b16 %v1891
        %v1932 = vunpack.c.l.b16 %v1892
        %v1933 = vunpack.c.l.b16 %v1893
        %v1934 = vpack.c.b16 %v1915, %v1914
        %v1935 = vpack.c.b16 %v1917, %v1916
        %v1936 = vpack.c.b16 %v1919, %v1918
        %v1937 = vpack.c.b16 %v1921, %v1920
        %v1938 = vpack.c.b16 %v1923, %v1922
        %v1939 = vpack.c.b16 %v1925, %v1924
        %v1940 = vpack.c.b16 %v1927, %v1926
        %v1941 = vpack.c.b16 %v1929, %v1928
        %v1942 = vpack.c.b16 %v1931, %v1930
        %v1943 = vpack.c.b16 %v1933, %v1932
        %1954 = vmatprep.subr.bf16.mxu0 0
        %1955 = vmatpush1.bf16.msra.mxu0 %v1934
        %1956 = vmatprep.subr.bf16.mxu0 0
        %1957 = vmatpush1.bf16.msra.mxu0 %v1935
        %1958 = vmatprep.subr.bf16.mxu0 0
        %1959 = vmatpush1.bf16.msra.mxu0 %v1936
        %1960 = vmatprep.subr.bf16.mxu0 0
        %1961 = vmatpush1.bf16.msra.mxu0 %v1937
        %1962 = vmatprep.subr.bf16.mxu0 0
        %1963 = vmatpush1.bf16.msra.mxu0 %v1938
        %1964 = vmatprep.subr.bf16.mxu0 0
        %1965 = vmatpush1.bf16.msra.mxu0 %v1939
        %1966 = vmatprep.subr.bf16.mxu0 0
        %1967 = vmatpush1.bf16.msra.mxu0 %v1940
        %1968 = vmatprep.subr.bf16.mxu0 0
        %1969 = vmatpush1.bf16.msra.mxu0 %v1941
        %1970 = vmatprep.subr.bf16.mxu0 0
        %1971 = vmatpush1.bf16.msra.mxu0 %v1942
        %1972 = vmatprep.subr.bf16.mxu0 0
        %1973 = vmatpush1.bf16.msra.mxu0 %v1943
        %1974 = vmatprep.subr.bf16.mxu0 0
        %1975 = vmatpush1.bf16.msra.mxu0 0
        %1976 = vmatprep.subr.bf16.mxu0 0
        %1977 = vmatpush1.bf16.msra.mxu0 0
        %1978 = vmatprep.subr.bf16.mxu0 0
        %1979 = vmatpush1.bf16.msra.mxu0 0
        %1980 = vmatprep.subr.bf16.mxu0 0
        %1981 = vmatpush1.bf16.msra.mxu0 0
        %1982 = vmatprep.subr.bf16.mxu0 0
        %1983 = vmatpush1.bf16.msra.mxu0 0
        %1984 = vmatprep.subr.bf16.mxu0 0
        %1985 = vmatpush1.bf16.msra.mxu0 0
        %1986 = vmatprep.mubr.bf16.mxu0 %v1809
        %1987 = vmatmul.mubr.bf16.gmra.mrb[0].mxu0 %v1721
        %v1988 = vpop.f32.mrb[0].mxu0
        %v1989 = vadd.f32 0.0, %v1988
        %v1990 = vpop.f32.mrb[0].mxu0
        %v1991 = vpop.f32.mrb[0].mxu0
        %v1992 = vadd.f32 0.0, %v1991
        %v1993 = vpop.f32.mrb[0].mxu0
        %1994 = vmatprep.mubr.bf16.mxu0 %v1812
        %1995 = vmatmul.mubr.bf16.gmra.mrb[0].mxu0 %v1723
        %v1996 = vpop.f32.mrb[0].mxu0
        %v1997 = vadd.f32 0.0, %v1996
        %v1998 = vpop.f32.mrb[0].mxu0
        %v1999 = vpop.f32.mrb[0].mxu0
        %v2000 = vadd.f32 0.0, %v1999
        %v2001 = vpop.f32.mrb[0].mxu0
        %2002 = vmatprep.mubr.bf16.mxu0 %v1815
        %2003 = vmatmul.mubr.bf16.gmra.mrb[0].mxu0 %v1725
        %v2004 = vpop.f32.mrb[0].mxu0
        %v2005 = vadd.f32 0.0, %v2004
        %v2006 = vpop.f32.mrb[0].mxu0
        %v2007 = vpop.f32.mrb[0].mxu0
        %v2008 = vpop.f32.mrb[0].mxu0
        %2009 = vdwg.mxu0
        %v2010 = vmax.f32 %v1852, %v1989
        %v2011 = vmax.f32 %v1855, %v1992
        %v2012 = vmax.f32 %v1860, %v1997
        %v2013 = vmax.f32 %v1863, %v2000
        %v2014 = vmax.f32 %v1868, %v2005
        %v2015 = vpack.c.bf16 %v1703, %v1697
        %v2016 = vpack.c.bf16 %v1705, %v1699
        %v2017 = vpack.c.bf16 %v1713, %v1707
        %v2018 = vpack.c.bf16 %v1715, %v1709
        %v2019 = vpack.c.bf16 %v1717, %v1717
        %v2020 = vpack.c.bf16 %v1719, %v1719
        %v2022 = vsel %vm1807, %v2016, 0
        %v2025 = vsel %vm1807, %v2018, 0
        %v2028 = vsel %vm1807, %v2020, 0
        %2030 = vmatprep.subr.bf16.mxu0 0
        %2031 = vmatpush1.bf16.msra.mxu0 %v1787
        %2032 = vmatprep.subr.bf16.mxu0 0
        %2033 = vmatpush1.bf16.msra.mxu0 %v1788
        %2034 = vmatprep.subr.bf16.mxu0 0
        %2035 = vmatpush1.bf16.msra.mxu0 %v1789
        %2036 = vmatprep.subr.bf16.mxu0 0
        %2037 = vmatpush1.bf16.msra.mxu0 %v1790
        %2038 = vmatprep.subr.bf16.mxu0 0
        %2039 = vmatpush1.bf16.msra.mxu0 %v1791
        %2040 = vmatprep.subr.bf16.mxu0 0
        %2041 = vmatpush1.bf16.msra.mxu0 %v1792
        %2042 = vmatprep.subr.bf16.mxu0 0
        %2043 = vmatpush1.bf16.msra.mxu0 %v1793
        %2044 = vmatprep.subr.bf16.mxu0 0
        %2045 = vmatpush1.bf16.msra.mxu0 %v1794
        %2046 = vmatprep.subr.bf16.mxu0 0
        %2047 = vmatpush1.bf16.msra.mxu0 %v1795
        %2048 = vmatprep.subr.bf16.mxu0 0
        %2049 = vmatpush1.bf16.msra.mxu0 %v1796
        %2050 = vmatprep.subr.bf16.mxu0 0
        %2051 = vmatpush1.bf16.msra.mxu0 0
        %2052 = vmatprep.subr.bf16.mxu0 0
        %2053 = vmatpush1.bf16.msra.mxu0 0
        %2054 = vmatprep.subr.bf16.mxu0 0
        %2055 = vmatpush1.bf16.msra.mxu0 0
        %2056 = vmatprep.subr.bf16.mxu0 0
        %2057 = vmatpush1.bf16.msra.mxu0 0
        %2058 = vmatprep.subr.bf16.mxu0 0
        %2059 = vmatpush1.bf16.msra.mxu0 0
        %2060 = vmatprep.subr.bf16.mxu0 0
        %2061 = vmatpush1.bf16.msra.mxu0 0
        %2062 = vmatprep.mubr.bf16.mxu0 %v2022
        %2063 = vmatmul.mubr.bf16.gmra.mrb[0].mxu0 %v2015
        %v2064 = vpop.f32.mrb[0].mxu0
        %v2065 = vadd.f32 0.0, %v2064
        %v2066 = vpop.f32.mrb[0].mxu0
        %v2067 = vpop.f32.mrb[0].mxu0
        %v2068 = vadd.f32 0.0, %v2067
        %v2069 = vpop.f32.mrb[0].mxu0
        %2070 = vmatprep.mubr.bf16.mxu0 %v2025
        %2071 = vmatmul.mubr.bf16.gmra.mrb[0].mxu0 %v2017
        %v2072 = vpop.f32.mrb[0].mxu0
        %v2073 = vadd.f32 0.0, %v2072
        %v2074 = vpop.f32.mrb[0].mxu0
        %v2075 = vpop.f32.mrb[0].mxu0
        %v2076 = vadd.f32 0.0, %v2075
        %v2077 = vpop.f32.mrb[0].mxu0
        %2078 = vmatprep.mubr.bf16.mxu0 %v2028
        %2079 = vmatmul.mubr.bf16.gmra.mrb[0].mxu0 %v2019
        %v2080 = vpop.f32.mrb[0].mxu0
        %v2081 = vadd.f32 0.0, %v2080
        %v2082 = vpop.f32.mrb[0].mxu0
        %v2083 = vpop.f32.mrb[0].mxu0
        %v2084 = vpop.f32.mrb[0].mxu0
        %2085 = vdwg.mxu0
        %v2086 = vmax.f32 %v2010, %v2065
        %v2087 = vmax.f32 %v2011, %v2068
        %v2088 = vmax.f32 %v2012, %v2073
        %v2089 = vmax.f32 %v2013, %v2076
        %v2090 = vmax.f32 %v2014, %v2081
        %2091 = vmatprep.subr.bf16.mxu0 0
        %2092 = vmatpush1.bf16.msra.mxu0 %v1934
        %2093 = vmatprep.subr.bf16.mxu0 0
        %2094 = vmatpush1.bf16.msra.mxu0 %v1935
        %2095 = vmatprep.subr.bf16.mxu0 0
        %2096 = vmatpush1.bf16.msra.mxu0 %v1936
        %2097 = vmatprep.subr.bf16.mxu0 0
        %2098 = vmatpush1.bf16.msra.mxu0 %v1937
        %2099 = vmatprep.subr.bf16.mxu0 0
        %2100 = vmatpush1.bf16.msra.mxu0 %v1938
        %2101 = vmatprep.subr.bf16.mxu0 0
        %2102 = vmatpush1.bf16.msra.mxu0 %v1939
        %2103 = vmatprep.subr.bf16.mxu0 0
        %2104 = vmatpush1.bf16.msra.mxu0 %v1940
        %2105 = vmatprep.subr.bf16.mxu0 0
        %2106 = vmatpush1.bf16.msra.mxu0 %v1941
        %2107 = vmatprep.subr.bf16.mxu0 0
        %2108 = vmatpush1.bf16.msra.mxu0 %v1942
        %2109 = vmatprep.subr.bf16.mxu0 0
        %2110 = vmatpush1.bf16.msra.mxu0 %v1943
        %2111 = vmatprep.subr.bf16.mxu0 0
        %2112 = vmatpush1.bf16.msra.mxu0 0
        %2113 = vmatprep.subr.bf16.mxu0 0
        %2114 = vmatpush1.bf16.msra.mxu0 0
        %2115 = vmatprep.subr.bf16.mxu0 0
        %2116 = vmatpush1.bf16.msra.mxu0 0
        %2117 = vmatprep.subr.bf16.mxu0 0
        %2118 = vmatpush1.bf16.msra.mxu0 0
        %2119 = vmatprep.subr.bf16.mxu0 0
        %2120 = vmatpush1.bf16.msra.mxu0 0
        %2121 = vmatprep.subr.bf16.mxu0 0
        %2122 = vmatpush1.bf16.msra.mxu0 0
        %2123 = vmatprep.mubr.bf16.mxu0 %v2022
        %2124 = vmatmul.mubr.bf16.gmra.mrb[0].mxu0 %v2015
        %v2125 = vpop.f32.mrb[0].mxu0
        %v2126 = vadd.f32 0.0, %v2125
        %v2127 = vpop.f32.mrb[0].mxu0
        %v2128 = vpop.f32.mrb[0].mxu0
        %v2129 = vadd.f32 0.0, %v2128
        %v2130 = vpop.f32.mrb[0].mxu0
        %2131 = vmatprep.mubr.bf16.mxu0 %v2025
        %2132 = vmatmul.mubr.bf16.gmra.mrb[0].mxu0 %v2017
        %v2133 = vpop.f32.mrb[0].mxu0
        %v2134 = vadd.f32 0.0, %v2133
        %v2135 = vpop.f32.mrb[0].mxu0
        %v2136 = vpop.f32.mrb[0].mxu0
        %v2137 = vadd.f32 0.0, %v2136
        %v2138 = vpop.f32.mrb[0].mxu0
        %2139 = vmatprep.mubr.bf16.mxu0 %v2028
        %2140 = vmatmul.mubr.bf16.gmra.mrb[0].mxu0 %v2019
        %v2141 = vpop.f32.mrb[0].mxu0
        %v2142 = vadd.f32 0.0, %v2141
        %v2143 = vpop.f32.mrb[0].mxu0
        %v2144 = vpop.f32.mrb[0].mxu0
        %v2145 = vpop.f32.mrb[0].mxu0
        %2146 = vdwg.mxu0
        %v2147 = vmax.f32 %v2086, %v2126
        %v2148 = vmax.f32 %v2087, %v2129
        %v2149 = vmax.f32 %v2088, %v2134
        %v2150 = vmax.f32 %v2089, %v2137
        %v2151 = vmax.f32 %v2090, %v2142
        %v2152 = vpack.c.bf16 %v2148, %v2147
        %v2153 = vpack.c.bf16 %v2150, %v2149
        %v2154 = vpack.c.bf16 %v2151, %v2151
        %v2155 = vld [vmem:[%s6] sm:$0xf]
        %v2156 = vld [vmem:[%s6 + $0x4] sm:$0xf]
        %v2157 = vld [vmem:[%s6 + $0x8] sm:$0xf]
        %v2158 = vld [vmem:[%s6 + $0xc] sm:$0xf]
        %v2159 = vld [vmem:[%s6 + $0x10] sm:$0xf]
        %v2160 = vld [vmem:[%s6 + $0x14] sm:$0xf]
        %v2161 = vld [vmem:[%s6 + $0x18] sm:$0xf]
        %v2162 = vld [vmem:[%s6 + $0x1c] sm:$0xf]
        %v2163 = vld [vmem:[%s6 + $0x20] sm:$0xf]
        %v2173 = vunpack.c.l.b16 %v2155
        %v2174 = vunpack.c.l.b16 %v2156
        %v2175 = vunpack.c.l.b16 %v2157
        %v2176 = vunpack.c.l.b16 %v2158
        %v2177 = vunpack.c.l.b16 %v2159
        %v2178 = vunpack.c.l.b16 %v2160
        %v2179 = vunpack.c.l.b16 %v2161
        %v2180 = vunpack.c.l.b16 %v2162
        %v2181 = vunpack.c.l.b16 %v2163
        %v2182 = vpack.c.b16 %v2174, %v2173
        %v2183 = vpack.c.b16 %v2176, %v2175
        %v2184 = vpack.c.b16 %v2178, %v2177
        %v2185 = vpack.c.b16 %v2180, %v2179
        %v2186 = vpack.c.b16 %v2181, %v2181
        %vm2187 = vcmask 326656
        %v2189 = vsel %vm2187, %v2182, 0
        %v2192 = vsel %vm2187, %v2183, 0
        %v2195 = vsel %vm2187, %v2184, 0
        %v2198 = vsel %vm2187, %v2185, 0
        %v2201 = vsel %vm2187, %v2186, 0
        %vm2203 = vcmask 1043456
        %v2205 = vsel %vm2203, %v2154, 0
        %2207 = vmatprep.subr.bf16.mxu0 0
        %2208 = vmatpush1.bf16.msra.mxu0 %v2152
        %2209 = vmatprep.subr.bf16.mxu0 0
        %2210 = vmatpush1.bf16.msra.mxu0 %v2153
        %2211 = vmatprep.subr.bf16.mxu0 0
        %2212 = vmatpush1.bf16.msra.mxu0 %v2205
        %2213 = vmatprep.subr.bf16.mxu0 0
        %2214 = vmatpush1.bf16.msra.mxu0 0
        %2215 = vmatprep.subr.bf16.mxu0 0
        %2216 = vmatpush1.bf16.msra.mxu0 0
        %2217 = vmatprep.subr.bf16.mxu0 0
        %2218 = vmatpush1.bf16.msra.mxu0 0
        %2219 = vmatprep.subr.bf16.mxu0 0
        %2220 = vmatpush1.bf16.msra.mxu0 0
        %2221 = vmatprep.subr.bf16.mxu0 0
        %2222 = vmatpush1.bf16.msra.mxu0 0
        %2223 = vmatprep.subr.bf16.mxu0 0
        %2224 = vmatpush1.bf16.msra.mxu0 0
        %2225 = vmatprep.subr.bf16.mxu0 0
        %2226 = vmatpush1.bf16.msra.mxu0 0
        %2227 = vmatprep.subr.bf16.mxu0 0
        %2228 = vmatpush1.bf16.msra.mxu0 0
        %2229 = vmatprep.subr.bf16.mxu0 0
        %2230 = vmatpush1.bf16.msra.mxu0 0
        %2231 = vmatprep.subr.bf16.mxu0 0
        %2232 = vmatpush1.bf16.msra.mxu0 0
        %2233 = vmatprep.subr.bf16.mxu0 0
        %2234 = vmatpush1.bf16.msra.mxu0 0
        %2235 = vmatprep.subr.bf16.mxu0 0
        %2236 = vmatpush1.bf16.msra.mxu0 0
        %2237 = vmatprep.subr.bf16.mxu0 0
        %2238 = vmatpush1.bf16.msra.mxu0 0
        %2239 = vmatprep.mubr.bf16.mxu0 0
        %2240 = vmatmul.mubr.bf16.gmra.mrb[0].mxu0 %v2189
        %v2241 = vpop.f32.mrb[0].mxu0
        %v2242 = vadd.f32 0.0, %v2241
        %v2243 = vpop.f32.mrb[0].mxu0
        %v2244 = vpop.f32.mrb[0].mxu0
        %v2245 = vadd.f32 0.0, %v2244
        %v2246 = vpop.f32.mrb[0].mxu0
        %2247 = vmatprep.mubr.bf16.mxu0 0
        %2248 = vmatmul.mubr.bf16.gmra.mrb[0].mxu0 %v2192
        %v2249 = vpop.f32.mrb[0].mxu0
        %v2250 = vadd.f32 0.0, %v2249
        %v2251 = vpop.f32.mrb[0].mxu0
        %v2252 = vpop.f32.mrb[0].mxu0
        %v2253 = vadd.f32 0.0, %v2252
        %v2254 = vpop.f32.mrb[0].mxu0
        %2255 = vmatprep.mubr.bf16.mxu0 0
        %2256 = vmatmul.mubr.bf16.gmra.mrb[0].mxu0 %v2195
        %v2257 = vpop.f32.mrb[0].mxu0
        %v2258 = vadd.f32 0.0, %v2257
        %v2259 = vpop.f32.mrb[0].mxu0
        %v2260 = vpop.f32.mrb[0].mxu0
        %v2261 = vadd.f32 0.0, %v2260
        %v2262 = vpop.f32.mrb[0].mxu0
        %2263 = vmatprep.mubr.bf16.mxu0 0
        %2264 = vmatmul.mubr.bf16.gmra.mrb[0].mxu0 %v2198
        %v2265 = vpop.f32.mrb[0].mxu0
        %v2266 = vadd.f32 0.0, %v2265
        %v2267 = vpop.f32.mrb[0].mxu0
        %v2268 = vpop.f32.mrb[0].mxu0
        %v2269 = vadd.f32 0.0, %v2268
        %v2270 = vpop.f32.mrb[0].mxu0
        %2271 = vmatprep.mubr.bf16.mxu0 0
        %2272 = vmatmul.mubr.bf16.gmra.mrb[0].mxu0 %v2201
        %v2273 = vpop.f32.mrb[0].mxu0
        %v2274 = vadd.f32 0.0, %v2273
        %v2275 = vpop.f32.mrb[0].mxu0
        %v2276 = vpop.f32.mrb[0].mxu0
        %v2277 = vpop.f32.mrb[0].mxu0
        %2278 = vdwg.mxu0
        %v2279 = vpack.c.bf16 %v2245, %v2242
        %v2280 = vpack.c.bf16 %v2250, %v2250
        %v2281 = vld [vmem:[%s7] sm:$0xf]
        %v2282 = vld [vmem:[%s7 + $0x4] sm:$0xf]
        %v2283 = vld [vmem:[%s7 + $0x8] sm:$0xf]
        %v2284 = vld [vmem:[%s7 + $0xc] sm:$0xf]
        %v2285 = vld [vmem:[%s7 + $0x10] sm:$0xf]
        %v2286 = vld [vmem:[%s7 + $0x14] sm:$0xf]
        %v2287 = vld [vmem:[%s7 + $0x18] sm:$0xf]
        %v2288 = vld [vmem:[%s7 + $0x1c] sm:$0xf]
        %v2289 = vld [vmem:[%s7 + $0x20] sm:$0xf]
        %v2290 = vld [vmem:[%s7 + $0x24] sm:$0xf]
        %v2291 = vpack.c.bf16 %v2258, %v2253
        %v2292 = vpack.c.bf16 %v2261, %v2261
        %s2293 = scalar_lea.vmem %s7, 40
        %v2294 = vld [vmem:[%s2293] sm:$0xf]
        %v2295 = vld [vmem:[%s2293 + $0x4] sm:$0xf]
        %v2296 = vld [vmem:[%s2293 + $0x8] sm:$0xf]
        %v2297 = vld [vmem:[%s2293 + $0xc] sm:$0xf]
        %v2298 = vld [vmem:[%s2293 + $0x10] sm:$0xf]
        %v2299 = vld [vmem:[%s2293 + $0x14] sm:$0xf]
        %v2300 = vld [vmem:[%s2293 + $0x18] sm:$0xf]
        %v2301 = vld [vmem:[%s2293 + $0x1c] sm:$0xf]
        %v2302 = vld [vmem:[%s2293 + $0x20] sm:$0xf]
        %v2303 = vld [vmem:[%s2293 + $0x24] sm:$0xf]
        %v2314 = vunpack.c.l.b16 %v2294
        %v2315 = vunpack.c.l.b16 %v2295
        %v2316 = vunpack.c.l.b16 %v2296
        %v2317 = vunpack.c.l.b16 %v2297
        %v2318 = vunpack.c.l.b16 %v2298
        %v2319 = vunpack.c.l.b16 %v2299
        %v2320 = vunpack.c.l.b16 %v2300
        %v2321 = vunpack.c.l.b16 %v2301
        %v2322 = vunpack.c.l.b16 %v2302
        %v2323 = vunpack.c.l.b16 %v2303
        %v2324 = vpack.c.b16 %v2315, %v2314
        %v2325 = vpack.c.b16 %v2317, %v2316
        %v2326 = vpack.c.b16 %v2319, %v2318
        %v2327 = vpack.c.b16 %v2321, %v2320
        %v2328 = vpack.c.b16 %v2323, %v2322
        %v2335 = vsel %vm1622, %v2291, 0
        %v2338 = vsel %vm1622, %v2292, 0
        %2340 = vmatprep.subr.bf16.mxu0 0
        %2341 = vmatpush1.bf16.msra.mxu0 %v2324
        %2342 = vmatprep.subr.bf16.mxu0 0
        %2343 = vmatpush1.bf16.msra.mxu0 %v2325
        %2344 = vmatprep.subr.bf16.mxu0 0
        %2345 = vmatpush1.bf16.msra.mxu0 %v2326
        %2346 = vmatprep.subr.bf16.mxu0 0
        %2347 = vmatpush1.bf16.msra.mxu0 %v2327
        %2348 = vmatprep.subr.bf16.mxu0 0
        %2349 = vmatpush1.bf16.msra.mxu0 %v2328
        %2350 = vmatprep.subr.bf16.mxu0 0
        %2351 = vmatpush1.bf16.msra.mxu0 0
        %2352 = vmatprep.subr.bf16.mxu0 0
        %2353 = vmatpush1.bf16.msra.mxu0 0
        %2354 = vmatprep.subr.bf16.mxu0 0
        %2355 = vmatpush1.bf16.msra.mxu0 0
        %2356 = vmatprep.subr.bf16.mxu0 0
        %2357 = vmatpush1.bf16.msra.mxu0 0
        %2358 = vmatprep.subr.bf16.mxu0 0
        %2359 = vmatpush1.bf16.msra.mxu0 0
        %2360 = vmatprep.subr.bf16.mxu0 0
        %2361 = vmatpush1.bf16.msra.mxu0 0
        %2362 = vmatprep.subr.bf16.mxu0 0
        %2363 = vmatpush1.bf16.msra.mxu0 0
        %2364 = vmatprep.subr.bf16.mxu0 0
        %2365 = vmatpush1.bf16.msra.mxu0 0
        %2366 = vmatprep.subr.bf16.mxu0 0
        %2367 = vmatpush1.bf16.msra.mxu0 0
        %2368 = vmatprep.subr.bf16.mxu0 0
        %2369 = vmatpush1.bf16.msra.mxu0 0
        %2370 = vmatprep.subr.bf16.mxu0 0
        %2371 = vmatpush1.bf16.msra.mxu0 0
        %2372 = vmatprep.mubr.bf16.mxu0 0
        %2373 = vmatmul.mubr.bf16.gmra.mrb[0].mxu0 %v2335
        %v2374 = vpop.f32.mrb[0].mxu0
        %v2375 = vadd.f32 0.0, %v2374
        %v2376 = vpop.f32.mrb[0].mxu0
        %v2377 = vpop.f32.mrb[0].mxu0
        %v2378 = vadd.f32 0.0, %v2377
        %v2379 = vpop.f32.mrb[0].mxu0
        %2380 = vmatprep.mubr.bf16.mxu0 0
        %2381 = vmatmul.mubr.bf16.gmra.mrb[0].mxu0 %v2338
        %v2382 = vpop.f32.mrb[0].mxu0
        %v2383 = vadd.f32 0.0, %v2382
        %v2384 = vpop.f32.mrb[0].mxu0
        %v2385 = vpop.f32.mrb[0].mxu0
        %v2386 = vpop.f32.mrb[0].mxu0
        %2387 = vdwg.mxu0
        %v2398 = vunpack.c.l.b16 %v2281
        %v2399 = vunpack.c.l.b16 %v2282
        %v2400 = vunpack.c.l.b16 %v2283
        %v2401 = vunpack.c.l.b16 %v2284
        %v2402 = vunpack.c.l.b16 %v2285
        %v2403 = vunpack.c.l.b16 %v2286
        %v2404 = vunpack.c.l.b16 %v2287
        %v2405 = vunpack.c.l.b16 %v2288
        %v2406 = vunpack.c.l.b16 %v2289
        %v2407 = vunpack.c.l.b16 %v2290
        %v2408 = vpack.c.b16 %v2399, %v2398
        %v2409 = vpack.c.b16 %v2401, %v2400
        %v2410 = vpack.c.b16 %v2403, %v2402
        %v2411 = vpack.c.b16 %v2405, %v2404
        %v2412 = vpack.c.b16 %v2407, %v2406
        %v2419 = vsel %vm1622, %v2279, 0
        %v2422 = vsel %vm1622, %v2280, 0
        %2424 = vmatprep.subr.bf16.mxu0 0
        %2425 = vmatpush1.bf16.msra.mxu0 %v2408
        %2426 = vmatprep.subr.bf16.mxu0 0
        %2427 = vmatpush1.bf16.msra.mxu0 %v2409
        %2428 = vmatprep.subr.bf16.mxu0 0
        %2429 = vmatpush1.bf16.msra.mxu0 %v2410
        %2430 = vmatprep.subr.bf16.mxu0 0
        %2431 = vmatpush1.bf16.msra.mxu0 %v2411
        %2432 = vmatprep.subr.bf16.mxu0 0
        %2433 = vmatpush1.bf16.msra.mxu0 %v2412
        %2434 = vmatprep.subr.bf16.mxu0 0
        %2435 = vmatpush1.bf16.msra.mxu0 0
        %2436 = vmatprep.subr.bf16.mxu0 0
        %2437 = vmatpush1.bf16.msra.mxu0 0
        %2438 = vmatprep.subr.bf16.mxu0 0
        %2439 = vmatpush1.bf16.msra.mxu0 0
        %2440 = vmatprep.subr.bf16.mxu0 0
        %2441 = vmatpush1.bf16.msra.mxu0 0
        %2442 = vmatprep.subr.bf16.mxu0 0
        %2443 = vmatpush1.bf16.msra.mxu0 0
        %2444 = vmatprep.subr.bf16.mxu0 0
        %2445 = vmatpush1.bf16.msra.mxu0 0
        %2446 = vmatprep.subr.bf16.mxu0 0
        %2447 = vmatpush1.bf16.msra.mxu0 0
        %2448 = vmatprep.subr.bf16.mxu0 0
        %2449 = vmatpush1.bf16.msra.mxu0 0
        %2450 = vmatprep.subr.bf16.mxu0 0
        %2451 = vmatpush1.bf16.msra.mxu0 0
        %2452 = vmatprep.subr.bf16.mxu0 0
        %2453 = vmatpush1.bf16.msra.mxu0 0
        %2454 = vmatprep.subr.bf16.mxu0 0
        %2455 = vmatpush1.bf16.msra.mxu0 0
        %2456 = vmatprep.mubr.bf16.mxu0 0
        %2457 = vmatmul.mubr.bf16.gmra.mrb[0].mxu0 %v2419
        %v2458 = vpop.f32.mrb[0].mxu0
        %v2459 = vadd.f32 %v2375, %v2458
        %v2460 = vpop.f32.mrb[0].mxu0
        %v2461 = vpop.f32.mrb[0].mxu0
        %v2462 = vadd.f32 %v2378, %v2461
        %v2463 = vpop.f32.mrb[0].mxu0
        %2464 = vmatprep.mubr.bf16.mxu0 0
        %2465 = vmatmul.mubr.bf16.gmra.mrb[0].mxu0 %v2422
        %v2466 = vpop.f32.mrb[0].mxu0
        %v2467 = vadd.f32 %v2383, %v2466
        %v2468 = vpop.f32.mrb[0].mxu0
        %v2469 = vpop.f32.mrb[0].mxu0
        %v2470 = vpop.f32.mrb[0].mxu0
        %2471 = vdwg.mxu0
        %v2472 = vpack.c.bf16 %v2269, %v2266
        %v2473 = vpack.c.bf16 %v2274, %v2274
        %s2474 = scalar_lea.vmem %s7, 80
        %v2475 = vld [vmem:[%s2474] sm:$0xf]
        %v2476 = vld [vmem:[%s2474 + $0x4] sm:$0xf]
        %v2477 = vld [vmem:[%s2474 + $0x8] sm:$0xf]
        %v2478 = vld [vmem:[%s2474 + $0xc] sm:$0xf]
        %v2479 = vld [vmem:[%s2474 + $0x10] sm:$0xf]
        %v2480 = vld [vmem:[%s2474 + $0x14] sm:$0xf]
        %v2481 = vld [vmem:[%s2474 + $0x18] sm:$0xf]
        %v2482 = vld [vmem:[%s2474 + $0x1c] sm:$0xf]
        %v2483 = vld [vmem:[%s2474 + $0x20] sm:$0xf]
        %v2484 = vld [vmem:[%s2474 + $0x24] sm:$0xf]
        %v2495 = vunpack.c.l.b16 %v2475
        %v2496 = vunpack.c.l.b16 %v2476
        %v2497 = vunpack.c.l.b16 %v2477
        %v2498 = vunpack.c.l.b16 %v2478
        %v2499 = vunpack.c.l.b16 %v2479
        %v2500 = vunpack.c.l.b16 %v2480
        %v2501 = vunpack.c.l.b16 %v2481
        %v2502 = vunpack.c.l.b16 %v2482
        %v2503 = vunpack.c.l.b16 %v2483
        %v2504 = vunpack.c.l.b16 %v2484
        %v2505 = vpack.c.b16 %v2496, %v2495
        %v2506 = vpack.c.b16 %v2498, %v2497
        %v2507 = vpack.c.b16 %v2500, %v2499
        %v2508 = vpack.c.b16 %v2502, %v2501
        %v2509 = vpack.c.b16 %v2504, %v2503
        %v2516 = vsel %vm1622, %v2472, 0
        %v2519 = vsel %vm1622, %v2473, 0
        %2521 = vmatprep.subr.bf16.mxu0 0
        %2522 = vmatpush1.bf16.msra.mxu0 %v2505
        %2523 = vmatprep.subr.bf16.mxu0 0
        %2524 = vmatpush1.bf16.msra.mxu0 %v2506
        %2525 = vmatprep.subr.bf16.mxu0 0
        %2526 = vmatpush1.bf16.msra.mxu0 %v2507
        %2527 = vmatprep.subr.bf16.mxu0 0
        %2528 = vmatpush1.bf16.msra.mxu0 %v2508
        %2529 = vmatprep.subr.bf16.mxu0 0
        %2530 = vmatpush1.bf16.msra.mxu0 %v2509
        %2531 = vmatprep.subr.bf16.mxu0 0
        %2532 = vmatpush1.bf16.msra.mxu0 0
        %2533 = vmatprep.subr.bf16.mxu0 0
        %2534 = vmatpush1.bf16.msra.mxu0 0
        %2535 = vmatprep.subr.bf16.mxu0 0
        %2536 = vmatpush1.bf16.msra.mxu0 0
        %2537 = vmatprep.subr.bf16.mxu0 0
        %2538 = vmatpush1.bf16.msra.mxu0 0
        %2539 = vmatprep.subr.bf16.mxu0 0
        %2540 = vmatpush1.bf16.msra.mxu0 0
        %2541 = vmatprep.subr.bf16.mxu0 0
        %2542 = vmatpush1.bf16.msra.mxu0 0
        %2543 = vmatprep.subr.bf16.mxu0 0
        %2544 = vmatpush1.bf16.msra.mxu0 0
        %2545 = vmatprep.subr.bf16.mxu0 0
        %2546 = vmatpush1.bf16.msra.mxu0 0
        %2547 = vmatprep.subr.bf16.mxu0 0
        %2548 = vmatpush1.bf16.msra.mxu0 0
        %2549 = vmatprep.subr.bf16.mxu0 0
        %2550 = vmatpush1.bf16.msra.mxu0 0
        %2551 = vmatprep.subr.bf16.mxu0 0
        %2552 = vmatpush1.bf16.msra.mxu0 0
        %2553 = vmatprep.mubr.bf16.mxu0 0
        %2554 = vmatmul.mubr.bf16.gmra.mrb[0].mxu0 %v2516
        %v2555 = vpop.f32.mrb[0].mxu0
        %v2556 = vadd.f32 0.0, %v2555
        %v2557 = vpop.f32.mrb[0].mxu0
        %v2558 = vpop.f32.mrb[0].mxu0
        %v2559 = vadd.f32 0.0, %v2558
        %v2560 = vpop.f32.mrb[0].mxu0
        %2561 = vmatprep.mubr.bf16.mxu0 0
        %2562 = vmatmul.mubr.bf16.gmra.mrb[0].mxu0 %v2519
        %v2563 = vpop.f32.mrb[0].mxu0
        %v2564 = vadd.f32 0.0, %v2563
        %v2565 = vpop.f32.mrb[0].mxu0
        %v2566 = vpop.f32.mrb[0].mxu0
        %v2567 = vpop.f32.mrb[0].mxu0
        %2568 = vdwg.mxu0
        %v2569 = vadd.f32 %v2459, %v2556
        %v2570 = vadd.f32 %v2462, %v2559
        %v2571 = vadd.f32 %v2467, %v2564
        %v2572 = vld [vmem:[%s8] sm:$0x1]
        %v2574 = vlaneseq
        %v2575 = vshrl.u32 %v2574, 7
        %v2576 = vsub.s32 0, %v2575
        %v2577 = vrot.slane %v2572, %v2576
        %v2579 = vadd.f32 %v2569, %v2577
        %v2580 = vadd.f32 %v2570, %v2577
        %v2581 = vadd.f32 %v2571, %v2577
        %v2582 = vmax.f32 %v2579, 0.0
        %v2583 = vmax.f32 %v2580, 0.0
        %v2584 = vmax.f32 %v2581, 0.0
        %v2585 = vpack.c.bf16 %v2583, %v2582
        %v2586 = vpack.c.bf16 %v2584, %v2584
        %v2587 = vld [vmem:[%s9] sm:$0xf]
        %v2588 = vld [vmem:[%s9 + $0x4] sm:$0xf]
        %v2589 = vld [vmem:[%s9 + $0x8] sm:$0xf]
        %v2590 = vld [vmem:[%s9 + $0xc] sm:$0xf]
        %v2595 = vunpack.c.l.b16 %v2587
        %v2596 = vunpack.c.l.b16 %v2588
        %v2597 = vunpack.c.l.b16 %v2589
        %v2598 = vunpack.c.l.b16 %v2590
        %v2599 = vpack.c.b16 %v2596, %v2595
        %v2600 = vpack.c.b16 %v2598, %v2597
        %vm2601 = vcmask 195584
        %v2603 = vsel %vm2601, %v2599, 0
        %v2606 = vsel %vm2601, %v2600, 0
        %v2609 = vsel %vm2203, %v2586, 0
        %2611 = vmatprep.subr.bf16.mxu0 0
        %2612 = vmatpush1.bf16.msra.mxu0 %v2585
        %2613 = vmatprep.subr.bf16.mxu0 0
        %2614 = vmatpush1.bf16.msra.mxu0 %v2609
        %2615 = vmatprep.subr.bf16.mxu0 0
        %2616 = vmatpush1.bf16.msra.mxu0 0
        %2617 = vmatprep.subr.bf16.mxu0 0
        %2618 = vmatpush1.bf16.msra.mxu0 0
        %2619 = vmatprep.subr.bf16.mxu0 0
        %2620 = vmatpush1.bf16.msra.mxu0 0
        %2621 = vmatprep.subr.bf16.mxu0 0
        %2622 = vmatpush1.bf16.msra.mxu0 0
        %2623 = vmatprep.subr.bf16.mxu0 0
        %2624 = vmatpush1.bf16.msra.mxu0 0
        %2625 = vmatprep.subr.bf16.mxu0 0
        %2626 = vmatpush1.bf16.msra.mxu0 0
        %2627 = vmatprep.subr.bf16.mxu0 0
        %2628 = vmatpush1.bf16.msra.mxu0 0
        %2629 = vmatprep.subr.bf16.mxu0 0
        %2630 = vmatpush1.bf16.msra.mxu0 0
        %2631 = vmatprep.subr.bf16.mxu0 0
        %2632 = vmatpush1.bf16.msra.mxu0 0
        %2633 = vmatprep.subr.bf16.mxu0 0
        %2634 = vmatpush1.bf16.msra.mxu0 0
        %2635 = vmatprep.subr.bf16.mxu0 0
        %2636 = vmatpush1.bf16.msra.mxu0 0
        %2637 = vmatprep.subr.bf16.mxu0 0
        %2638 = vmatpush1.bf16.msra.mxu0 0
        %2639 = vmatprep.subr.bf16.mxu0 0
        %2640 = vmatpush1.bf16.msra.mxu0 0
        %2641 = vmatprep.subr.bf16.mxu0 0
        %2642 = vmatpush1.bf16.msra.mxu0 0
        %2643 = vmatprep.mubr.bf16.mxu0 0
        %2644 = vmatmul.mubr.bf16.gmra.mrb[0].mxu0 %v2603
        %v2645 = vpop.f32.mrb[0].mxu0
        %v2646 = vadd.f32 0.0, %v2645
        %v2647 = vpop.f32.mrb[0].mxu0
        %v2648 = vpop.f32.mrb[0].mxu0
        %v2649 = vadd.f32 0.0, %v2648
        %v2650 = vpop.f32.mrb[0].mxu0
        %2651 = vmatprep.mubr.bf16.mxu0 0
        %2652 = vmatmul.mubr.bf16.gmra.mrb[0].mxu0 %v2606
        %v2653 = vpop.f32.mrb[0].mxu0
        %v2654 = vadd.f32 0.0, %v2653
        %v2655 = vpop.f32.mrb[0].mxu0
        %v2656 = vpop.f32.mrb[0].mxu0
        %v2657 = vadd.f32 0.0, %v2656
        %v2658 = vpop.f32.mrb[0].mxu0
        %2659 = vdwg.mxu0
        %v2660 = vpack.c.bf16 %v2649, %v2646
        %v2661 = vld [vmem:[%s10] sm:$0xf]
        %v2662 = vld [vmem:[%s10 + $0x4] sm:$0xf]
        %v2663 = vld [vmem:[%s10 + $0x8] sm:$0xf]
        %v2667 = vunpack.c.l.b16 %v2661
        %v2668 = vunpack.c.l.b16 %v2662
        %v2669 = vunpack.c.l.b16 %v2663
        %v2670 = vpack.c.b16 %v2668, %v2667
        %v2671 = vpack.c.b16 %v2669, %v2669
        %v2674 = vsel %vm2601, %v2660, 0
        %v2677 = vsel %vm2203, %v2671, 0
        %2679 = vmatprep.subr.bf16.mxu0 0
        %2680 = vmatpush1.bf16.msra.mxu0 %v2670
        %2681 = vmatprep.subr.bf16.mxu0 0
        %2682 = vmatpush1.bf16.msra.mxu0 %v2677
        %2683 = vmatprep.subr.bf16.mxu0 0
        %2684 = vmatpush1.bf16.msra.mxu0 0
        %2685 = vmatprep.subr.bf16.mxu0 0
        %2686 = vmatpush1.bf16.msra.mxu0 0
        %2687 = vmatprep.subr.bf16.mxu0 0
        %2688 = vmatpush1.bf16.msra.mxu0 0
        %2689 = vmatprep.subr.bf16.mxu0 0
        %2690 = vmatpush1.bf16.msra.mxu0 0
        %2691 = vmatprep.subr.bf16.mxu0 0
        %2692 = vmatpush1.bf16.msra.mxu0 0
        %2693 = vmatprep.subr.bf16.mxu0 0
        %2694 = vmatpush1.bf16.msra.mxu0 0
        %2695 = vmatprep.subr.bf16.mxu0 0
        %2696 = vmatpush1.bf16.msra.mxu0 0
        %2697 = vmatprep.subr.bf16.mxu0 0
        %2698 = vmatpush1.bf16.msra.mxu0 0
        %2699 = vmatprep.subr.bf16.mxu0 0
        %2700 = vmatpush1.bf16.msra.mxu0 0
        %2701 = vmatprep.subr.bf16.mxu0 0
        %2702 = vmatpush1.bf16.msra.mxu0 0
        %2703 = vmatprep.subr.bf16.mxu0 0
        %2704 = vmatpush1.bf16.msra.mxu0 0
        %2705 = vmatprep.subr.bf16.mxu0 0
        %2706 = vmatpush1.bf16.msra.mxu0 0
        %2707 = vmatprep.subr.bf16.mxu0 0
        %2708 = vmatpush1.bf16.msra.mxu0 0
        %2709 = vmatprep.subr.bf16.mxu0 0
        %2710 = vmatpush1.bf16.msra.mxu0 0
        %2711 = vmatprep.mubr.bf16.mxu0 0
        %2712 = vmatmul.mubr.bf16.gmra.mrb[0].mxu0 %v2674
        %v2713 = vpop.f32.mrb[0].mxu0
        %v2714 = vadd.f32 0.0, %v2713
        %v2715 = vpop.f32.mrb[0].mxu0
        %v2716 = vpop.f32.mrb[0].mxu0
        %v2717 = vadd.f32 0.0, %v2716
        %v2718 = vpop.f32.mrb[0].mxu0
        %2719 = vdwg.mxu0
        %s2720 = scalar_lea.vmem %s10, 12
        %v2721 = vld [vmem:[%s2720] sm:$0xf]
        %v2722 = vld [vmem:[%s2720 + $0x4] sm:$0xf]
        %v2723 = vld [vmem:[%s2720 + $0x8] sm:$0xf]
        %v2727 = vunpack.c.l.b16 %v2721
        %v2728 = vunpack.c.l.b16 %v2722
        %v2729 = vunpack.c.l.b16 %v2723
        %v2730 = vpack.c.b16 %v2728, %v2727
        %v2731 = vpack.c.b16 %v2729, %v2729
        %v2734 = vsel %vm2203, %v2731, 0
        %2736 = vmatprep.subr.bf16.mxu0 0
        %2737 = vmatpush1.bf16.msra.mxu0 %v2730
        %2738 = vmatprep.subr.bf16.mxu0 0
        %2739 = vmatpush1.bf16.msra.mxu0 %v2734
        %2740 = vmatprep.subr.bf16.mxu0 0
        %2741 = vmatpush1.bf16.msra.mxu0 0
        %2742 = vmatprep.subr.bf16.mxu0 0
        %2743 = vmatpush1.bf16.msra.mxu0 0
        %2744 = vmatprep.subr.bf16.mxu0 0
        %2745 = vmatpush1.bf16.msra.mxu0 0
        %2746 = vmatprep.subr.bf16.mxu0 0
        %2747 = vmatpush1.bf16.msra.mxu0 0
        %2748 = vmatprep.subr.bf16.mxu0 0
        %2749 = vmatpush1.bf16.msra.mxu0 0
        %2750 = vmatprep.subr.bf16.mxu0 0
        %2751 = vmatpush1.bf16.msra.mxu0 0
        %2752 = vmatprep.subr.bf16.mxu0 0
        %2753 = vmatpush1.bf16.msra.mxu0 0
        %2754 = vmatprep.subr.bf16.mxu0 0
        %2755 = vmatpush1.bf16.msra.mxu0 0
        %2756 = vmatprep.subr.bf16.mxu0 0
        %2757 = vmatpush1.bf16.msra.mxu0 0
        %2758 = vmatprep.subr.bf16.mxu0 0
        %2759 = vmatpush1.bf16.msra.mxu0 0
        %2760 = vmatprep.subr.bf16.mxu0 0
        %2761 = vmatpush1.bf16.msra.mxu0 0
        %2762 = vmatprep.subr.bf16.mxu0 0
        %2763 = vmatpush1.bf16.msra.mxu0 0
        %2764 = vmatprep.subr.bf16.mxu0 0
        %2765 = vmatpush1.bf16.msra.mxu0 0
        %2766 = vmatprep.subr.bf16.mxu0 0
        %2767 = vmatpush1.bf16.msra.mxu0 0
        %2768 = vmatprep.mubr.bf16.mxu0 0
        %2769 = vmatmul.mubr.bf16.gmra.mrb[0].mxu0 %v2674
        %v2770 = vpop.f32.mrb[0].mxu0
        %v2771 = vadd.f32 0.0, %v2770
        %v2772 = vpop.f32.mrb[0].mxu0
        %v2773 = vpop.f32.mrb[0].mxu0
        %v2774 = vadd.f32 0.0, %v2773
        %v2775 = vpop.f32.mrb[0].mxu0
        %2776 = vdwg.mxu0
        %v2777 = vmax.f32 %v2714, %v2771
        %v2778 = vmax.f32 %v2717, %v2774
        %v2779 = vpack.c.bf16 %v2657, %v2654
        %v2781 = vsel %vm2601, %v2779, 0
        %2783 = vmatprep.subr.bf16.mxu0 0
        %2784 = vmatpush1.bf16.msra.mxu0 %v2670
        %2785 = vmatprep.subr.bf16.mxu0 0
        %2786 = vmatpush1.bf16.msra.mxu0 %v2677
        %2787 = vmatprep.subr.bf16.mxu0 0
        %2788 = vmatpush1.bf16.msra.mxu0 0
        %2789 = vmatprep.subr.bf16.mxu0 0
        %2790 = vmatpush1.bf16.msra.mxu0 0
        %2791 = vmatprep.subr.bf16.mxu0 0
        %2792 = vmatpush1.bf16.msra.mxu0 0
        %2793 = vmatprep.subr.bf16.mxu0 0
        %2794 = vmatpush1.bf16.msra.mxu0 0
        %2795 = vmatprep.subr.bf16.mxu0 0
        %2796 = vmatpush1.bf16.msra.mxu0 0
        %2797 = vmatprep.subr.bf16.mxu0 0
        %2798 = vmatpush1.bf16.msra.mxu0 0
        %2799 = vmatprep.subr.bf16.mxu0 0
        %2800 = vmatpush1.bf16.msra.mxu0 0
        %2801 = vmatprep.subr.bf16.mxu0 0
        %2802 = vmatpush1.bf16.msra.mxu0 0
        %2803 = vmatprep.subr.bf16.mxu0 0
        %2804 = vmatpush1.bf16.msra.mxu0 0
        %2805 = vmatprep.subr.bf16.mxu0 0
        %2806 = vmatpush1.bf16.msra.mxu0 0
        %2807 = vmatprep.subr.bf16.mxu0 0
        %2808 = vmatpush1.bf16.msra.mxu0 0
        %2809 = vmatprep.subr.bf16.mxu0 0
        %2810 = vmatpush1.bf16.msra.mxu0 0
        %2811 = vmatprep.subr.bf16.mxu0 0
        %2812 = vmatpush1.bf16.msra.mxu0 0
        %2813 = vmatprep.subr.bf16.mxu0 0
        %2814 = vmatpush1.bf16.msra.mxu0 0
        %2815 = vmatprep.mubr.bf16.mxu0 0
        %2816 = vmatmul.mubr.bf16.gmra.mrb[0].mxu0 %v2781
        %v2817 = vpop.f32.mrb[0].mxu0
        %v2818 = vadd.f32 0.0, %v2817
        %v2819 = vpop.f32.mrb[0].mxu0
        %v2820 = vpop.f32.mrb[0].mxu0
        %v2821 = vadd.f32 0.0, %v2820
        %v2822 = vpop.f32.mrb[0].mxu0
        %2823 = vdwg.mxu0
        %v2824 = vmax.f32 %v2777, %v2818
        %v2825 = vmax.f32 %v2778, %v2821
        %2826 = vmatprep.subr.bf16.mxu0 0
        %2827 = vmatpush1.bf16.msra.mxu0 %v2730
        %2828 = vmatprep.subr.bf16.mxu0 0
        %2829 = vmatpush1.bf16.msra.mxu0 %v2734
        %2830 = vmatprep.subr.bf16.mxu0 0
        %2831 = vmatpush1.bf16.msra.mxu0 0
        %2832 = vmatprep.subr.bf16.mxu0 0
        %2833 = vmatpush1.bf16.msra.mxu0 0
        %2834 = vmatprep.subr.bf16.mxu0 0
        %2835 = vmatpush1.bf16.msra.mxu0 0
        %2836 = vmatprep.subr.bf16.mxu0 0
        %2837 = vmatpush1.bf16.msra.mxu0 0
        %2838 = vmatprep.subr.bf16.mxu0 0
        %2839 = vmatpush1.bf16.msra.mxu0 0
        %2840 = vmatprep.subr.bf16.mxu0 0
        %2841 = vmatpush1.bf16.msra.mxu0 0
        %2842 = vmatprep.subr.bf16.mxu0 0
        %2843 = vmatpush1.bf16.msra.mxu0 0
        %2844 = vmatprep.subr.bf16.mxu0 0
        %2845 = vmatpush1.bf16.msra.mxu0 0
        %2846 = vmatprep.subr.bf16.mxu0 0
        %2847 = vmatpush1.bf16.msra.mxu0 0
        %2848 = vmatprep.subr.bf16.mxu0 0
        %2849 = vmatpush1.bf16.msra.mxu0 0
        %2850 = vmatprep.subr.bf16.mxu0 0
        %2851 = vmatpush1.bf16.msra.mxu0 0
        %2852 = vmatprep.subr.bf16.mxu0 0
        %2853 = vmatpush1.bf16.msra.mxu0 0
        %2854 = vmatprep.subr.bf16.mxu0 0
        %2855 = vmatpush1.bf16.msra.mxu0 0
        %2856 = vmatprep.subr.bf16.mxu0 0
        %2857 = vmatpush1.bf16.msra.mxu0 0
        %2858 = vmatprep.mubr.bf16.mxu0 0
        %2859 = vmatmul.mubr.bf16.gmra.mrb[0].mxu0 %v2781
        %v2860 = vpop.f32.mrb[0].mxu0
        %v2861 = vadd.f32 0.0, %v2860
        %v2862 = vpop.f32.mrb[0].mxu0
        %v2863 = vpop.f32.mrb[0].mxu0
        %v2864 = vadd.f32 0.0, %v2863
        %v2865 = vpop.f32.mrb[0].mxu0
        %2866 = vdwg.mxu0
        %v2867 = vmax.f32 %v2824, %v2861
        %v2868 = vmax.f32 %v2825, %v2864
        %v2869 = vpack.c.bf16 %v2868, %v2867
        %v2870 = vld [vmem:[%s11] sm:$0xf]
        %v2871 = vld [vmem:[%s11 + $0x4] sm:$0xf]
        %v2872 = vld [vmem:[%s11 + $0x8] sm:$0xf]
        %v2873 = vld [vmem:[%s11 + $0xc] sm:$0xf]
        %v2874 = vld [vmem:[%s11 + $0x10] sm:$0xf]
        %v2875 = vld [vmem:[%s11 + $0x14] sm:$0xf]
        %v2876 = vld [vmem:[%s11 + $0x18] sm:$0xf]
        %v2877 = vld [vmem:[%s11 + $0x1c] sm:$0xf]
        %v2878 = vld [vmem:[%s11 + $0x20] sm:$0xf]
        %v2879 = vld [vmem:[%s11 + $0x24] sm:$0xf]
        %v2880 = vld [vmem:[%s11 + $0x28] sm:$0xf]
        %v2881 = vld [vmem:[%s11 + $0x2c] sm:$0xf]
        %v2882 = vld [vmem:[%s11 + $0x30] sm:$0xf]
        %v2883 = vld [vmem:[%s11 + $0x34] sm:$0xf]
        %v2884 = vld [vmem:[%s11 + $0x38] sm:$0xf]
        %v2900 = vunpack.c.l.b16 %v2870
        %v2901 = vunpack.c.l.b16 %v2871
        %v2902 = vunpack.c.l.b16 %v2872
        %v2903 = vunpack.c.l.b16 %v2873
        %v2904 = vunpack.c.l.b16 %v2874
        %v2905 = vunpack.c.l.b16 %v2875
        %v2906 = vunpack.c.l.b16 %v2876
        %v2907 = vunpack.c.l.b16 %v2877
        %v2908 = vunpack.c.l.b16 %v2878
        %v2909 = vunpack.c.l.b16 %v2879
        %v2910 = vunpack.c.l.b16 %v2880
        %v2911 = vunpack.c.l.b16 %v2881
        %v2912 = vunpack.c.l.b16 %v2882
        %v2913 = vunpack.c.l.b16 %v2883
        %v2914 = vunpack.c.l.b16 %v2884
        %v2915 = vpack.c.b16 %v2901, %v2900
        %v2916 = vpack.c.b16 %v2903, %v2902
        %v2917 = vpack.c.b16 %v2905, %v2904
        %v2918 = vpack.c.b16 %v2907, %v2906
        %v2919 = vpack.c.b16 %v2909, %v2908
        %v2920 = vpack.c.b16 %v2911, %v2910
        %v2921 = vpack.c.b16 %v2913, %v2912
        %v2922 = vpack.c.b16 %v2914, %v2914
        %vm2923 = vcmask 130048
        %v2925 = vsel %vm2923, %v2915, 0
        %v2928 = vsel %vm2923, %v2916, 0
        %v2931 = vsel %vm2923, %v2917, 0
        %v2934 = vsel %vm2923, %v2918, 0
        %v2937 = vsel %vm2923, %v2919, 0
        %v2940 = vsel %vm2923, %v2920, 0
        %v2943 = vsel %vm2923, %v2921, 0
        %v2946 = vsel %vm2923, %v2922, 0
        %2948 = vmatprep.subr.bf16.mxu0 0
        %2949 = vmatpush1.bf16.msra.mxu0 %v2869
        %2950 = vmatprep.subr.bf16.mxu0 0
        %2951 = vmatpush1.bf16.msra.mxu0 0
        %2952 = vmatprep.subr.bf16.mxu0 0
        %2953 = vmatpush1.bf16.msra.mxu0 0
        %2954 = vmatprep.subr.bf16.mxu0 0
        %2955 = vmatpush1.bf16.msra.mxu0 0
        %2956 = vmatprep.subr.bf16.mxu0 0
        %2957 = vmatpush1.bf16.msra.mxu0 0
        %2958 = vmatprep.subr.bf16.mxu0 0
        %2959 = vmatpush1.bf16.msra.mxu0 0
        %2960 = vmatprep.subr.bf16.mxu0 0
        %2961 = vmatpush1.bf16.msra.mxu0 0
        %2962 = vmatprep.subr.bf16.mxu0 0
        %2963 = vmatpush1.bf16.msra.mxu0 0
        %2964 = vmatprep.subr.bf16.mxu0 0
        %2965 = vmatpush1.bf16.msra.mxu0 0
        %2966 = vmatprep.subr.bf16.mxu0 0
        %2967 = vmatpush1.bf16.msra.mxu0 0
        %2968 = vmatprep.subr.bf16.mxu0 0
        %2969 = vmatpush1.bf16.msra.mxu0 0
        %2970 = vmatprep.subr.bf16.mxu0 0
        %2971 = vmatpush1.bf16.msra.mxu0 0
        %2972 = vmatprep.subr.bf16.mxu0 0
        %2973 = vmatpush1.bf16.msra.mxu0 0
        %2974 = vmatprep.subr.bf16.mxu0 0
        %2975 = vmatpush1.bf16.msra.mxu0 0
        %2976 = vmatprep.subr.bf16.mxu0 0
        %2977 = vmatpush1.bf16.msra.mxu0 0
        %2978 = vmatprep.subr.bf16.mxu0 0
        %2979 = vmatpush1.bf16.msra.mxu0 0
        %2980 = vmatprep.mubr.bf16.mxu0 0
        %2981 = vmatmul.mubr.bf16.gmra.mrb[0].mxu0 %v2925
        %v2982 = vpop.f32.mrb[0].mxu0
        %v2983 = vadd.f32 0.0, %v2982
        %v2984 = vpop.f32.mrb[0].mxu0
        %v2985 = vpop.f32.mrb[0].mxu0
        %v2986 = vadd.f32 0.0, %v2985
        %v2987 = vpop.f32.mrb[0].mxu0
        %2988 = vmatprep.mubr.bf16.mxu0 0
        %2989 = vmatmul.mubr.bf16.gmra.mrb[0].mxu0 %v2928
        %v2990 = vpop.f32.mrb[0].mxu0
        %v2991 = vadd.f32 0.0, %v2990
        %v2992 = vpop.f32.mrb[0].mxu0
        %v2993 = vpop.f32.mrb[0].mxu0
        %v2994 = vadd.f32 0.0, %v2993
        %v2995 = vpop.f32.mrb[0].mxu0
        %2996 = vmatprep.mubr.bf16.mxu0 0
        %2997 = vmatmul.mubr.bf16.gmra.mrb[0].mxu0 %v2931
        %v2998 = vpop.f32.mrb[0].mxu0
        %v2999 = vadd.f32 0.0, %v2998
        %v3000 = vpop.f32.mrb[0].mxu0
        %v3001 = vpop.f32.mrb[0].mxu0
        %v3002 = vadd.f32 0.0, %v3001
        %v3003 = vpop.f32.mrb[0].mxu0
        %3004 = vmatprep.mubr.bf16.mxu0 0
        %3005 = vmatmul.mubr.bf16.gmra.mrb[0].mxu0 %v2934
        %v3006 = vpop.f32.mrb[0].mxu0
        %v3007 = vadd.f32 0.0, %v3006
        %v3008 = vpop.f32.mrb[0].mxu0
        %v3009 = vpop.f32.mrb[0].mxu0
        %v3010 = vadd.f32 0.0, %v3009
        %v3011 = vpop.f32.mrb[0].mxu0
        %3012 = vmatprep.mubr.bf16.mxu0 0
        %3013 = vmatmul.mubr.bf16.gmra.mrb[0].mxu0 %v2937
        %v3014 = vpop.f32.mrb[0].mxu0
        %v3015 = vadd.f32 0.0, %v3014
        %v3016 = vpop.f32.mrb[0].mxu0
        %v3017 = vpop.f32.mrb[0].mxu0
        %v3018 = vadd.f32 0.0, %v3017
        %v3019 = vpop.f32.mrb[0].mxu0
        %3020 = vmatprep.mubr.bf16.mxu0 0
        %3021 = vmatmul.mubr.bf16.gmra.mrb[0].mxu0 %v2940
        %v3022 = vpop.f32.mrb[0].mxu0
        %v3023 = vadd.f32 0.0, %v3022
        %v3024 = vpop.f32.mrb[0].mxu0
        %v3025 = vpop.f32.mrb[0].mxu0
        %v3026 = vadd.f32 0.0, %v3025
        %v3027 = vpop.f32.mrb[0].mxu0
        %3028 = vmatprep.mubr.bf16.mxu0 0
        %3029 = vmatmul.mubr.bf16.gmra.mrb[0].mxu0 %v2943
        %v3030 = vpop.f32.mrb[0].mxu0
        %v3031 = vadd.f32 0.0, %v3030
        %v3032 = vpop.f32.mrb[0].mxu0
        %v3033 = vpop.f32.mrb[0].mxu0
        %v3034 = vadd.f32 0.0, %v3033
        %v3035 = vpop.f32.mrb[0].mxu0
        %3036 = vmatprep.mubr.bf16.mxu0 0
        %3037 = vmatmul.mubr.bf16.gmra.mrb[0].mxu0 %v2946
        %v3038 = vpop.f32.mrb[0].mxu0
        %v3039 = vadd.f32 0.0, %v3038
        %v3040 = vpop.f32.mrb[0].mxu0
        %v3041 = vpop.f32.mrb[0].mxu0
        %v3042 = vpop.f32.mrb[0].mxu0
        %3043 = vdwg.mxu0
        %v3044 = vpack.c.bf16 %v2986, %v2983
        %v3045 = vpack.c.bf16 %v2994, %v2991
        %v3046 = vpack.c.bf16 %v2999, %v2999
        %v3047 = vld [vmem:[%s12] sm:$0xf]
        %v3048 = vld [vmem:[%s12 + $0x4] sm:$0xf]
        %v3049 = vpack.c.bf16 %v3007, %v3002
        %v3050 = vpack.c.bf16 %v3015, %v3010
        %v3051 = vpack.c.bf16 %v3018, %v3018
        %s3052 = scalar_lea.vmem %s12, 8
        %v3053 = vld [vmem:[%s3052] sm:$0xf]
        %v3054 = vld [vmem:[%s3052 + $0x4] sm:$0xf]
        %v3057 = vunpack.c.l.b16 %v3053
        %v3058 = vunpack.c.l.b16 %v3054
        %v3059 = vpack.c.b16 %v3058, %v3057
        %v3062 = vsel %vm2923, %v3049, 0
        %v3065 = vsel %vm2923, %v3050, 0
        %v3068 = vsel %vm2923, %v3051, 0
        %3070 = vmatprep.subr.bf16.mxu0 0
        %3071 = vmatpush1.bf16.msra.mxu0 %v3059
        %3072 = vmatprep.subr.bf16.mxu0 0
        %3073 = vmatpush1.bf16.msra.mxu0 0
        %3074 = vmatprep.subr.bf16.mxu0 0
        %3075 = vmatpush1.bf16.msra.mxu0 0
        %3076 = vmatprep.subr.bf16.mxu0 0
        %3077 = vmatpush1.bf16.msra.mxu0 0
        %3078 = vmatprep.subr.bf16.mxu0 0
        %3079 = vmatpush1.bf16.msra.mxu0 0
        %3080 = vmatprep.subr.bf16.mxu0 0
        %3081 = vmatpush1.bf16.msra.mxu0 0
        %3082 = vmatprep.subr.bf16.mxu0 0
        %3083 = vmatpush1.bf16.msra.mxu0 0
        %3084 = vmatprep.subr.bf16.mxu0 0
        %3085 = vmatpush1.bf16.msra.mxu0 0
        %3086 = vmatprep.subr.bf16.mxu0 0
        %3087 = vmatpush1.bf16.msra.mxu0 0
        %3088 = vmatprep.subr.bf16.mxu0 0
        %3089 = vmatpush1.bf16.msra.mxu0 0
        %3090 = vmatprep.subr.bf16.mxu0 0
        %3091 = vmatpush1.bf16.msra.mxu0 0
        %3092 = vmatprep.subr.bf16.mxu0 0
        %3093 = vmatpush1.bf16.msra.mxu0 0
        %3094 = vmatprep.subr.bf16.mxu0 0
        %3095 = vmatpush1.bf16.msra.mxu0 0
        %3096 = vmatprep.subr.bf16.mxu0 0
        %3097 = vmatpush1.bf16.msra.mxu0 0
        %3098 = vmatprep.subr.bf16.mxu0 0
        %3099 = vmatpush1.bf16.msra.mxu0 0
        %3100 = vmatprep.subr.bf16.mxu0 0
        %3101 = vmatpush1.bf16.msra.mxu0 0
        %3102 = vmatprep.mubr.bf16.mxu0 0
        %3103 = vmatmul.mubr.bf16.gmra.mrb[0].mxu0 %v3062
        %v3104 = vpop.f32.mrb[0].mxu0
        %v3105 = vadd.f32 0.0, %v3104
        %v3106 = vpop.f32.mrb[0].mxu0
        %v3107 = vpop.f32.mrb[0].mxu0
        %v3108 = vadd.f32 0.0, %v3107
        %v3109 = vpop.f32.mrb[0].mxu0
        %3110 = vmatprep.mubr.bf16.mxu0 0
        %3111 = vmatmul.mubr.bf16.gmra.mrb[0].mxu0 %v3065
        %v3112 = vpop.f32.mrb[0].mxu0
        %v3113 = vadd.f32 0.0, %v3112
        %v3114 = vpop.f32.mrb[0].mxu0
        %v3115 = vpop.f32.mrb[0].mxu0
        %v3116 = vadd.f32 0.0, %v3115
        %v3117 = vpop.f32.mrb[0].mxu0
        %3118 = vmatprep.mubr.bf16.mxu0 0
        %3119 = vmatmul.mubr.bf16.gmra.mrb[0].mxu0 %v3068
        %v3120 = vpop.f32.mrb[0].mxu0
        %v3121 = vadd.f32 0.0, %v3120
        %v3122 = vpop.f32.mrb[0].mxu0
        %v3123 = vpop.f32.mrb[0].mxu0
        %v3124 = vpop.f32.mrb[0].mxu0
        %3125 = vdwg.mxu0
        %v3128 = vunpack.c.l.b16 %v3047
        %v3129 = vunpack.c.l.b16 %v3048
        %v3130 = vpack.c.b16 %v3129, %v3128
        %v3133 = vsel %vm2923, %v3044, 0
        %v3136 = vsel %vm2923, %v3045, 0
        %v3139 = vsel %vm2923, %v3046, 0
        %3141 = vmatprep.subr.bf16.mxu0 0
        %3142 = vmatpush1.bf16.msra.mxu0 %v3130
        %3143 = vmatprep.subr.bf16.mxu0 0
        %3144 = vmatpush1.bf16.msra.mxu0 0
        %3145 = vmatprep.subr.bf16.mxu0 0
        %3146 = vmatpush1.bf16.msra.mxu0 0
        %3147 = vmatprep.subr.bf16.mxu0 0
        %3148 = vmatpush1.bf16.msra.mxu0 0
        %3149 = vmatprep.subr.bf16.mxu0 0
        %3150 = vmatpush1.bf16.msra.mxu0 0
        %3151 = vmatprep.subr.bf16.mxu0 0
        %3152 = vmatpush1.bf16.msra.mxu0 0
        %3153 = vmatprep.subr.bf16.mxu0 0
        %3154 = vmatpush1.bf16.msra.mxu0 0
        %3155 = vmatprep.subr.bf16.mxu0 0
        %3156 = vmatpush1.bf16.msra.mxu0 0
        %3157 = vmatprep.subr.bf16.mxu0 0
        %3158 = vmatpush1.bf16.msra.mxu0 0
        %3159 = vmatprep.subr.bf16.mxu0 0
        %3160 = vmatpush1.bf16.msra.mxu0 0
        %3161 = vmatprep.subr.bf16.mxu0 0
        %3162 = vmatpush1.bf16.msra.mxu0 0
        %3163 = vmatprep.subr.bf16.mxu0 0
        %3164 = vmatpush1.bf16.msra.mxu0 0
        %3165 = vmatprep.subr.bf16.mxu0 0
        %3166 = vmatpush1.bf16.msra.mxu0 0
        %3167 = vmatprep.subr.bf16.mxu0 0
        %3168 = vmatpush1.bf16.msra.mxu0 0
        %3169 = vmatprep.subr.bf16.mxu0 0
        %3170 = vmatpush1.bf16.msra.mxu0 0
        %3171 = vmatprep.subr.bf16.mxu0 0
        %3172 = vmatpush1.bf16.msra.mxu0 0
        %3173 = vmatprep.mubr.bf16.mxu0 0
        %3174 = vmatmul.mubr.bf16.gmra.mrb[0].mxu0 %v3133
        %v3175 = vpop.f32.mrb[0].mxu0
        %v3176 = vadd.f32 %v3105, %v3175
        %v3177 = vpop.f32.mrb[0].mxu0
        %v3178 = vpop.f32.mrb[0].mxu0
        %v3179 = vadd.f32 %v3108, %v3178
        %v3180 = vpop.f32.mrb[0].mxu0
        %3181 = vmatprep.mubr.bf16.mxu0 0
        %3182 = vmatmul.mubr.bf16.gmra.mrb[0].mxu0 %v3136
        %v3183 = vpop.f32.mrb[0].mxu0
        %v3184 = vadd.f32 %v3113, %v3183
        %v3185 = vpop.f32.mrb[0].mxu0
        %v3186 = vpop.f32.mrb[0].mxu0
        %v3187 = vadd.f32 %v3116, %v3186
        %v3188 = vpop.f32.mrb[0].mxu0
        %3189 = vmatprep.mubr.bf16.mxu0 0
        %3190 = vmatmul.mubr.bf16.gmra.mrb[0].mxu0 %v3139
        %v3191 = vpop.f32.mrb[0].mxu0
        %v3192 = vadd.f32 %v3121, %v3191
        %v3193 = vpop.f32.mrb[0].mxu0
        %v3194 = vpop.f32.mrb[0].mxu0
        %v3195 = vpop.f32.mrb[0].mxu0
        %3196 = vdwg.mxu0
        %v3197 = vpack.c.bf16 %v3026, %v3023
        %v3198 = vpack.c.bf16 %v3034, %v3031
        %v3199 = vpack.c.bf16 %v3039, %v3039
        %s3200 = scalar_lea.vmem %s12, 16
        %v3201 = vld [vmem:[%s3200] sm:$0xf]
        %v3202 = vld [vmem:[%s3200 + $0x4] sm:$0xf]
        %v3205 = vunpack.c.l.b16 %v3201
        %v3206 = vunpack.c.l.b16 %v3202
        %v3207 = vpack.c.b16 %v3206, %v3205
        %v3210 = vsel %vm2923, %v3197, 0
        %v3213 = vsel %vm2923, %v3198, 0
        %v3216 = vsel %vm2923, %v3199, 0
        %3218 = vmatprep.subr.bf16.mxu0 0
        %3219 = vmatpush1.bf16.msra.mxu0 %v3207
        %3220 = vmatprep.subr.bf16.mxu0 0
        %3221 = vmatpush1.bf16.msra.mxu0 0
        %3222 = vmatprep.subr.bf16.mxu0 0
        %3223 = vmatpush1.bf16.msra.mxu0 0
        %3224 = vmatprep.subr.bf16.mxu0 0
        %3225 = vmatpush1.bf16.msra.mxu0 0
        %3226 = vmatprep.subr.bf16.mxu0 0
        %3227 = vmatpush1.bf16.msra.mxu0 0
        %3228 = vmatprep.subr.bf16.mxu0 0
        %3229 = vmatpush1.bf16.msra.mxu0 0
        %3230 = vmatprep.subr.bf16.mxu0 0
        %3231 = vmatpush1.bf16.msra.mxu0 0
        %3232 = vmatprep.subr.bf16.mxu0 0
        %3233 = vmatpush1.bf16.msra.mxu0 0
        %3234 = vmatprep.subr.bf16.mxu0 0
        %3235 = vmatpush1.bf16.msra.mxu0 0
        %3236 = vmatprep.subr.bf16.mxu0 0
        %3237 = vmatpush1.bf16.msra.mxu0 0
        %3238 = vmatprep.subr.bf16.mxu0 0
        %3239 = vmatpush1.bf16.msra.mxu0 0
        %3240 = vmatprep.subr.bf16.mxu0 0
        %3241 = vmatpush1.bf16.msra.mxu0 0
        %3242 = vmatprep.subr.bf16.mxu0 0
        %3243 = vmatpush1.bf16.msra.mxu0 0
        %3244 = vmatprep.subr.bf16.mxu0 0
        %3245 = vmatpush1.bf16.msra.mxu0 0
        %3246 = vmatprep.subr.bf16.mxu0 0
        %3247 = vmatpush1.bf16.msra.mxu0 0
        %3248 = vmatprep.subr.bf16.mxu0 0
        %3249 = vmatpush1.bf16.msra.mxu0 0
        %3250 = vmatprep.mubr.bf16.mxu0 0
        %3251 = vmatmul.mubr.bf16.gmra.mrb[0].mxu0 %v3210
        %v3252 = vpop.f32.mrb[0].mxu0
        %v3253 = vadd.f32 0.0, %v3252
        %v3254 = vpop.f32.mrb[0].mxu0
        %v3255 = vpop.f32.mrb[0].mxu0
        %v3256 = vadd.f32 0.0, %v3255
        %v3257 = vpop.f32.mrb[0].mxu0
        %3258 = vmatprep.mubr.bf16.mxu0 0
        %3259 = vmatmul.mubr.bf16.gmra.mrb[0].mxu0 %v3213
        %v3260 = vpop.f32.mrb[0].mxu0
        %v3261 = vadd.f32 0.0, %v3260
        %v3262 = vpop.f32.mrb[0].mxu0
        %v3263 = vpop.f32.mrb[0].mxu0
        %v3264 = vadd.f32 0.0, %v3263
        %v3265 = vpop.f32.mrb[0].mxu0
        %3266 = vmatprep.mubr.bf16.mxu0 0
        %3267 = vmatmul.mubr.bf16.gmra.mrb[0].mxu0 %v3216
        %v3268 = vpop.f32.mrb[0].mxu0
        %v3269 = vadd.f32 0.0, %v3268
        %v3270 = vpop.f32.mrb[0].mxu0
        %v3271 = vpop.f32.mrb[0].mxu0
        %v3272 = vpop.f32.mrb[0].mxu0
        %3273 = vdwg.mxu0
        %v3274 = vadd.f32 %v3176, %v3253
        %v3275 = vadd.f32 %v3179, %v3256
        %v3276 = vadd.f32 %v3184, %v3261
        %v3277 = vadd.f32 %v3187, %v3264
        %v3278 = vadd.f32 %v3192, %v3269
        %v3279 = vld [vmem:[%s13] sm:$0x1]
        %v3281 = vlaneseq
        %v3282 = vshrl.u32 %v3281, 7
        %v3283 = vsub.s32 0, %v3282
        %v3284 = vrot.slane %v3279, %v3283
        %v3286 = vadd.f32 %v3274, %v3284
        %v3287 = vadd.f32 %v3275, %v3284
        %v3288 = vadd.f32 %v3276, %v3284
        %v3289 = vadd.f32 %v3277, %v3284
        %v3290 = vadd.f32 %v3278, %v3284
        %v3291 = vmax.f32 %v3286, 0.0
        %v3292 = vmax.f32 %v3287, 0.0
        %v3293 = vmax.f32 %v3288, 0.0
        %v3294 = vmax.f32 %v3289, 0.0
        %v3295 = vmax.f32 %v3290, 0.0
        %v3296 = vpack.c.bf16 %v3292, %v3291
        %v3297 = vpack.c.bf16 %v3294, %v3293
        %v3298 = vpack.c.bf16 %v3295, %v3295
        %v3299 = vld [vmem:[%s14] sm:$0xf]
        %v3300 = vld [vmem:[%s14 + $0x4] sm:$0xf]
        %v3301 = vld [vmem:[%s14 + $0x8] sm:$0xf]
        %v3302 = vld [vmem:[%s14 + $0xc] sm:$0xf]
        %v3303 = vld [vmem:[%s14 + $0x10] sm:$0xf]
        %v3304 = vld [vmem:[%s14 + $0x14] sm:$0xf]
        %v3305 = vld [vmem:[%s14 + $0x18] sm:$0xf]
        %v3306 = vld [vmem:[%s14 + $0x1c] sm:$0xf]
        %v3307 = vld [vmem:[%s14 + $0x20] sm:$0xf]
        %v3308 = vld [vmem:[%s14 + $0x24] sm:$0xf]
        %v3309 = vld [vmem:[%s14 + $0x28] sm:$0xf]
        %v3310 = vld [vmem:[%s14 + $0x2c] sm:$0xf]
        %v3311 = vld [vmem:[%s14 + $0x30] sm:$0xf]
        %v3312 = vld [vmem:[%s14 + $0x34] sm:$0xf]
        %v3313 = vld [vmem:[%s14 + $0x38] sm:$0xf]
        %v3314 = vld [vmem:[%s14 + $0x3c] sm:$0xf]
        %v3315 = vld [vmem:[%s14 + $0x40] sm:$0xf]
        %v3316 = vld [vmem:[%s14 + $0x44] sm:$0xf]
        %v3317 = vld [vmem:[%s14 + $0x48] sm:$0xf]
        %v3318 = vld [vmem:[%s14 + $0x4c] sm:$0xf]
        %v3319 = vld [vmem:[%s14 + $0x50] sm:$0xf]
        %v3320 = vld [vmem:[%s14 + $0x54] sm:$0xf]
        %v3321 = vld [vmem:[%s14 + $0x58] sm:$0xf]
        %v3322 = vld [vmem:[%s14 + $0x5c] sm:$0xf]
        %v3323 = vld [vmem:[%s14 + $0x60] sm:$0xf]
        %v3324 = vld [vmem:[%s14 + $0x64] sm:$0xf]
        %v3325 = vld [vmem:[%s14 + $0x68] sm:$0xf]
        %v3326 = vld [vmem:[%s14 + $0x6c] sm:$0xf]
        %v3327 = vld [vmem:[%s14 + $0x70] sm:$0xf]
        %v3328 = vld [vmem:[%s14 + $0x74] sm:$0xf]
        %v3329 = vld [vmem:[%s14 + $0x78] sm:$0xf]
        %v3330 = vld [vmem:[%s14 + $0x7c] sm:$0xf]
        %v3331 = vld [vmem:[%s14 + $0x80] sm:$0xf]
        %v3332 = vld [vmem:[%s14 + $0x84] sm:$0xf]
        %v3333 = vld [vmem:[%s14 + $0x88] sm:$0xf]
        %v3334 = vld [vmem:[%s14 + $0x8c] sm:$0xf]
        %v3335 = vld [vmem:[%s14 + $0x90] sm:$0xf]
        %v3336 = vld [vmem:[%s14 + $0x94] sm:$0xf]
        %v3337 = vld [vmem:[%s14 + $0x98] sm:$0xf]
        %v3338 = vld [vmem:[%s14 + $0x9c] sm:$0xf]
        %v3339 = vld [vmem:[%s14 + $0xa0] sm:$0xf]
        %v3340 = vld [vmem:[%s14 + $0xa4] sm:$0xf]
        %v3341 = vld [vmem:[%s14 + $0xa8] sm:$0xf]
        %v3342 = vld [vmem:[%s14 + $0xac] sm:$0xf]
        %v3343 = vld [vmem:[%s14 + $0xb0] sm:$0xf]
        %v3344 = vld [vmem:[%s14 + $0xb4] sm:$0xf]
        %v3345 = vld [vmem:[%s14 + $0xb8] sm:$0xf]
        %v3346 = vld [vmem:[%s14 + $0xbc] sm:$0xf]
        %v3347 = vld [vmem:[%s14 + $0xc0] sm:$0xf]
        %v3348 = vld [vmem:[%s14 + $0xc4] sm:$0xf]
        %v3349 = vld [vmem:[%s14 + $0xc8] sm:$0xf]
        %v3350 = vld [vmem:[%s14 + $0xcc] sm:$0xf]
        %v3351 = vld [vmem:[%s14 + $0xd0] sm:$0xf]
        %v3352 = vld [vmem:[%s14 + $0xd4] sm:$0xf]
        %v3353 = vld [vmem:[%s14 + $0xd8] sm:$0xf]
        %v3354 = vld [vmem:[%s14 + $0xdc] sm:$0xf]
        %v3355 = vld [vmem:[%s14 + $0xe0] sm:$0xf]
        %v3356 = vld [vmem:[%s14 + $0xe4] sm:$0xf]
        %v3357 = vld [vmem:[%s14 + $0xe8] sm:$0xf]
        %v3358 = vld [vmem:[%s14 + $0xec] sm:$0xf]
        %v3359 = vld [vmem:[%s14 + $0xf0] sm:$0xf]
        %v3360 = vld [vmem:[%s14 + $0xf4] sm:$0xf]
        %v3361 = vld [vmem:[%s14 + $0xf8] sm:$0xf]
        %v3362 = vld [vmem:[%s14 + $0xfc] sm:$0xf]
        %v3363 = vld [vmem:[%s14 + $0x100] sm:$0xf]
        %v3364 = vld [vmem:[%s14 + $0x104] sm:$0xf]
        %v3365 = vld [vmem:[%s14 + $0x108] sm:$0xf]
        %v3366 = vld [vmem:[%s14 + $0x10c] sm:$0xf]
        %v3367 = vld [vmem:[%s14 + $0x110] sm:$0xf]
        %v3368 = vld [vmem:[%s14 + $0x114] sm:$0xf]
        %v3369 = vld [vmem:[%s14 + $0x118] sm:$0xf]
        %v3370 = vld [vmem:[%s14 + $0x11c] sm:$0xf]
        %v3371 = vld [vmem:[%s14 + $0x120] sm:$0xf]
        %v3372 = vld [vmem:[%s14 + $0x124] sm:$0xf]
        %v3373 = vld [vmem:[%s14 + $0x128] sm:$0xf]
        %v3449 = vunpack.c.l.b16 %v3299
        %v3450 = vunpack.c.l.b16 %v3300
        %v3451 = vunpack.c.l.b16 %v3301
        %v3452 = vunpack.c.l.b16 %v3302
        %v3453 = vunpack.c.l.b16 %v3303
        %v3454 = vunpack.c.l.b16 %v3304
        %v3455 = vunpack.c.l.b16 %v3305
        %v3456 = vunpack.c.l.b16 %v3306
        %v3457 = vunpack.c.l.b16 %v3307
        %v3458 = vunpack.c.l.b16 %v3308
        %v3459 = vunpack.c.l.b16 %v3309
        %v3460 = vunpack.c.l.b16 %v3310
        %v3461 = vunpack.c.l.b16 %v3311
        %v3462 = vunpack.c.l.b16 %v3312
        %v3463 = vunpack.c.l.b16 %v3313
        %v3464 = vunpack.c.l.b16 %v3314
        %v3465 = vunpack.c.l.b16 %v3315
        %v3466 = vunpack.c.l.b16 %v3316
        %v3467 = vunpack.c.l.b16 %v3317
        %v3468 = vunpack.c.l.b16 %v3318
        %v3469 = vunpack.c.l.b16 %v3319
        %v3470 = vunpack.c.l.b16 %v3320
        %v3471 = vunpack.c.l.b16 %v3321
        %v3472 = vunpack.c.l.b16 %v3322
        %v3473 = vunpack.c.l.b16 %v3323
        %v3474 = vunpack.c.l.b16 %v3324
        %v3475 = vunpack.c.l.b16 %v3325
        %v3476 = vunpack.c.l.b16 %v3326
        %v3477 = vunpack.c.l.b16 %v3327
        %v3478 = vunpack.c.l.b16 %v3328
        %v3479 = vunpack.c.l.b16 %v3329
        %v3480 = vunpack.c.l.b16 %v3330
        %v3481 = vunpack.c.l.b16 %v3331
        %v3482 = vunpack.c.l.b16 %v3332
        %v3483 = vunpack.c.l.b16 %v3333
        %v3484 = vunpack.c.l.b16 %v3334
        %v3485 = vunpack.c.l.b16 %v3335
        %v3486 = vunpack.c.l.b16 %v3336
        %v3487 = vunpack.c.l.b16 %v3337
        %v3488 = vunpack.c.l.b16 %v3338
        %v3489 = vunpack.c.l.b16 %v3339
        %v3490 = vunpack.c.l.b16 %v3340
        %v3491 = vunpack.c.l.b16 %v3341
        %v3492 = vunpack.c.l.b16 %v3342
        %v3493 = vunpack.c.l.b16 %v3343
        %v3494 = vunpack.c.l.b16 %v3344
        %v3495 = vunpack.c.l.b16 %v3345
        %v3496 = vunpack.c.l.b16 %v3346
        %v3497 = vunpack.c.l.b16 %v3347
        %v3498 = vunpack.c.l.b16 %v3348
        %v3499 = vunpack.c.l.b16 %v3349
        %v3500 = vunpack.c.l.b16 %v3350
        %v3501 = vunpack.c.l.b16 %v3351
        %v3502 = vunpack.c.l.b16 %v3352
        %v3503 = vunpack.c.l.b16 %v3353
        %v3504 = vunpack.c.l.b16 %v3354
        %v3505 = vunpack.c.l.b16 %v3355
        %v3506 = vunpack.c.l.b16 %v3356
        %v3507 = vunpack.c.l.b16 %v3357
        %v3508 = vunpack.c.l.b16 %v3358
        %v3509 = vunpack.c.l.b16 %v3359
        %v3510 = vunpack.c.l.b16 %v3360
        %v3511 = vunpack.c.l.b16 %v3361
        %v3512 = vunpack.c.l.b16 %v3362
        %v3513 = vunpack.c.l.b16 %v3363
        %v3514 = vunpack.c.l.b16 %v3364
        %v3515 = vunpack.c.l.b16 %v3365
        %v3516 = vunpack.c.l.b16 %v3366
        %v3517 = vunpack.c.l.b16 %v3367
        %v3518 = vunpack.c.l.b16 %v3368
        %v3519 = vunpack.c.l.b16 %v3369
        %v3520 = vunpack.c.l.b16 %v3370
        %v3521 = vunpack.c.l.b16 %v3371
        %v3522 = vunpack.c.l.b16 %v3372
        %v3523 = vunpack.c.l.b16 %v3373
        %v3524 = vpack.c.b16 %v3450, %v3449
        %v3525 = vpack.c.b16 %v3452, %v3451
        %v3526 = vpack.c.b16 %v3454, %v3453
        %v3527 = vpack.c.b16 %v3456, %v3455
        %v3528 = vpack.c.b16 %v3458, %v3457
        %v3529 = vpack.c.b16 %v3460, %v3459
        %v3530 = vpack.c.b16 %v3462, %v3461
        %v3531 = vpack.c.b16 %v3464, %v3463
        %v3532 = vpack.c.b16 %v3466, %v3465
        %v3533 = vpack.c.b16 %v3468, %v3467
        %v3534 = vpack.c.b16 %v3470, %v3469
        %v3535 = vpack.c.b16 %v3472, %v3471
        %v3536 = vpack.c.b16 %v3474, %v3473
        %v3537 = vpack.c.b16 %v3476, %v3475
        %v3538 = vpack.c.b16 %v3478, %v3477
        %v3539 = vpack.c.b16 %v3480, %v3479
        %v3540 = vpack.c.b16 %v3482, %v3481
        %v3541 = vpack.c.b16 %v3484, %v3483
        %v3542 = vpack.c.b16 %v3486, %v3485
        %v3543 = vpack.c.b16 %v3488, %v3487
        %v3544 = vpack.c.b16 %v3490, %v3489
        %v3545 = vpack.c.b16 %v3492, %v3491
        %v3546 = vpack.c.b16 %v3494, %v3493
        %v3547 = vpack.c.b16 %v3496, %v3495
        %v3548 = vpack.c.b16 %v3498, %v3497
        %v3549 = vpack.c.b16 %v3500, %v3499
        %v3550 = vpack.c.b16 %v3502, %v3501
        %v3551 = vpack.c.b16 %v3504, %v3503
        %v3552 = vpack.c.b16 %v3506, %v3505
        %v3553 = vpack.c.b16 %v3508, %v3507
        %v3554 = vpack.c.b16 %v3510, %v3509
        %v3555 = vpack.c.b16 %v3512, %v3511
        %v3556 = vpack.c.b16 %v3514, %v3513
        %v3557 = vpack.c.b16 %v3516, %v3515
        %v3558 = vpack.c.b16 %v3518, %v3517
        %v3559 = vpack.c.b16 %v3520, %v3519
        %v3560 = vpack.c.b16 %v3522, %v3521
        %v3561 = vpack.c.b16 %v3523, %v3523
        %v3563 = vsel %vm2187, %v3524, 0
        %v3566 = vsel %vm2187, %v3525, 0
        %v3569 = vsel %vm2187, %v3526, 0
        %v3572 = vsel %vm2187, %v3527, 0
        %v3575 = vsel %vm2187, %v3528, 0
        %v3578 = vsel %vm2187, %v3529, 0
        %v3581 = vsel %vm2187, %v3530, 0
        %v3584 = vsel %vm2187, %v3531, 0
        %v3587 = vsel %vm2187, %v3532, 0
        %v3590 = vsel %vm2187, %v3533, 0
        %v3593 = vsel %vm2187, %v3534, 0
        %v3596 = vsel %vm2187, %v3535, 0
        %v3599 = vsel %vm2187, %v3536, 0
        %v3602 = vsel %vm2187, %v3537, 0
        %v3605 = vsel %vm2187, %v3538, 0
        %v3608 = vsel %vm2187, %v3539, 0
        %v3611 = vsel %vm2187, %v3540, 0
        %v3614 = vsel %vm2187, %v3541, 0
        %v3617 = vsel %vm2187, %v3542, 0
        %v3620 = vsel %vm2187, %v3543, 0
        %v3623 = vsel %vm2187, %v3544, 0
        %v3626 = vsel %vm2187, %v3545, 0
        %v3629 = vsel %vm2187, %v3546, 0
        %v3632 = vsel %vm2187, %v3547, 0
        %v3635 = vsel %vm2187, %v3548, 0
        %v3638 = vsel %vm2187, %v3549, 0
        %v3641 = vsel %vm2187, %v3550, 0
        %v3644 = vsel %vm2187, %v3551, 0
        %v3647 = vsel %vm2187, %v3552, 0
        %v3650 = vsel %vm2187, %v3553, 0
        %v3653 = vsel %vm2187, %v3554, 0
        %v3656 = vsel %vm2187, %v3555, 0
        %v3659 = vsel %vm2187, %v3556, 0
        %v3662 = vsel %vm2187, %v3557, 0
        %v3665 = vsel %vm2187, %v3558, 0
        %v3668 = vsel %vm2187, %v3559, 0
        %v3671 = vsel %vm2187, %v3560, 0
        %v3674 = vsel %vm2187, %v3561, 0
        %v3677 = vsel %vm2203, %v3298, 0
        %3679 = vmatprep.subr.bf16.mxu0 0
        %3680 = vmatpush1.bf16.msra.mxu0 %v3296
        %3681 = vmatprep.subr.bf16.mxu0 0
        %3682 = vmatpush1.bf16.msra.mxu0 %v3297
        %3683 = vmatprep.subr.bf16.mxu0 0
        %3684 = vmatpush1.bf16.msra.mxu0 %v3677
        %3685 = vmatprep.subr.bf16.mxu0 0
        %3686 = vmatpush1.bf16.msra.mxu0 0
        %3687 = vmatprep.subr.bf16.mxu0 0
        %3688 = vmatpush1.bf16.msra.mxu0 0
        %3689 = vmatprep.subr.bf16.mxu0 0
        %3690 = vmatpush1.bf16.msra.mxu0 0
        %3691 = vmatprep.subr.bf16.mxu0 0
        %3692 = vmatpush1.bf16.msra.mxu0 0
        %3693 = vmatprep.subr.bf16.mxu0 0
        %3694 = vmatpush1.bf16.msra.mxu0 0
        %3695 = vmatprep.subr.bf16.mxu0 0
        %3696 = vmatpush1.bf16.msra.mxu0 0
        %3697 = vmatprep.subr.bf16.mxu0 0
        %3698 = vmatpush1.bf16.msra.mxu0 0
        %3699 = vmatprep.subr.bf16.mxu0 0
        %3700 = vmatpush1.bf16.msra.mxu0 0
        %3701 = vmatprep.subr.bf16.mxu0 0
        %3702 = vmatpush1.bf16.msra.mxu0 0
        %3703 = vmatprep.subr.bf16.mxu0 0
        %3704 = vmatpush1.bf16.msra.mxu0 0
        %3705 = vmatprep.subr.bf16.mxu0 0
        %3706 = vmatpush1.bf16.msra.mxu0 0
        %3707 = vmatprep.subr.bf16.mxu0 0
        %3708 = vmatpush1.bf16.msra.mxu0 0
        %3709 = vmatprep.subr.bf16.mxu0 0
        %3710 = vmatpush1.bf16.msra.mxu0 0
        %3711 = vmatprep.mubr.bf16.mxu0 0
        %3712 = vmatmul.mubr.bf16.gmra.mrb[0].mxu0 %v3563
        %v3713 = vpop.f32.mrb[0].mxu0
        %v3714 = vadd.f32 0.0, %v3713
        %v3715 = vpop.f32.mrb[0].mxu0
        %v3716 = vpop.f32.mrb[0].mxu0
        %v3717 = vadd.f32 0.0, %v3716
        %v3718 = vpop.f32.mrb[0].mxu0
        %3719 = vmatprep.mubr.bf16.mxu0 0
        %3720 = vmatmul.mubr.bf16.gmra.mrb[0].mxu0 %v3566
        %v3721 = vpop.f32.mrb[0].mxu0
        %v3722 = vadd.f32 0.0, %v3721
        %v3723 = vpop.f32.mrb[0].mxu0
        %v3724 = vpop.f32.mrb[0].mxu0
        %v3725 = vadd.f32 0.0, %v3724
        %v3726 = vpop.f32.mrb[0].mxu0
        %3727 = vmatprep.mubr.bf16.mxu0 0
        %3728 = vmatmul.mubr.bf16.gmra.mrb[0].mxu0 %v3569
        %v3729 = vpop.f32.mrb[0].mxu0
        %v3730 = vadd.f32 0.0, %v3729
        %v3731 = vpop.f32.mrb[0].mxu0
        %v3732 = vpop.f32.mrb[0].mxu0
        %v3733 = vadd.f32 0.0, %v3732
        %v3734 = vpop.f32.mrb[0].mxu0
        %3735 = vmatprep.mubr.bf16.mxu0 0
        %3736 = vmatmul.mubr.bf16.gmra.mrb[0].mxu0 %v3572
        %v3737 = vpop.f32.mrb[0].mxu0
        %v3738 = vadd.f32 0.0, %v3737
        %v3739 = vpop.f32.mrb[0].mxu0
        %v3740 = vpop.f32.mrb[0].mxu0
        %v3741 = vadd.f32 0.0, %v3740
        %v3742 = vpop.f32.mrb[0].mxu0
        %3743 = vmatprep.mubr.bf16.mxu0 0
        %3744 = vmatmul.mubr.bf16.gmra.mrb[0].mxu0 %v3575
        %v3745 = vpop.f32.mrb[0].mxu0
        %v3746 = vadd.f32 0.0, %v3745
        %v3747 = vpop.f32.mrb[0].mxu0
        %v3748 = vpop.f32.mrb[0].mxu0
        %v3749 = vadd.f32 0.0, %v3748
        %v3750 = vpop.f32.mrb[0].mxu0
        %3751 = vmatprep.mubr.bf16.mxu0 0
        %3752 = vmatmul.mubr.bf16.gmra.mrb[0].mxu0 %v3578
        %v3753 = vpop.f32.mrb[0].mxu0
        %v3754 = vadd.f32 0.0, %v3753
        %v3755 = vpop.f32.mrb[0].mxu0
        %v3756 = vpop.f32.mrb[0].mxu0
        %v3757 = vadd.f32 0.0, %v3756
        %v3758 = vpop.f32.mrb[0].mxu0
        %3759 = vmatprep.mubr.bf16.mxu0 0
        %3760 = vmatmul.mubr.bf16.gmra.mrb[0].mxu0 %v3581
        %v3761 = vpop.f32.mrb[0].mxu0
        %v3762 = vadd.f32 0.0, %v3761
        %v3763 = vpop.f32.mrb[0].mxu0
        %v3764 = vpop.f32.mrb[0].mxu0
        %v3765 = vadd.f32 0.0, %v3764
        %v3766 = vpop.f32.mrb[0].mxu0
        %3767 = vmatprep.mubr.bf16.mxu0 0
        %3768 = vmatmul.mubr.bf16.gmra.mrb[0].mxu0 %v3584
        %v3769 = vpop.f32.mrb[0].mxu0
        %v3770 = vadd.f32 0.0, %v3769
        %v3771 = vpop.f32.mrb[0].mxu0
        %v3772 = vpop.f32.mrb[0].mxu0
        %v3773 = vadd.f32 0.0, %v3772
        %v3774 = vpop.f32.mrb[0].mxu0
        %3775 = vmatprep.mubr.bf16.mxu0 0
        %3776 = vmatmul.mubr.bf16.gmra.mrb[0].mxu0 %v3587
        %v3777 = vpop.f32.mrb[0].mxu0
        %v3778 = vadd.f32 0.0, %v3777
        %v3779 = vpop.f32.mrb[0].mxu0
        %v3780 = vpop.f32.mrb[0].mxu0
        %v3781 = vadd.f32 0.0, %v3780
        %v3782 = vpop.f32.mrb[0].mxu0
        %3783 = vmatprep.mubr.bf16.mxu0 0
        %3784 = vmatmul.mubr.bf16.gmra.mrb[0].mxu0 %v3590
        %v3785 = vpop.f32.mrb[0].mxu0
        %v3786 = vadd.f32 0.0, %v3785
        %v3787 = vpop.f32.mrb[0].mxu0
        %v3788 = vpop.f32.mrb[0].mxu0
        %v3789 = vadd.f32 0.0, %v3788
        %v3790 = vpop.f32.mrb[0].mxu0
        %3791 = vmatprep.mubr.bf16.mxu0 0
        %3792 = vmatmul.mubr.bf16.gmra.mrb[0].mxu0 %v3593
        %v3793 = vpop.f32.mrb[0].mxu0
        %v3794 = vadd.f32 0.0, %v3793
        %v3795 = vpop.f32.mrb[0].mxu0
        %v3796 = vpop.f32.mrb[0].mxu0
        %v3797 = vadd.f32 0.0, %v3796
        %v3798 = vpop.f32.mrb[0].mxu0
        %3799 = vmatprep.mubr.bf16.mxu0 0
        %3800 = vmatmul.mubr.bf16.gmra.mrb[0].mxu0 %v3596
        %v3801 = vpop.f32.mrb[0].mxu0
        %v3802 = vadd.f32 0.0, %v3801
        %v3803 = vpop.f32.mrb[0].mxu0
        %v3804 = vpop.f32.mrb[0].mxu0
        %v3805 = vadd.f32 0.0, %v3804
        %v3806 = vpop.f32.mrb[0].mxu0
        %3807 = vmatprep.mubr.bf16.mxu0 0
        %3808 = vmatmul.mubr.bf16.gmra.mrb[0].mxu0 %v3599
        %v3809 = vpop.f32.mrb[0].mxu0
        %v3810 = vadd.f32 0.0, %v3809
        %v3811 = vpop.f32.mrb[0].mxu0
        %v3812 = vpop.f32.mrb[0].mxu0
        %v3813 = vadd.f32 0.0, %v3812
        %v3814 = vpop.f32.mrb[0].mxu0
        %3815 = vmatprep.mubr.bf16.mxu0 0
        %3816 = vmatmul.mubr.bf16.gmra.mrb[0].mxu0 %v3602
        %v3817 = vpop.f32.mrb[0].mxu0
        %v3818 = vadd.f32 0.0, %v3817
        %v3819 = vpop.f32.mrb[0].mxu0
        %v3820 = vpop.f32.mrb[0].mxu0
        %v3821 = vadd.f32 0.0, %v3820
        %v3822 = vpop.f32.mrb[0].mxu0
        %3823 = vmatprep.mubr.bf16.mxu0 0
        %3824 = vmatmul.mubr.bf16.gmra.mrb[0].mxu0 %v3605
        %v3825 = vpop.f32.mrb[0].mxu0
        %v3826 = vadd.f32 0.0, %v3825
        %v3827 = vpop.f32.mrb[0].mxu0
        %v3828 = vpop.f32.mrb[0].mxu0
        %v3829 = vadd.f32 0.0, %v3828
        %v3830 = vpop.f32.mrb[0].mxu0
        %3831 = vmatprep.mubr.bf16.mxu0 0
        %3832 = vmatmul.mubr.bf16.gmra.mrb[0].mxu0 %v3608
        %v3833 = vpop.f32.mrb[0].mxu0
        %v3834 = vadd.f32 0.0, %v3833
        %v3835 = vpop.f32.mrb[0].mxu0
        %v3836 = vpop.f32.mrb[0].mxu0
        %v3837 = vadd.f32 0.0, %v3836
        %v3838 = vpop.f32.mrb[0].mxu0
        %3839 = vmatprep.mubr.bf16.mxu0 0
        %3840 = vmatmul.mubr.bf16.gmra.mrb[0].mxu0 %v3611
        %v3841 = vpop.f32.mrb[0].mxu0
        %v3842 = vadd.f32 0.0, %v3841
        %v3843 = vpop.f32.mrb[0].mxu0
        %v3844 = vpop.f32.mrb[0].mxu0
        %v3845 = vadd.f32 0.0, %v3844
        %v3846 = vpop.f32.mrb[0].mxu0
        %3847 = vmatprep.mubr.bf16.mxu0 0
        %3848 = vmatmul.mubr.bf16.gmra.mrb[0].mxu0 %v3614
        %v3849 = vpop.f32.mrb[0].mxu0
        %v3850 = vadd.f32 0.0, %v3849
        %v3851 = vpop.f32.mrb[0].mxu0
        %v3852 = vpop.f32.mrb[0].mxu0
        %v3853 = vadd.f32 0.0, %v3852
        %v3854 = vpop.f32.mrb[0].mxu0
        %3855 = vmatprep.mubr.bf16.mxu0 0
        %3856 = vmatmul.mubr.bf16.gmra.mrb[0].mxu0 %v3617
        %v3857 = vpop.f32.mrb[0].mxu0
        %v3858 = vadd.f32 0.0, %v3857
        %v3859 = vpop.f32.mrb[0].mxu0
        %v3860 = vpop.f32.mrb[0].mxu0
        %v3861 = vadd.f32 0.0, %v3860
        %v3862 = vpop.f32.mrb[0].mxu0
        %3863 = vmatprep.mubr.bf16.mxu0 0
        %3864 = vmatmul.mubr.bf16.gmra.mrb[0].mxu0 %v3620
        %v3865 = vpop.f32.mrb[0].mxu0
        %v3866 = vadd.f32 0.0, %v3865
        %v3867 = vpop.f32.mrb[0].mxu0
        %v3868 = vpop.f32.mrb[0].mxu0
        %v3869 = vadd.f32 0.0, %v3868
        %v3870 = vpop.f32.mrb[0].mxu0
        %3871 = vmatprep.mubr.bf16.mxu0 0
        %3872 = vmatmul.mubr.bf16.gmra.mrb[0].mxu0 %v3623
        %v3873 = vpop.f32.mrb[0].mxu0
        %v3874 = vadd.f32 0.0, %v3873
        %v3875 = vpop.f32.mrb[0].mxu0
        %v3876 = vpop.f32.mrb[0].mxu0
        %v3877 = vadd.f32 0.0, %v3876
        %v3878 = vpop.f32.mrb[0].mxu0
        %3879 = vmatprep.mubr.bf16.mxu0 0
        %3880 = vmatmul.mubr.bf16.gmra.mrb[0].mxu0 %v3626
        %v3881 = vpop.f32.mrb[0].mxu0
        %v3882 = vadd.f32 0.0, %v3881
        %v3883 = vpop.f32.mrb[0].mxu0
        %v3884 = vpop.f32.mrb[0].mxu0
        %v3885 = vadd.f32 0.0, %v3884
        %v3886 = vpop.f32.mrb[0].mxu0
        %3887 = vmatprep.mubr.bf16.mxu0 0
        %3888 = vmatmul.mubr.bf16.gmra.mrb[0].mxu0 %v3629
        %v3889 = vpop.f32.mrb[0].mxu0
        %v3890 = vadd.f32 0.0, %v3889
        %v3891 = vpop.f32.mrb[0].mxu0
        %v3892 = vpop.f32.mrb[0].mxu0
        %v3893 = vadd.f32 0.0, %v3892
        %v3894 = vpop.f32.mrb[0].mxu0
        %3895 = vmatprep.mubr.bf16.mxu0 0
        %3896 = vmatmul.mubr.bf16.gmra.mrb[0].mxu0 %v3632
        %v3897 = vpop.f32.mrb[0].mxu0
        %v3898 = vadd.f32 0.0, %v3897
        %v3899 = vpop.f32.mrb[0].mxu0
        %v3900 = vpop.f32.mrb[0].mxu0
        %v3901 = vadd.f32 0.0, %v3900
        %v3902 = vpop.f32.mrb[0].mxu0
        %3903 = vmatprep.mubr.bf16.mxu0 0
        %3904 = vmatmul.mubr.bf16.gmra.mrb[0].mxu0 %v3635
        %v3905 = vpop.f32.mrb[0].mxu0
        %v3906 = vadd.f32 0.0, %v3905
        %v3907 = vpop.f32.mrb[0].mxu0
        %v3908 = vpop.f32.mrb[0].mxu0
        %v3909 = vadd.f32 0.0, %v3908
        %v3910 = vpop.f32.mrb[0].mxu0
        %3911 = vmatprep.mubr.bf16.mxu0 0
        %3912 = vmatmul.mubr.bf16.gmra.mrb[0].mxu0 %v3638
        %v3913 = vpop.f32.mrb[0].mxu0
        %v3914 = vadd.f32 0.0, %v3913
        %v3915 = vpop.f32.mrb[0].mxu0
        %v3916 = vpop.f32.mrb[0].mxu0
        %v3917 = vadd.f32 0.0, %v3916
        %v3918 = vpop.f32.mrb[0].mxu0
        %3919 = vmatprep.mubr.bf16.mxu0 0
        %3920 = vmatmul.mubr.bf16.gmra.mrb[0].mxu0 %v3641
        %v3921 = vpop.f32.mrb[0].mxu0
        %v3922 = vadd.f32 0.0, %v3921
        %v3923 = vpop.f32.mrb[0].mxu0
        %v3924 = vpop.f32.mrb[0].mxu0
        %v3925 = vadd.f32 0.0, %v3924
        %v3926 = vpop.f32.mrb[0].mxu0
        %3927 = vmatprep.mubr.bf16.mxu0 0
        %3928 = vmatmul.mubr.bf16.gmra.mrb[0].mxu0 %v3644
        %v3929 = vpop.f32.mrb[0].mxu0
        %v3930 = vadd.f32 0.0, %v3929
        %v3931 = vpop.f32.mrb[0].mxu0
        %v3932 = vpop.f32.mrb[0].mxu0
        %v3933 = vadd.f32 0.0, %v3932
        %v3934 = vpop.f32.mrb[0].mxu0
        %3935 = vmatprep.mubr.bf16.mxu0 0
        %3936 = vmatmul.mubr.bf16.gmra.mrb[0].mxu0 %v3647
        %v3937 = vpop.f32.mrb[0].mxu0
        %v3938 = vadd.f32 0.0, %v3937
        %v3939 = vpop.f32.mrb[0].mxu0
        %v3940 = vpop.f32.mrb[0].mxu0
        %v3941 = vadd.f32 0.0, %v3940
        %v3942 = vpop.f32.mrb[0].mxu0
        %3943 = vmatprep.mubr.bf16.mxu0 0
        %3944 = vmatmul.mubr.bf16.gmra.mrb[0].mxu0 %v3650
        %v3945 = vpop.f32.mrb[0].mxu0
        %v3946 = vadd.f32 0.0, %v3945
        %v3947 = vpop.f32.mrb[0].mxu0
        %v3948 = vpop.f32.mrb[0].mxu0
        %v3949 = vadd.f32 0.0, %v3948
        %v3950 = vpop.f32.mrb[0].mxu0
        %3951 = vmatprep.mubr.bf16.mxu0 0
        %3952 = vmatmul.mubr.bf16.gmra.mrb[0].mxu0 %v3653
        %v3953 = vpop.f32.mrb[0].mxu0
        %v3954 = vadd.f32 0.0, %v3953
        %v3955 = vpop.f32.mrb[0].mxu0
        %v3956 = vpop.f32.mrb[0].mxu0
        %v3957 = vadd.f32 0.0, %v3956
        %v3958 = vpop.f32.mrb[0].mxu0
        %3959 = vmatprep.mubr.bf16.mxu0 0
        %3960 = vmatmul.mubr.bf16.gmra.mrb[0].mxu0 %v3656
        %v3961 = vpop.f32.mrb[0].mxu0
        %v3962 = vadd.f32 0.0, %v3961
        %v3963 = vpop.f32.mrb[0].mxu0
        %v3964 = vpop.f32.mrb[0].mxu0
        %v3965 = vadd.f32 0.0, %v3964
        %v3966 = vpop.f32.mrb[0].mxu0
        %3967 = vmatprep.mubr.bf16.mxu0 0
        %3968 = vmatmul.mubr.bf16.gmra.mrb[0].mxu0 %v3659
        %v3969 = vpop.f32.mrb[0].mxu0
        %v3970 = vadd.f32 0.0, %v3969
        %v3971 = vpop.f32.mrb[0].mxu0
        %v3972 = vpop.f32.mrb[0].mxu0
        %v3973 = vadd.f32 0.0, %v3972
        %v3974 = vpop.f32.mrb[0].mxu0
        %3975 = vmatprep.mubr.bf16.mxu0 0
        %3976 = vmatmul.mubr.bf16.gmra.mrb[0].mxu0 %v3662
        %v3977 = vpop.f32.mrb[0].mxu0
        %v3978 = vadd.f32 0.0, %v3977
        %v3979 = vpop.f32.mrb[0].mxu0
        %v3980 = vpop.f32.mrb[0].mxu0
        %v3981 = vadd.f32 0.0, %v3980
        %v3982 = vpop.f32.mrb[0].mxu0
        %3983 = vmatprep.mubr.bf16.mxu0 0
        %3984 = vmatmul.mubr.bf16.gmra.mrb[0].mxu0 %v3665
        %v3985 = vpop.f32.mrb[0].mxu0
        %v3986 = vadd.f32 0.0, %v3985
        %v3987 = vpop.f32.mrb[0].mxu0
        %v3988 = vpop.f32.mrb[0].mxu0
        %v3989 = vadd.f32 0.0, %v3988
        %v3990 = vpop.f32.mrb[0].mxu0
        %3991 = vmatprep.mubr.bf16.mxu0 0
        %3992 = vmatmul.mubr.bf16.gmra.mrb[0].mxu0 %v3668
        %v3993 = vpop.f32.mrb[0].mxu0
        %v3994 = vadd.f32 0.0, %v3993
        %v3995 = vpop.f32.mrb[0].mxu0
        %v3996 = vpop.f32.mrb[0].mxu0
        %v3997 = vadd.f32 0.0, %v3996
        %v3998 = vpop.f32.mrb[0].mxu0
        %3999 = vmatprep.mubr.bf16.mxu0 0
        %4000 = vmatmul.mubr.bf16.gmra.mrb[0].mxu0 %v3671
        %v4001 = vpop.f32.mrb[0].mxu0
        %v4002 = vadd.f32 0.0, %v4001
        %v4003 = vpop.f32.mrb[0].mxu0
        %v4004 = vpop.f32.mrb[0].mxu0
        %v4005 = vadd.f32 0.0, %v4004
        %v4006 = vpop.f32.mrb[0].mxu0
        %4007 = vmatprep.mubr.bf16.mxu0 0
        %4008 = vmatmul.mubr.bf16.gmra.mrb[0].mxu0 %v3674
        %v4009 = vpop.f32.mrb[0].mxu0
        %v4010 = vadd.f32 0.0, %v4009
        %v4011 = vpop.f32.mrb[0].mxu0
        %v4012 = vpop.f32.mrb[0].mxu0
        %v4013 = vpop.f32.mrb[0].mxu0
        %4014 = vdwg.mxu0
        %v4015 = vpack.c.bf16 %v3717, %v3714
        %v4016 = vpack.c.bf16 %v3725, %v3722
        %v4017 = vpack.c.bf16 %v3733, %v3730
        %v4018 = vpack.c.bf16 %v3741, %v3738
        %v4019 = vpack.c.bf16 %v3749, %v3746
        %v4020 = vpack.c.bf16 %v3757, %v3754
        %v4021 = vpack.c.bf16 %v3765, %v3762
        %v4022 = vpack.c.bf16 %v3770, %v3770
        %v4023 = vld [vmem:[%s15] sm:$0xf]
        %v4024 = vld [vmem:[%s15 + $0x4] sm:$0xf]
        %v4025 = vld [vmem:[%s15 + $0x8] sm:$0xf]
        %v4026 = vld [vmem:[%s15 + $0xc] sm:$0xf]
        %v4027 = vld [vmem:[%s15 + $0x10] sm:$0xf]
        %v4028 = vld [vmem:[%s15 + $0x14] sm:$0xf]
        %v4029 = vld [vmem:[%s15 + $0x18] sm:$0xf]
        %v4030 = vld [vmem:[%s15 + $0x1c] sm:$0xf]
        %v4031 = vld [vmem:[%s15 + $0x20] sm:$0xf]
        %v4032 = vld [vmem:[%s15 + $0x24] sm:$0xf]
        %v4033 = vpack.c.bf16 %v3778, %v3773
        %v4034 = vpack.c.bf16 %v3786, %v3781
        %v4035 = vpack.c.bf16 %v3794, %v3789
        %v4036 = vpack.c.bf16 %v3802, %v3797
        %v4037 = vpack.c.bf16 %v3810, %v3805
        %v4038 = vpack.c.bf16 %v3818, %v3813
        %v4039 = vpack.c.bf16 %v3826, %v3821
        %v4040 = vpack.c.bf16 %v3829, %v3829
        %s4041 = scalar_lea.vmem %s15, 40
        %v4042 = vld [vmem:[%s4041] sm:$0xf]
        %v4043 = vld [vmem:[%s4041 + $0x4] sm:$0xf]
        %v4044 = vld [vmem:[%s4041 + $0x8] sm:$0xf]
        %v4045 = vld [vmem:[%s4041 + $0xc] sm:$0xf]
        %v4046 = vld [vmem:[%s4041 + $0x10] sm:$0xf]
        %v4047 = vld [vmem:[%s4041 + $0x14] sm:$0xf]
        %v4048 = vld [vmem:[%s4041 + $0x18] sm:$0xf]
        %v4049 = vld [vmem:[%s4041 + $0x1c] sm:$0xf]
        %v4050 = vld [vmem:[%s4041 + $0x20] sm:$0xf]
        %v4051 = vld [vmem:[%s4041 + $0x24] sm:$0xf]
        %v4062 = vunpack.c.l.b16 %v4042
        %v4063 = vunpack.c.l.b16 %v4043
        %v4064 = vunpack.c.l.b16 %v4044
        %v4065 = vunpack.c.l.b16 %v4045
        %v4066 = vunpack.c.l.b16 %v4046
        %v4067 = vunpack.c.l.b16 %v4047
        %v4068 = vunpack.c.l.b16 %v4048
        %v4069 = vunpack.c.l.b16 %v4049
        %v4070 = vunpack.c.l.b16 %v4050
        %v4071 = vunpack.c.l.b16 %v4051
        %v4072 = vpack.c.b16 %v4063, %v4062
        %v4073 = vpack.c.b16 %v4065, %v4064
        %v4074 = vpack.c.b16 %v4067, %v4066
        %v4075 = vpack.c.b16 %v4069, %v4068
        %v4076 = vpack.c.b16 %v4071, %v4070
        %v4083 = vsel %vm1622, %v4033, 0
        %v4086 = vsel %vm1622, %v4034, 0
        %v4089 = vsel %vm1622, %v4035, 0
        %v4092 = vsel %vm1622, %v4036, 0
        %v4095 = vsel %vm1622, %v4037, 0
        %v4098 = vsel %vm1622, %v4038, 0
        %v4101 = vsel %vm1622, %v4039, 0
        %v4104 = vsel %vm1622, %v4040, 0
        %4106 = vmatprep.subr.bf16.mxu0 0
        %4107 = vmatpush1.bf16.msra.mxu0 %v4072
        %4108 = vmatprep.subr.bf16.mxu0 0
        %4109 = vmatpush1.bf16.msra.mxu0 %v4073
        %4110 = vmatprep.subr.bf16.mxu0 0
        %4111 = vmatpush1.bf16.msra.mxu0 %v4074
        %4112 = vmatprep.subr.bf16.mxu0 0
        %4113 = vmatpush1.bf16.msra.mxu0 %v4075
        %4114 = vmatprep.subr.bf16.mxu0 0
        %4115 = vmatpush1.bf16.msra.mxu0 %v4076
        %4116 = vmatprep.subr.bf16.mxu0 0
        %4117 = vmatpush1.bf16.msra.mxu0 0
        %4118 = vmatprep.subr.bf16.mxu0 0
        %4119 = vmatpush1.bf16.msra.mxu0 0
        %4120 = vmatprep.subr.bf16.mxu0 0
        %4121 = vmatpush1.bf16.msra.mxu0 0
        %4122 = vmatprep.subr.bf16.mxu0 0
        %4123 = vmatpush1.bf16.msra.mxu0 0
        %4124 = vmatprep.subr.bf16.mxu0 0
        %4125 = vmatpush1.bf16.msra.mxu0 0
        %4126 = vmatprep.subr.bf16.mxu0 0
        %4127 = vmatpush1.bf16.msra.mxu0 0
        %4128 = vmatprep.subr.bf16.mxu0 0
        %4129 = vmatpush1.bf16.msra.mxu0 0
        %4130 = vmatprep.subr.bf16.mxu0 0
        %4131 = vmatpush1.bf16.msra.mxu0 0
        %4132 = vmatprep.subr.bf16.mxu0 0
        %4133 = vmatpush1.bf16.msra.mxu0 0
        %4134 = vmatprep.subr.bf16.mxu0 0
        %4135 = vmatpush1.bf16.msra.mxu0 0
        %4136 = vmatprep.subr.bf16.mxu0 0
        %4137 = vmatpush1.bf16.msra.mxu0 0
        %4138 = vmatprep.mubr.bf16.mxu0 0
        %4139 = vmatmul.mubr.bf16.gmra.mrb[0].mxu0 %v4083
        %v4140 = vpop.f32.mrb[0].mxu0
        %v4141 = vadd.f32 0.0, %v4140
        %v4142 = vpop.f32.mrb[0].mxu0
        %v4143 = vpop.f32.mrb[0].mxu0
        %v4144 = vadd.f32 0.0, %v4143
        %v4145 = vpop.f32.mrb[0].mxu0
        %4146 = vmatprep.mubr.bf16.mxu0 0
        %4147 = vmatmul.mubr.bf16.gmra.mrb[0].mxu0 %v4086
        %v4148 = vpop.f32.mrb[0].mxu0
        %v4149 = vadd.f32 0.0, %v4148
        %v4150 = vpop.f32.mrb[0].mxu0
        %v4151 = vpop.f32.mrb[0].mxu0
        %v4152 = vadd.f32 0.0, %v4151
        %v4153 = vpop.f32.mrb[0].mxu0
        %4154 = vmatprep.mubr.bf16.mxu0 0
        %4155 = vmatmul.mubr.bf16.gmra.mrb[0].mxu0 %v4089
        %v4156 = vpop.f32.mrb[0].mxu0
        %v4157 = vadd.f32 0.0, %v4156
        %v4158 = vpop.f32.mrb[0].mxu0
        %v4159 = vpop.f32.mrb[0].mxu0
        %v4160 = vadd.f32 0.0, %v4159
        %v4161 = vpop.f32.mrb[0].mxu0
        %4162 = vmatprep.mubr.bf16.mxu0 0
        %4163 = vmatmul.mubr.bf16.gmra.mrb[0].mxu0 %v4092
        %v4164 = vpop.f32.mrb[0].mxu0
        %v4165 = vadd.f32 0.0, %v4164
        %v4166 = vpop.f32.mrb[0].mxu0
        %v4167 = vpop.f32.mrb[0].mxu0
        %v4168 = vadd.f32 0.0, %v4167
        %v4169 = vpop.f32.mrb[0].mxu0
        %4170 = vmatprep.mubr.bf16.mxu0 0
        %4171 = vmatmul.mubr.bf16.gmra.mrb[0].mxu0 %v4095
        %v4172 = vpop.f32.mrb[0].mxu0
        %v4173 = vadd.f32 0.0, %v4172
        %v4174 = vpop.f32.mrb[0].mxu0
        %v4175 = vpop.f32.mrb[0].mxu0
        %v4176 = vadd.f32 0.0, %v4175
        %v4177 = vpop.f32.mrb[0].mxu0
        %4178 = vmatprep.mubr.bf16.mxu0 0
        %4179 = vmatmul.mubr.bf16.gmra.mrb[0].mxu0 %v4098
        %v4180 = vpop.f32.mrb[0].mxu0
        %v4181 = vadd.f32 0.0, %v4180
        %v4182 = vpop.f32.mrb[0].mxu0
        %v4183 = vpop.f32.mrb[0].mxu0
        %v4184 = vadd.f32 0.0, %v4183
        %v4185 = vpop.f32.mrb[0].mxu0
        %4186 = vmatprep.mubr.bf16.mxu0 0
        %4187 = vmatmul.mubr.bf16.gmra.mrb[0].mxu0 %v4101
        %v4188 = vpop.f32.mrb[0].mxu0
        %v4189 = vadd.f32 0.0, %v4188
        %v4190 = vpop.f32.mrb[0].mxu0
        %v4191 = vpop.f32.mrb[0].mxu0
        %v4192 = vadd.f32 0.0, %v4191
        %v4193 = vpop.f32.mrb[0].mxu0
        %4194 = vmatprep.mubr.bf16.mxu0 0
        %4195 = vmatmul.mubr.bf16.gmra.mrb[0].mxu0 %v4104
        %v4196 = vpop.f32.mrb[0].mxu0
        %v4197 = vadd.f32 0.0, %v4196
        %v4198 = vpop.f32.mrb[0].mxu0
        %v4199 = vpop.f32.mrb[0].mxu0
        %v4200 = vpop.f32.mrb[0].mxu0
        %4201 = vdwg.mxu0
        %v4212 = vunpack.c.l.b16 %v4023
        %v4213 = vunpack.c.l.b16 %v4024
        %v4214 = vunpack.c.l.b16 %v4025
        %v4215 = vunpack.c.l.b16 %v4026
        %v4216 = vunpack.c.l.b16 %v4027
        %v4217 = vunpack.c.l.b16 %v4028
        %v4218 = vunpack.c.l.b16 %v4029
        %v4219 = vunpack.c.l.b16 %v4030
        %v4220 = vunpack.c.l.b16 %v4031
        %v4221 = vunpack.c.l.b16 %v4032
        %v4222 = vpack.c.b16 %v4213, %v4212
        %v4223 = vpack.c.b16 %v4215, %v4214
        %v4224 = vpack.c.b16 %v4217, %v4216
        %v4225 = vpack.c.b16 %v4219, %v4218
        %v4226 = vpack.c.b16 %v4221, %v4220
        %v4233 = vsel %vm1622, %v4015, 0
        %v4236 = vsel %vm1622, %v4016, 0
        %v4239 = vsel %vm1622, %v4017, 0
        %v4242 = vsel %vm1622, %v4018, 0
        %v4245 = vsel %vm1622, %v4019, 0
        %v4248 = vsel %vm1622, %v4020, 0
        %v4251 = vsel %vm1622, %v4021, 0
        %v4254 = vsel %vm1622, %v4022, 0
        %4256 = vmatprep.subr.bf16.mxu0 0
        %4257 = vmatpush1.bf16.msra.mxu0 %v4222
        %4258 = vmatprep.subr.bf16.mxu0 0
        %4259 = vmatpush1.bf16.msra.mxu0 %v4223
        %4260 = vmatprep.subr.bf16.mxu0 0
        %4261 = vmatpush1.bf16.msra.mxu0 %v4224
        %4262 = vmatprep.subr.bf16.mxu0 0
        %4263 = vmatpush1.bf16.msra.mxu0 %v4225
        %4264 = vmatprep.subr.bf16.mxu0 0
        %4265 = vmatpush1.bf16.msra.mxu0 %v4226
        %4266 = vmatprep.subr.bf16.mxu0 0
        %4267 = vmatpush1.bf16.msra.mxu0 0
        %4268 = vmatprep.subr.bf16.mxu0 0
        %4269 = vmatpush1.bf16.msra.mxu0 0
        %4270 = vmatprep.subr.bf16.mxu0 0
        %4271 = vmatpush1.bf16.msra.mxu0 0
        %4272 = vmatprep.subr.bf16.mxu0 0
        %4273 = vmatpush1.bf16.msra.mxu0 0
        %4274 = vmatprep.subr.bf16.mxu0 0
        %4275 = vmatpush1.bf16.msra.mxu0 0
        %4276 = vmatprep.subr.bf16.mxu0 0
        %4277 = vmatpush1.bf16.msra.mxu0 0
        %4278 = vmatprep.subr.bf16.mxu0 0
        %4279 = vmatpush1.bf16.msra.mxu0 0
        %4280 = vmatprep.subr.bf16.mxu0 0
        %4281 = vmatpush1.bf16.msra.mxu0 0
        %4282 = vmatprep.subr.bf16.mxu0 0
        %4283 = vmatpush1.bf16.msra.mxu0 0
        %4284 = vmatprep.subr.bf16.mxu0 0
        %4285 = vmatpush1.bf16.msra.mxu0 0
        %4286 = vmatprep.subr.bf16.mxu0 0
        %4287 = vmatpush1.bf16.msra.mxu0 0
        %4288 = vmatprep.mubr.bf16.mxu0 0
        %4289 = vmatmul.mubr.bf16.gmra.mrb[0].mxu0 %v4233
        %v4290 = vpop.f32.mrb[0].mxu0
        %v4291 = vadd.f32 %v4141, %v4290
        %v4292 = vpop.f32.mrb[0].mxu0
        %v4293 = vpop.f32.mrb[0].mxu0
        %v4294 = vadd.f32 %v4144, %v4293
        %v4295 = vpop.f32.mrb[0].mxu0
        %4296 = vmatprep.mubr.bf16.mxu0 0
        %4297 = vmatmul.mubr.bf16.gmra.mrb[0].mxu0 %v4236
        %v4298 = vpop.f32.mrb[0].mxu0
        %v4299 = vadd.f32 %v4149, %v4298
        %v4300 = vpop.f32.mrb[0].mxu0
        %v4301 = vpop.f32.mrb[0].mxu0
        %v4302 = vadd.f32 %v4152, %v4301
        %v4303 = vpop.f32.mrb[0].mxu0
        %4304 = vmatprep.mubr.bf16.mxu0 0
        %4305 = vmatmul.mubr.bf16.gmra.mrb[0].mxu0 %v4239
        %v4306 = vpop.f32.mrb[0].mxu0
        %v4307 = vadd.f32 %v4157, %v4306
        %v4308 = vpop.f32.mrb[0].mxu0
        %v4309 = vpop.f32.mrb[0].mxu0
        %v4310 = vadd.f32 %v4160, %v4309
        %v4311 = vpop.f32.mrb[0].mxu0
        %4312 = vmatprep.mubr.bf16.mxu0 0
        %4313 = vmatmul.mubr.bf16.gmra.mrb[0].mxu0 %v4242
        %v4314 = vpop.f32.mrb[0].mxu0
        %v4315 = vadd.f32 %v4165, %v4314
        %v4316 = vpop.f32.mrb[0].mxu0
        %v4317 = vpop.f32.mrb[0].mxu0
        %v4318 = vadd.f32 %v4168, %v4317
        %v4319 = vpop.f32.mrb[0].mxu0
        %4320 = vmatprep.mubr.bf16.mxu0 0
        %4321 = vmatmul.mubr.bf16.gmra.mrb[0].mxu0 %v4245
        %v4322 = vpop.f32.mrb[0].mxu0
        %v4323 = vadd.f32 %v4173, %v4322
        %v4324 = vpop.f32.mrb[0].mxu0
        %v4325 = vpop.f32.mrb[0].mxu0
        %v4326 = vadd.f32 %v4176, %v4325
        %v4327 = vpop.f32.mrb[0].mxu0
        %4328 = vmatprep.mubr.bf16.mxu0 0
        %4329 = vmatmul.mubr.bf16.gmra.mrb[0].mxu0 %v4248
        %v4330 = vpop.f32.mrb[0].mxu0
        %v4331 = vadd.f32 %v4181, %v4330
        %v4332 = vpop.f32.mrb[0].mxu0
        %v4333 = vpop.f32.mrb[0].mxu0
        %v4334 = vadd.f32 %v4184, %v4333
        %v4335 = vpop.f32.mrb[0].mxu0
        %4336 = vmatprep.mubr.bf16.mxu0 0
        %4337 = vmatmul.mubr.bf16.gmra.mrb[0].mxu0 %v4251
        %v4338 = vpop.f32.mrb[0].mxu0
        %v4339 = vadd.f32 %v4189, %v4338
        %v4340 = vpop.f32.mrb[0].mxu0
        %v4341 = vpop.f32.mrb[0].mxu0
        %v4342 = vadd.f32 %v4192, %v4341
        %v4343 = vpop.f32.mrb[0].mxu0
        %4344 = vmatprep.mubr.bf16.mxu0 0
        %4345 = vmatmul.mubr.bf16.gmra.mrb[0].mxu0 %v4254
        %v4346 = vpop.f32.mrb[0].mxu0
        %v4347 = vadd.f32 %v4197, %v4346
        %v4348 = vpop.f32.mrb[0].mxu0
        %v4349 = vpop.f32.mrb[0].mxu0
        %v4350 = vpop.f32.mrb[0].mxu0
        %4351 = vdwg.mxu0
        %v4352 = vpack.c.bf16 %v3837, %v3834
        %v4353 = vpack.c.bf16 %v3845, %v3842
        %v4354 = vpack.c.bf16 %v3853, %v3850
        %v4355 = vpack.c.bf16 %v3861, %v3858
        %v4356 = vpack.c.bf16 %v3869, %v3866
        %v4357 = vpack.c.bf16 %v3877, %v3874
        %v4358 = vpack.c.bf16 %v3885, %v3882
        %v4359 = vpack.c.bf16 %v3890, %v3890
        %s4360 = scalar_lea.vmem %s15, 80
        %v4361 = vld [vmem:[%s4360] sm:$0xf]
        %v4362 = vld [vmem:[%s4360 + $0x4] sm:$0xf]
        %v4363 = vld [vmem:[%s4360 + $0x8] sm:$0xf]
        %v4364 = vld [vmem:[%s4360 + $0xc] sm:$0xf]
        %v4365 = vld [vmem:[%s4360 + $0x10] sm:$0xf]
        %v4366 = vld [vmem:[%s4360 + $0x14] sm:$0xf]
        %v4367 = vld [vmem:[%s4360 + $0x18] sm:$0xf]
        %v4368 = vld [vmem:[%s4360 + $0x1c] sm:$0xf]
        %v4369 = vld [vmem:[%s4360 + $0x20] sm:$0xf]
        %v4370 = vld [vmem:[%s4360 + $0x24] sm:$0xf]
        %v4381 = vunpack.c.l.b16 %v4361
        %v4382 = vunpack.c.l.b16 %v4362
        %v4383 = vunpack.c.l.b16 %v4363
        %v4384 = vunpack.c.l.b16 %v4364
        %v4385 = vunpack.c.l.b16 %v4365
        %v4386 = vunpack.c.l.b16 %v4366
        %v4387 = vunpack.c.l.b16 %v4367
        %v4388 = vunpack.c.l.b16 %v4368
        %v4389 = vunpack.c.l.b16 %v4369
        %v4390 = vunpack.c.l.b16 %v4370
        %v4391 = vpack.c.b16 %v4382, %v4381
        %v4392 = vpack.c.b16 %v4384, %v4383
        %v4393 = vpack.c.b16 %v4386, %v4385
        %v4394 = vpack.c.b16 %v4388, %v4387
        %v4395 = vpack.c.b16 %v4390, %v4389
        %v4402 = vsel %vm1622, %v4352, 0
        %v4405 = vsel %vm1622, %v4353, 0
        %v4408 = vsel %vm1622, %v4354, 0
        %v4411 = vsel %vm1622, %v4355, 0
        %v4414 = vsel %vm1622, %v4356, 0
        %v4417 = vsel %vm1622, %v4357, 0
        %v4420 = vsel %vm1622, %v4358, 0
        %v4423 = vsel %vm1622, %v4359, 0
        %4425 = vmatprep.subr.bf16.mxu0 0
        %4426 = vmatpush1.bf16.msra.mxu0 %v4391
        %4427 = vmatprep.subr.bf16.mxu0 0
        %4428 = vmatpush1.bf16.msra.mxu0 %v4392
        %4429 = vmatprep.subr.bf16.mxu0 0
        %4430 = vmatpush1.bf16.msra.mxu0 %v4393
        %4431 = vmatprep.subr.bf16.mxu0 0
        %4432 = vmatpush1.bf16.msra.mxu0 %v4394
        %4433 = vmatprep.subr.bf16.mxu0 0
        %4434 = vmatpush1.bf16.msra.mxu0 %v4395
        %4435 = vmatprep.subr.bf16.mxu0 0
        %4436 = vmatpush1.bf16.msra.mxu0 0
        %4437 = vmatprep.subr.bf16.mxu0 0
        %4438 = vmatpush1.bf16.msra.mxu0 0
        %4439 = vmatprep.subr.bf16.mxu0 0
        %4440 = vmatpush1.bf16.msra.mxu0 0
        %4441 = vmatprep.subr.bf16.mxu0 0
        %4442 = vmatpush1.bf16.msra.mxu0 0
        %4443 = vmatprep.subr.bf16.mxu0 0
        %4444 = vmatpush1.bf16.msra.mxu0 0
        %4445 = vmatprep.subr.bf16.mxu0 0
        %4446 = vmatpush1.bf16.msra.mxu0 0
        %4447 = vmatprep.subr.bf16.mxu0 0
        %4448 = vmatpush1.bf16.msra.mxu0 0
        %4449 = vmatprep.subr.bf16.mxu0 0
        %4450 = vmatpush1.bf16.msra.mxu0 0
        %4451 = vmatprep.subr.bf16.mxu0 0
        %4452 = vmatpush1.bf16.msra.mxu0 0
        %4453 = vmatprep.subr.bf16.mxu0 0
        %4454 = vmatpush1.bf16.msra.mxu0 0
        %4455 = vmatprep.subr.bf16.mxu0 0
        %4456 = vmatpush1.bf16.msra.mxu0 0
        %4457 = vmatprep.mubr.bf16.mxu0 0
        %4458 = vmatmul.mubr.bf16.gmra.mrb[0].mxu0 %v4402
        %v4459 = vpop.f32.mrb[0].mxu0
        %v4460 = vadd.f32 0.0, %v4459
        %v4461 = vpop.f32.mrb[0].mxu0
        %v4462 = vpop.f32.mrb[0].mxu0
        %v4463 = vadd.f32 0.0, %v4462
        %v4464 = vpop.f32.mrb[0].mxu0
        %4465 = vmatprep.mubr.bf16.mxu0 0
        %4466 = vmatmul.mubr.bf16.gmra.mrb[0].mxu0 %v4405
        %v4467 = vpop.f32.mrb[0].mxu0
        %v4468 = vadd.f32 0.0, %v4467
        %v4469 = vpop.f32.mrb[0].mxu0
        %v4470 = vpop.f32.mrb[0].mxu0
        %v4471 = vadd.f32 0.0, %v4470
        %v4472 = vpop.f32.mrb[0].mxu0
        %4473 = vmatprep.mubr.bf16.mxu0 0
        %4474 = vmatmul.mubr.bf16.gmra.mrb[0].mxu0 %v4408
        %v4475 = vpop.f32.mrb[0].mxu0
        %v4476 = vadd.f32 0.0, %v4475
        %v4477 = vpop.f32.mrb[0].mxu0
        %v4478 = vpop.f32.mrb[0].mxu0
        %v4479 = vadd.f32 0.0, %v4478
        %v4480 = vpop.f32.mrb[0].mxu0
        %4481 = vmatprep.mubr.bf16.mxu0 0
        %4482 = vmatmul.mubr.bf16.gmra.mrb[0].mxu0 %v4411
        %v4483 = vpop.f32.mrb[0].mxu0
        %v4484 = vadd.f32 0.0, %v4483
        %v4485 = vpop.f32.mrb[0].mxu0
        %v4486 = vpop.f32.mrb[0].mxu0
        %v4487 = vadd.f32 0.0, %v4486
        %v4488 = vpop.f32.mrb[0].mxu0
        %4489 = vmatprep.mubr.bf16.mxu0 0
        %4490 = vmatmul.mubr.bf16.gmra.mrb[0].mxu0 %v4414
        %v4491 = vpop.f32.mrb[0].mxu0
        %v4492 = vadd.f32 0.0, %v4491
        %v4493 = vpop.f32.mrb[0].mxu0
        %v4494 = vpop.f32.mrb[0].mxu0
        %v4495 = vadd.f32 0.0, %v4494
        %v4496 = vpop.f32.mrb[0].mxu0
        %4497 = vmatprep.mubr.bf16.mxu0 0
        %4498 = vmatmul.mubr.bf16.gmra.mrb[0].mxu0 %v4417
        %v4499 = vpop.f32.mrb[0].mxu0
        %v4500 = vadd.f32 0.0, %v4499
        %v4501 = vpop.f32.mrb[0].mxu0
        %v4502 = vpop.f32.mrb[0].mxu0
        %v4503 = vadd.f32 0.0, %v4502
        %v4504 = vpop.f32.mrb[0].mxu0
        %4505 = vmatprep.mubr.bf16.mxu0 0
        %4506 = vmatmul.mubr.bf16.gmra.mrb[0].mxu0 %v4420
        %v4507 = vpop.f32.mrb[0].mxu0
        %v4508 = vadd.f32 0.0, %v4507
        %v4509 = vpop.f32.mrb[0].mxu0
        %v4510 = vpop.f32.mrb[0].mxu0
        %v4511 = vadd.f32 0.0, %v4510
        %v4512 = vpop.f32.mrb[0].mxu0
        %4513 = vmatprep.mubr.bf16.mxu0 0
        %4514 = vmatmul.mubr.bf16.gmra.mrb[0].mxu0 %v4423
        %v4515 = vpop.f32.mrb[0].mxu0
        %v4516 = vadd.f32 0.0, %v4515
        %v4517 = vpop.f32.mrb[0].mxu0
        %v4518 = vpop.f32.mrb[0].mxu0
        %v4519 = vpop.f32.mrb[0].mxu0
        %4520 = vdwg.mxu0
        %v4521 = vadd.f32 %v4291, %v4460
        %v4522 = vadd.f32 %v4294, %v4463
        %v4523 = vadd.f32 %v4299, %v4468
        %v4524 = vadd.f32 %v4302, %v4471
        %v4525 = vadd.f32 %v4307, %v4476
        %v4526 = vadd.f32 %v4310, %v4479
        %v4527 = vadd.f32 %v4315, %v4484
        %v4528 = vadd.f32 %v4318, %v4487
        %v4529 = vadd.f32 %v4323, %v4492
        %v4530 = vadd.f32 %v4326, %v4495
        %v4531 = vadd.f32 %v4331, %v4500
        %v4532 = vadd.f32 %v4334, %v4503
        %v4533 = vadd.f32 %v4339, %v4508
        %v4534 = vadd.f32 %v4342, %v4511
        %v4535 = vadd.f32 %v4347, %v4516
        %v4536 = vpack.c.bf16 %v3898, %v3893
        %v4537 = vpack.c.bf16 %v3906, %v3901
        %v4538 = vpack.c.bf16 %v3914, %v3909
        %v4539 = vpack.c.bf16 %v3922, %v3917
        %v4540 = vpack.c.bf16 %v3930, %v3925
        %v4541 = vpack.c.bf16 %v3938, %v3933
        %v4542 = vpack.c.bf16 %v3946, %v3941
        %v4543 = vpack.c.bf16 %v3949, %v3949
        %s4544 = scalar_lea.vmem %s15, 120
        %v4545 = vld [vmem:[%s4544] sm:$0xf]
        %v4546 = vld [vmem:[%s4544 + $0x4] sm:$0xf]
        %v4547 = vld [vmem:[%s4544 + $0x8] sm:$0xf]
        %v4548 = vld [vmem:[%s4544 + $0xc] sm:$0xf]
        %v4549 = vld [vmem:[%s4544 + $0x10] sm:$0xf]
        %v4550 = vld [vmem:[%s4544 + $0x14] sm:$0xf]
        %v4551 = vld [vmem:[%s4544 + $0x18] sm:$0xf]
        %v4552 = vld [vmem:[%s4544 + $0x1c] sm:$0xf]
        %v4553 = vld [vmem:[%s4544 + $0x20] sm:$0xf]
        %v4554 = vld [vmem:[%s4544 + $0x24] sm:$0xf]
        %v4565 = vunpack.c.l.b16 %v4545
        %v4566 = vunpack.c.l.b16 %v4546
        %v4567 = vunpack.c.l.b16 %v4547
        %v4568 = vunpack.c.l.b16 %v4548
        %v4569 = vunpack.c.l.b16 %v4549
        %v4570 = vunpack.c.l.b16 %v4550
        %v4571 = vunpack.c.l.b16 %v4551
        %v4572 = vunpack.c.l.b16 %v4552
        %v4573 = vunpack.c.l.b16 %v4553
        %v4574 = vunpack.c.l.b16 %v4554
        %v4575 = vpack.c.b16 %v4566, %v4565
        %v4576 = vpack.c.b16 %v4568, %v4567
        %v4577 = vpack.c.b16 %v4570, %v4569
        %v4578 = vpack.c.b16 %v4572, %v4571
        %v4579 = vpack.c.b16 %v4574, %v4573
        %v4586 = vsel %vm1622, %v4536, 0
        %v4589 = vsel %vm1622, %v4537, 0
        %v4592 = vsel %vm1622, %v4538, 0
        %v4595 = vsel %vm1622, %v4539, 0
        %v4598 = vsel %vm1622, %v4540, 0
        %v4601 = vsel %vm1622, %v4541, 0
        %v4604 = vsel %vm1622, %v4542, 0
        %v4607 = vsel %vm1622, %v4543, 0
        %4609 = vmatprep.subr.bf16.mxu0 0
        %4610 = vmatpush1.bf16.msra.mxu0 %v4575
        %4611 = vmatprep.subr.bf16.mxu0 0
        %4612 = vmatpush1.bf16.msra.mxu0 %v4576
        %4613 = vmatprep.subr.bf16.mxu0 0
        %4614 = vmatpush1.bf16.msra.mxu0 %v4577
        %4615 = vmatprep.subr.bf16.mxu0 0
        %4616 = vmatpush1.bf16.msra.mxu0 %v4578
        %4617 = vmatprep.subr.bf16.mxu0 0
        %4618 = vmatpush1.bf16.msra.mxu0 %v4579
        %4619 = vmatprep.subr.bf16.mxu0 0
        %4620 = vmatpush1.bf16.msra.mxu0 0
        %4621 = vmatprep.subr.bf16.mxu0 0
        %4622 = vmatpush1.bf16.msra.mxu0 0
        %4623 = vmatprep.subr.bf16.mxu0 0
        %4624 = vmatpush1.bf16.msra.mxu0 0
        %4625 = vmatprep.subr.bf16.mxu0 0
        %4626 = vmatpush1.bf16.msra.mxu0 0
        %4627 = vmatprep.subr.bf16.mxu0 0
        %4628 = vmatpush1.bf16.msra.mxu0 0
        %4629 = vmatprep.subr.bf16.mxu0 0
        %4630 = vmatpush1.bf16.msra.mxu0 0
        %4631 = vmatprep.subr.bf16.mxu0 0
        %4632 = vmatpush1.bf16.msra.mxu0 0
        %4633 = vmatprep.subr.bf16.mxu0 0
        %4634 = vmatpush1.bf16.msra.mxu0 0
        %4635 = vmatprep.subr.bf16.mxu0 0
        %4636 = vmatpush1.bf16.msra.mxu0 0
        %4637 = vmatprep.subr.bf16.mxu0 0
        %4638 = vmatpush1.bf16.msra.mxu0 0
        %4639 = vmatprep.subr.bf16.mxu0 0
        %4640 = vmatpush1.bf16.msra.mxu0 0
        %4641 = vmatprep.mubr.bf16.mxu0 0
        %4642 = vmatmul.mubr.bf16.gmra.mrb[0].mxu0 %v4586
        %v4643 = vpop.f32.mrb[0].mxu0
        %v4644 = vadd.f32 0.0, %v4643
        %v4645 = vpop.f32.mrb[0].mxu0
        %v4646 = vpop.f32.mrb[0].mxu0
        %v4647 = vadd.f32 0.0, %v4646
        %v4648 = vpop.f32.mrb[0].mxu0
        %4649 = vmatprep.mubr.bf16.mxu0 0
        %4650 = vmatmul.mubr.bf16.gmra.mrb[0].mxu0 %v4589
        %v4651 = vpop.f32.mrb[0].mxu0
        %v4652 = vadd.f32 0.0, %v4651
        %v4653 = vpop.f32.mrb[0].mxu0
        %v4654 = vpop.f32.mrb[0].mxu0
        %v4655 = vadd.f32 0.0, %v4654
        %v4656 = vpop.f32.mrb[0].mxu0
        %4657 = vmatprep.mubr.bf16.mxu0 0
        %4658 = vmatmul.mubr.bf16.gmra.mrb[0].mxu0 %v4592
        %v4659 = vpop.f32.mrb[0].mxu0
        %v4660 = vadd.f32 0.0, %v4659
        %v4661 = vpop.f32.mrb[0].mxu0
        %v4662 = vpop.f32.mrb[0].mxu0
        %v4663 = vadd.f32 0.0, %v4662
        %v4664 = vpop.f32.mrb[0].mxu0
        %4665 = vmatprep.mubr.bf16.mxu0 0
        %4666 = vmatmul.mubr.bf16.gmra.mrb[0].mxu0 %v4595
        %v4667 = vpop.f32.mrb[0].mxu0
        %v4668 = vadd.f32 0.0, %v4667
        %v4669 = vpop.f32.mrb[0].mxu0
        %v4670 = vpop.f32.mrb[0].mxu0
        %v4671 = vadd.f32 0.0, %v4670
        %v4672 = vpop.f32.mrb[0].mxu0
        %4673 = vmatprep.mubr.bf16.mxu0 0
        %4674 = vmatmul.mubr.bf16.gmra.mrb[0].mxu0 %v4598
        %v4675 = vpop.f32.mrb[0].mxu0
        %v4676 = vadd.f32 0.0, %v4675
        %v4677 = vpop.f32.mrb[0].mxu0
        %v4678 = vpop.f32.mrb[0].mxu0
        %v4679 = vadd.f32 0.0, %v4678
        %v4680 = vpop.f32.mrb[0].mxu0
        %4681 = vmatprep.mubr.bf16.mxu0 0
        %4682 = vmatmul.mubr.bf16.gmra.mrb[0].mxu0 %v4601
        %v4683 = vpop.f32.mrb[0].mxu0
        %v4684 = vadd.f32 0.0, %v4683
        %v4685 = vpop.f32.mrb[0].mxu0
        %v4686 = vpop.f32.mrb[0].mxu0
        %v4687 = vadd.f32 0.0, %v4686
        %v4688 = vpop.f32.mrb[0].mxu0
        %4689 = vmatprep.mubr.bf16.mxu0 0
        %4690 = vmatmul.mubr.bf16.gmra.mrb[0].mxu0 %v4604
        %v4691 = vpop.f32.mrb[0].mxu0
        %v4692 = vadd.f32 0.0, %v4691
        %v4693 = vpop.f32.mrb[0].mxu0
        %v4694 = vpop.f32.mrb[0].mxu0
        %v4695 = vadd.f32 0.0, %v4694
        %v4696 = vpop.f32.mrb[0].mxu0
        %4697 = vmatprep.mubr.bf16.mxu0 0
        %4698 = vmatmul.mubr.bf16.gmra.mrb[0].mxu0 %v4607
        %v4699 = vpop.f32.mrb[0].mxu0
        %v4700 = vadd.f32 0.0, %v4699
        %v4701 = vpop.f32.mrb[0].mxu0
        %v4702 = vpop.f32.mrb[0].mxu0
        %v4703 = vpop.f32.mrb[0].mxu0
        %4704 = vdwg.mxu0
        %v4705 = vadd.f32 %v4521, %v4644
        %v4706 = vadd.f32 %v4522, %v4647
        %v4707 = vadd.f32 %v4523, %v4652
        %v4708 = vadd.f32 %v4524, %v4655
        %v4709 = vadd.f32 %v4525, %v4660
        %v4710 = vadd.f32 %v4526, %v4663
        %v4711 = vadd.f32 %v4527, %v4668
        %v4712 = vadd.f32 %v4528, %v4671
        %v4713 = vadd.f32 %v4529, %v4676
        %v4714 = vadd.f32 %v4530, %v4679
        %v4715 = vadd.f32 %v4531, %v4684
        %v4716 = vadd.f32 %v4532, %v4687
        %v4717 = vadd.f32 %v4533, %v4692
        %v4718 = vadd.f32 %v4534, %v4695
        %v4719 = vadd.f32 %v4535, %v4700
        %v4720 = vpack.c.bf16 %v3957, %v3954
        %v4721 = vpack.c.bf16 %v3965, %v3962
        %v4722 = vpack.c.bf16 %v3973, %v3970
        %v4723 = vpack.c.bf16 %v3981, %v3978
        %v4724 = vpack.c.bf16 %v3989, %v3986
        %v4725 = vpack.c.bf16 %v3997, %v3994
        %v4726 = vpack.c.bf16 %v4005, %v4002
        %v4727 = vpack.c.bf16 %v4010, %v4010
        %s4728 = scalar_lea.vmem %s15, 160
        %v4729 = vld [vmem:[%s4728] sm:$0xf]
        %v4730 = vld [vmem:[%s4728 + $0x4] sm:$0xf]
        %v4731 = vld [vmem:[%s4728 + $0x8] sm:$0xf]
        %v4732 = vld [vmem:[%s4728 + $0xc] sm:$0xf]
        %v4733 = vld [vmem:[%s4728 + $0x10] sm:$0xf]
        %v4734 = vld [vmem:[%s4728 + $0x14] sm:$0xf]
        %v4735 = vld [vmem:[%s4728 + $0x18] sm:$0xf]
        %v4736 = vld [vmem:[%s4728 + $0x1c] sm:$0xf]
        %v4737 = vld [vmem:[%s4728 + $0x20] sm:$0xf]
        %v4738 = vld [vmem:[%s4728 + $0x24] sm:$0xf]
        %v4749 = vunpack.c.l.b16 %v4729
        %v4750 = vunpack.c.l.b16 %v4730
        %v4751 = vunpack.c.l.b16 %v4731
        %v4752 = vunpack.c.l.b16 %v4732
        %v4753 = vunpack.c.l.b16 %v4733
        %v4754 = vunpack.c.l.b16 %v4734
        %v4755 = vunpack.c.l.b16 %v4735
        %v4756 = vunpack.c.l.b16 %v4736
        %v4757 = vunpack.c.l.b16 %v4737
        %v4758 = vunpack.c.l.b16 %v4738
        %v4759 = vpack.c.b16 %v4750, %v4749
        %v4760 = vpack.c.b16 %v4752, %v4751
        %v4761 = vpack.c.b16 %v4754, %v4753
        %v4762 = vpack.c.b16 %v4756, %v4755
        %v4763 = vpack.c.b16 %v4758, %v4757
        %v4770 = vsel %vm1622, %v4720, 0
        %v4773 = vsel %vm1622, %v4721, 0
        %v4776 = vsel %vm1622, %v4722, 0
        %v4779 = vsel %vm1622, %v4723, 0
        %v4782 = vsel %vm1622, %v4724, 0
        %v4785 = vsel %vm1622, %v4725, 0
        %v4788 = vsel %vm1622, %v4726, 0
        %v4791 = vsel %vm1622, %v4727, 0
        %4793 = vmatprep.subr.bf16.mxu0 0
        %4794 = vmatpush1.bf16.msra.mxu0 %v4759
        %4795 = vmatprep.subr.bf16.mxu0 0
        %4796 = vmatpush1.bf16.msra.mxu0 %v4760
        %4797 = vmatprep.subr.bf16.mxu0 0
        %4798 = vmatpush1.bf16.msra.mxu0 %v4761
        %4799 = vmatprep.subr.bf16.mxu0 0
        %4800 = vmatpush1.bf16.msra.mxu0 %v4762
        %4801 = vmatprep.subr.bf16.mxu0 0
        %4802 = vmatpush1.bf16.msra.mxu0 %v4763
        %4803 = vmatprep.subr.bf16.mxu0 0
        %4804 = vmatpush1.bf16.msra.mxu0 0
        %4805 = vmatprep.subr.bf16.mxu0 0
        %4806 = vmatpush1.bf16.msra.mxu0 0
        %4807 = vmatprep.subr.bf16.mxu0 0
        %4808 = vmatpush1.bf16.msra.mxu0 0
        %4809 = vmatprep.subr.bf16.mxu0 0
        %4810 = vmatpush1.bf16.msra.mxu0 0
        %4811 = vmatprep.subr.bf16.mxu0 0
        %4812 = vmatpush1.bf16.msra.mxu0 0
        %4813 = vmatprep.subr.bf16.mxu0 0
        %4814 = vmatpush1.bf16.msra.mxu0 0
        %4815 = vmatprep.subr.bf16.mxu0 0
        %4816 = vmatpush1.bf16.msra.mxu0 0
        %4817 = vmatprep.subr.bf16.mxu0 0
        %4818 = vmatpush1.bf16.msra.mxu0 0
        %4819 = vmatprep.subr.bf16.mxu0 0
        %4820 = vmatpush1.bf16.msra.mxu0 0
        %4821 = vmatprep.subr.bf16.mxu0 0
        %4822 = vmatpush1.bf16.msra.mxu0 0
        %4823 = vmatprep.subr.bf16.mxu0 0
        %4824 = vmatpush1.bf16.msra.mxu0 0
        %4825 = vmatprep.mubr.bf16.mxu0 0
        %4826 = vmatmul.mubr.bf16.gmra.mrb[0].mxu0 %v4770
        %v4827 = vpop.f32.mrb[0].mxu0
        %v4828 = vadd.f32 0.0, %v4827
        %v4829 = vpop.f32.mrb[0].mxu0
        %v4830 = vpop.f32.mrb[0].mxu0
        %v4831 = vadd.f32 0.0, %v4830
        %v4832 = vpop.f32.mrb[0].mxu0
        %4833 = vmatprep.mubr.bf16.mxu0 0
        %4834 = vmatmul.mubr.bf16.gmra.mrb[0].mxu0 %v4773
        %v4835 = vpop.f32.mrb[0].mxu0
        %v4836 = vadd.f32 0.0, %v4835
        %v4837 = vpop.f32.mrb[0].mxu0
        %v4838 = vpop.f32.mrb[0].mxu0
        %v4839 = vadd.f32 0.0, %v4838
        %v4840 = vpop.f32.mrb[0].mxu0
        %4841 = vmatprep.mubr.bf16.mxu0 0
        %4842 = vmatmul.mubr.bf16.gmra.mrb[0].mxu0 %v4776
        %v4843 = vpop.f32.mrb[0].mxu0
        %v4844 = vadd.f32 0.0, %v4843
        %v4845 = vpop.f32.mrb[0].mxu0
        %v4846 = vpop.f32.mrb[0].mxu0
        %v4847 = vadd.f32 0.0, %v4846
        %v4848 = vpop.f32.mrb[0].mxu0
        %4849 = vmatprep.mubr.bf16.mxu0 0
        %4850 = vmatmul.mubr.bf16.gmra.mrb[0].mxu0 %v4779
        %v4851 = vpop.f32.mrb[0].mxu0
        %v4852 = vadd.f32 0.0, %v4851
        %v4853 = vpop.f32.mrb[0].mxu0
        %v4854 = vpop.f32.mrb[0].mxu0
        %v4855 = vadd.f32 0.0, %v4854
        %v4856 = vpop.f32.mrb[0].mxu0
        %4857 = vmatprep.mubr.bf16.mxu0 0
        %4858 = vmatmul.mubr.bf16.gmra.mrb[0].mxu0 %v4782
        %v4859 = vpop.f32.mrb[0].mxu0
        %v4860 = vadd.f32 0.0, %v4859
        %v4861 = vpop.f32.mrb[0].mxu0
        %v4862 = vpop.f32.mrb[0].mxu0
        %v4863 = vadd.f32 0.0, %v4862
        %v4864 = vpop.f32.mrb[0].mxu0
        %4865 = vmatprep.mubr.bf16.mxu0 0
        %4866 = vmatmul.mubr.bf16.gmra.mrb[0].mxu0 %v4785
        %v4867 = vpop.f32.mrb[0].mxu0
        %v4868 = vadd.f32 0.0, %v4867
        %v4869 = vpop.f32.mrb[0].mxu0
        %v4870 = vpop.f32.mrb[0].mxu0
        %v4871 = vadd.f32 0.0, %v4870
        %v4872 = vpop.f32.mrb[0].mxu0
        %4873 = vmatprep.mubr.bf16.mxu0 0
        %4874 = vmatmul.mubr.bf16.gmra.mrb[0].mxu0 %v4788
        %v4875 = vpop.f32.mrb[0].mxu0
        %v4876 = vadd.f32 0.0, %v4875
        %v4877 = vpop.f32.mrb[0].mxu0
        %v4878 = vpop.f32.mrb[0].mxu0
        %v4879 = vadd.f32 0.0, %v4878
        %v4880 = vpop.f32.mrb[0].mxu0
        %4881 = vmatprep.mubr.bf16.mxu0 0
        %4882 = vmatmul.mubr.bf16.gmra.mrb[0].mxu0 %v4791
        %v4883 = vpop.f32.mrb[0].mxu0
        %v4884 = vadd.f32 0.0, %v4883
        %v4885 = vpop.f32.mrb[0].mxu0
        %v4886 = vpop.f32.mrb[0].mxu0
        %v4887 = vpop.f32.mrb[0].mxu0
        %4888 = vdwg.mxu0
        %v4889 = vadd.f32 %v4705, %v4828
        %v4890 = vadd.f32 %v4706, %v4831
        %v4891 = vadd.f32 %v4707, %v4836
        %v4892 = vadd.f32 %v4708, %v4839
        %v4893 = vadd.f32 %v4709, %v4844
        %v4894 = vadd.f32 %v4710, %v4847
        %v4895 = vadd.f32 %v4711, %v4852
        %v4896 = vadd.f32 %v4712, %v4855
        %v4897 = vadd.f32 %v4713, %v4860
        %v4898 = vadd.f32 %v4714, %v4863
        %v4899 = vadd.f32 %v4715, %v4868
        %v4900 = vadd.f32 %v4716, %v4871
        %v4901 = vadd.f32 %v4717, %v4876
        %v4902 = vadd.f32 %v4718, %v4879
        %v4903 = vadd.f32 %v4719, %v4884
        %v4904 = vld [vmem:[%s16] sm:$0x1]
        %v4906 = vlaneseq
        %v4907 = vshrl.u32 %v4906, 7
        %v4908 = vsub.s32 0, %v4907
        %v4909 = vrot.slane %v4904, %v4908
        %v4911 = vadd.f32 %v4889, %v4909
        %v4912 = vadd.f32 %v4890, %v4909
        %v4913 = vadd.f32 %v4891, %v4909
        %v4914 = vadd.f32 %v4892, %v4909
        %v4915 = vadd.f32 %v4893, %v4909
        %v4916 = vadd.f32 %v4894, %v4909
        %v4917 = vadd.f32 %v4895, %v4909
        %v4918 = vadd.f32 %v4896, %v4909
        %v4919 = vadd.f32 %v4897, %v4909
        %v4920 = vadd.f32 %v4898, %v4909
        %v4921 = vadd.f32 %v4899, %v4909
        %v4922 = vadd.f32 %v4900, %v4909
        %v4923 = vadd.f32 %v4901, %v4909
        %v4924 = vadd.f32 %v4902, %v4909
        %v4925 = vadd.f32 %v4903, %v4909
        %v4926 = vmax.f32 %v4911, 0.0
        %v4927 = vmax.f32 %v4912, 0.0
        %v4928 = vmax.f32 %v4913, 0.0
        %v4929 = vmax.f32 %v4914, 0.0
        %v4930 = vmax.f32 %v4915, 0.0
        %v4931 = vmax.f32 %v4916, 0.0
        %v4932 = vmax.f32 %v4917, 0.0
        %v4933 = vmax.f32 %v4918, 0.0
        %v4934 = vmax.f32 %v4919, 0.0
        %v4935 = vmax.f32 %v4920, 0.0
        %v4936 = vmax.f32 %v4921, 0.0
        %v4937 = vmax.f32 %v4922, 0.0
        %v4938 = vmax.f32 %v4923, 0.0
        %v4939 = vmax.f32 %v4924, 0.0
        %v4940 = vmax.f32 %v4925, 0.0
        %v4941 = vpack.c.bf16 %v4927, %v4926
        %v4942 = vpack.c.bf16 %v4929, %v4928
        %v4943 = vpack.c.bf16 %v4931, %v4930
        %v4944 = vpack.c.bf16 %v4933, %v4932
        %v4945 = vpack.c.bf16 %v4935, %v4934
        %v4946 = vpack.c.bf16 %v4937, %v4936
        %v4947 = vpack.c.bf16 %v4939, %v4938
        %v4948 = vpack.c.bf16 %v4940, %v4940
        %v4949 = vld [vmem:[%s17] sm:$0xf]
        %v4950 = vld [vmem:[%s17 + $0x4] sm:$0xf]
        %v4951 = vld [vmem:[%s17 + $0x8] sm:$0xf]
        %v4952 = vld [vmem:[%s17 + $0xc] sm:$0xf]
        %v4953 = vld [vmem:[%s17 + $0x10] sm:$0xf]
        %v4954 = vld [vmem:[%s17 + $0x14] sm:$0xf]
        %v4955 = vld [vmem:[%s17 + $0x18] sm:$0xf]
        %v4956 = vld [vmem:[%s17 + $0x1c] sm:$0xf]
        %v4957 = vld [vmem:[%s17 + $0x20] sm:$0xf]
        %v4958 = vld [vmem:[%s17 + $0x24] sm:$0xf]
        %v4959 = vld [vmem:[%s17 + $0x28] sm:$0xf]
        %v4960 = vld [vmem:[%s17 + $0x2c] sm:$0xf]
        %v4961 = vld [vmem:[%s17 + $0x30] sm:$0xf]
        %v4962 = vld [vmem:[%s17 + $0x34] sm:$0xf]
        %v4963 = vld [vmem:[%s17 + $0x38] sm:$0xf]
        %v4964 = vld [vmem:[%s17 + $0x3c] sm:$0xf]
        %v4965 = vld [vmem:[%s17 + $0x40] sm:$0xf]
        %v4966 = vld [vmem:[%s17 + $0x44] sm:$0xf]
        %v4967 = vld [vmem:[%s17 + $0x48] sm:$0xf]
        %v4968 = vld [vmem:[%s17 + $0x4c] sm:$0xf]
        %v4969 = vld [vmem:[%s17 + $0x50] sm:$0xf]
        %v4970 = vld [vmem:[%s17 + $0x54] sm:$0xf]
        %v4971 = vld [vmem:[%s17 + $0x58] sm:$0xf]
        %v4972 = vld [vmem:[%s17 + $0x5c] sm:$0xf]
        %v4973 = vld [vmem:[%s17 + $0x60] sm:$0xf]
        %v4974 = vld [vmem:[%s17 + $0x64] sm:$0xf]
        %v4975 = vld [vmem:[%s17 + $0x68] sm:$0xf]
        %v4976 = vld [vmem:[%s17 + $0x6c] sm:$0xf]
        %v4977 = vld [vmem:[%s17 + $0x70] sm:$0xf]
        %v4978 = vld [vmem:[%s17 + $0x74] sm:$0xf]
        %v4979 = vld [vmem:[%s17 + $0x78] sm:$0xf]
        %v4980 = vld [vmem:[%s17 + $0x7c] sm:$0xf]
        %v4981 = vld [vmem:[%s17 + $0x80] sm:$0xf]
        %v4982 = vld [vmem:[%s17 + $0x84] sm:$0xf]
        %v4983 = vld [vmem:[%s17 + $0x88] sm:$0xf]
        %v4984 = vld [vmem:[%s17 + $0x8c] sm:$0xf]
        %v4985 = vld [vmem:[%s17 + $0x90] sm:$0xf]
        %v4986 = vld [vmem:[%s17 + $0x94] sm:$0xf]
        %v4987 = vld [vmem:[%s17 + $0x98] sm:$0xf]
        %v4988 = vld [vmem:[%s17 + $0x9c] sm:$0xf]
        %v4989 = vld [vmem:[%s17 + $0xa0] sm:$0xf]
        %v4990 = vld [vmem:[%s17 + $0xa4] sm:$0xf]
        %v4991 = vld [vmem:[%s17 + $0xa8] sm:$0xf]
        %v4992 = vld [vmem:[%s17 + $0xac] sm:$0xf]
        %v4993 = vld [vmem:[%s17 + $0xb0] sm:$0xf]
        %v4994 = vld [vmem:[%s17 + $0xb4] sm:$0xf]
        %v4995 = vld [vmem:[%s17 + $0xb8] sm:$0xf]
        %v4996 = vld [vmem:[%s17 + $0xbc] sm:$0xf]
        %v4997 = vld [vmem:[%s17 + $0xc0] sm:$0xf]
        %v4998 = vld [vmem:[%s17 + $0xc4] sm:$0xf]
        %v4999 = vld [vmem:[%s17 + $0xc8] sm:$0xf]
        %v5000 = vld [vmem:[%s17 + $0xcc] sm:$0xf]
        %v5001 = vld [vmem:[%s17 + $0xd0] sm:$0xf]
        %v5002 = vld [vmem:[%s17 + $0xd4] sm:$0xf]
        %v5003 = vld [vmem:[%s17 + $0xd8] sm:$0xf]
        %v5004 = vld [vmem:[%s17 + $0xdc] sm:$0xf]
        %v5061 = vunpack.c.l.b16 %v4949
        %v5062 = vunpack.c.l.b16 %v4950
        %v5063 = vunpack.c.l.b16 %v4951
        %v5064 = vunpack.c.l.b16 %v4952
        %v5065 = vunpack.c.l.b16 %v4953
        %v5066 = vunpack.c.l.b16 %v4954
        %v5067 = vunpack.c.l.b16 %v4955
        %v5068 = vunpack.c.l.b16 %v4956
        %v5069 = vunpack.c.l.b16 %v4957
        %v5070 = vunpack.c.l.b16 %v4958
        %v5071 = vunpack.c.l.b16 %v4959
        %v5072 = vunpack.c.l.b16 %v4960
        %v5073 = vunpack.c.l.b16 %v4961
        %v5074 = vunpack.c.l.b16 %v4962
        %v5075 = vunpack.c.l.b16 %v4963
        %v5076 = vunpack.c.l.b16 %v4964
        %v5077 = vunpack.c.l.b16 %v4965
        %v5078 = vunpack.c.l.b16 %v4966
        %v5079 = vunpack.c.l.b16 %v4967
        %v5080 = vunpack.c.l.b16 %v4968
        %v5081 = vunpack.c.l.b16 %v4969
        %v5082 = vunpack.c.l.b16 %v4970
        %v5083 = vunpack.c.l.b16 %v4971
        %v5084 = vunpack.c.l.b16 %v4972
        %v5085 = vunpack.c.l.b16 %v4973
        %v5086 = vunpack.c.l.b16 %v4974
        %v5087 = vunpack.c.l.b16 %v4975
        %v5088 = vunpack.c.l.b16 %v4976
        %v5089 = vunpack.c.l.b16 %v4977
        %v5090 = vunpack.c.l.b16 %v4978
        %v5091 = vunpack.c.l.b16 %v4979
        %v5092 = vunpack.c.l.b16 %v4980
        %v5093 = vunpack.c.l.b16 %v4981
        %v5094 = vunpack.c.l.b16 %v4982
        %v5095 = vunpack.c.l.b16 %v4983
        %v5096 = vunpack.c.l.b16 %v4984
        %v5097 = vunpack.c.l.b16 %v4985
        %v5098 = vunpack.c.l.b16 %v4986
        %v5099 = vunpack.c.l.b16 %v4987
        %v5100 = vunpack.c.l.b16 %v4988
        %v5101 = vunpack.c.l.b16 %v4989
        %v5102 = vunpack.c.l.b16 %v4990
        %v5103 = vunpack.c.l.b16 %v4991
        %v5104 = vunpack.c.l.b16 %v4992
        %v5105 = vunpack.c.l.b16 %v4993
        %v5106 = vunpack.c.l.b16 %v4994
        %v5107 = vunpack.c.l.b16 %v4995
        %v5108 = vunpack.c.l.b16 %v4996
        %v5109 = vunpack.c.l.b16 %v4997
        %v5110 = vunpack.c.l.b16 %v4998
        %v5111 = vunpack.c.l.b16 %v4999
        %v5112 = vunpack.c.l.b16 %v5000
        %v5113 = vunpack.c.l.b16 %v5001
        %v5114 = vunpack.c.l.b16 %v5002
        %v5115 = vunpack.c.l.b16 %v5003
        %v5116 = vunpack.c.l.b16 %v5004
        %v5117 = vpack.c.b16 %v5062, %v5061
        %v5118 = vpack.c.b16 %v5064, %v5063
        %v5119 = vpack.c.b16 %v5066, %v5065
        %v5120 = vpack.c.b16 %v5068, %v5067
        %v5121 = vpack.c.b16 %v5070, %v5069
        %v5122 = vpack.c.b16 %v5072, %v5071
        %v5123 = vpack.c.b16 %v5074, %v5073
        %v5124 = vpack.c.b16 %v5076, %v5075
        %v5125 = vpack.c.b16 %v5078, %v5077
        %v5126 = vpack.c.b16 %v5080, %v5079
        %v5127 = vpack.c.b16 %v5082, %v5081
        %v5128 = vpack.c.b16 %v5084, %v5083
        %v5129 = vpack.c.b16 %v5086, %v5085
        %v5130 = vpack.c.b16 %v5088, %v5087
        %v5131 = vpack.c.b16 %v5090, %v5089
        %v5132 = vpack.c.b16 %v5092, %v5091
        %v5133 = vpack.c.b16 %v5094, %v5093
        %v5134 = vpack.c.b16 %v5096, %v5095
        %v5135 = vpack.c.b16 %v5098, %v5097
        %v5136 = vpack.c.b16 %v5100, %v5099
        %v5137 = vpack.c.b16 %v5102, %v5101
        %v5138 = vpack.c.b16 %v5104, %v5103
        %v5139 = vpack.c.b16 %v5106, %v5105
        %v5140 = vpack.c.b16 %v5108, %v5107
        %v5141 = vpack.c.b16 %v5110, %v5109
        %v5142 = vpack.c.b16 %v5112, %v5111
        %v5143 = vpack.c.b16 %v5114, %v5113
        %v5144 = vpack.c.b16 %v5116, %v5115
        %vm5145 = vcmask 982016
        %v5147 = vsel %vm5145, %v5117, 0
        %v5150 = vsel %vm5145, %v5118, 0
        %v5153 = vsel %vm5145, %v5119, 0
        %v5156 = vsel %vm5145, %v5120, 0
        %v5159 = vsel %vm5145, %v5121, 0
        %v5162 = vsel %vm5145, %v5122, 0
        %v5165 = vsel %vm5145, %v5123, 0
        %v5168 = vsel %vm5145, %v5124, 0
        %v5171 = vsel %vm5145, %v5125, 0
        %v5174 = vsel %vm5145, %v5126, 0
        %v5177 = vsel %vm5145, %v5127, 0
        %v5180 = vsel %vm5145, %v5128, 0
        %v5183 = vsel %vm5145, %v5129, 0
        %v5186 = vsel %vm5145, %v5130, 0
        %v5189 = vsel %vm5145, %v5131, 0
        %v5192 = vsel %vm5145, %v5132, 0
        %v5195 = vsel %vm5145, %v5133, 0
        %v5198 = vsel %vm5145, %v5134, 0
        %v5201 = vsel %vm5145, %v5135, 0
        %v5204 = vsel %vm5145, %v5136, 0
        %v5207 = vsel %vm5145, %v5137, 0
        %v5210 = vsel %vm5145, %v5138, 0
        %v5213 = vsel %vm5145, %v5139, 0
        %v5216 = vsel %vm5145, %v5140, 0
        %v5219 = vsel %vm5145, %v5141, 0
        %v5222 = vsel %vm5145, %v5142, 0
        %v5225 = vsel %vm5145, %v5143, 0
        %v5228 = vsel %vm5145, %v5144, 0
        %v5231 = vsel %vm2203, %v4948, 0
        %5233 = vmatprep.subr.bf16.mxu0 0
        %5234 = vmatpush1.bf16.msra.mxu0 %v4941
        %5235 = vmatprep.subr.bf16.mxu0 0
        %5236 = vmatpush1.bf16.msra.mxu0 %v4942
        %5237 = vmatprep.subr.bf16.mxu0 0
        %5238 = vmatpush1.bf16.msra.mxu0 %v4943
        %5239 = vmatprep.subr.bf16.mxu0 0
        %5240 = vmatpush1.bf16.msra.mxu0 %v4944
        %5241 = vmatprep.subr.bf16.mxu0 0
        %5242 = vmatpush1.bf16.msra.mxu0 %v4945
        %5243 = vmatprep.subr.bf16.mxu0 0
        %5244 = vmatpush1.bf16.msra.mxu0 %v4946
        %5245 = vmatprep.subr.bf16.mxu0 0
        %5246 = vmatpush1.bf16.msra.mxu0 %v4947
        %5247 = vmatprep.subr.bf16.mxu0 0
        %5248 = vmatpush1.bf16.msra.mxu0 %v5231
        %5249 = vmatprep.subr.bf16.mxu0 0
        %5250 = vmatpush1.bf16.msra.mxu0 0
        %5251 = vmatprep.subr.bf16.mxu0 0
        %5252 = vmatpush1.bf16.msra.mxu0 0
        %5253 = vmatprep.subr.bf16.mxu0 0
        %5254 = vmatpush1.bf16.msra.mxu0 0
        %5255 = vmatprep.subr.bf16.mxu0 0
        %5256 = vmatpush1.bf16.msra.mxu0 0
        %5257 = vmatprep.subr.bf16.mxu0 0
        %5258 = vmatpush1.bf16.msra.mxu0 0
        %5259 = vmatprep.subr.bf16.mxu0 0
        %5260 = vmatpush1.bf16.msra.mxu0 0
        %5261 = vmatprep.subr.bf16.mxu0 0
        %5262 = vmatpush1.bf16.msra.mxu0 0
        %5263 = vmatprep.subr.bf16.mxu0 0
        %5264 = vmatpush1.bf16.msra.mxu0 0
        %5265 = vmatprep.mubr.bf16.mxu0 0
        %5266 = vmatmul.mubr.bf16.gmra.mrb[0].mxu0 %v5147
        %v5267 = vpop.f32.mrb[0].mxu0
        %v5268 = vadd.f32 0.0, %v5267
        %v5269 = vpop.f32.mrb[0].mxu0
        %v5270 = vpop.f32.mrb[0].mxu0
        %v5271 = vadd.f32 0.0, %v5270
        %v5272 = vpop.f32.mrb[0].mxu0
        %5273 = vmatprep.mubr.bf16.mxu0 0
        %5274 = vmatmul.mubr.bf16.gmra.mrb[0].mxu0 %v5150
        %v5275 = vpop.f32.mrb[0].mxu0
        %v5276 = vadd.f32 0.0, %v5275
        %v5277 = vpop.f32.mrb[0].mxu0
        %v5278 = vpop.f32.mrb[0].mxu0
        %v5279 = vadd.f32 0.0, %v5278
        %v5280 = vpop.f32.mrb[0].mxu0
        %5281 = vmatprep.mubr.bf16.mxu0 0
        %5282 = vmatmul.mubr.bf16.gmra.mrb[0].mxu0 %v5153
        %v5283 = vpop.f32.mrb[0].mxu0
        %v5284 = vadd.f32 0.0, %v5283
        %v5285 = vpop.f32.mrb[0].mxu0
        %v5286 = vpop.f32.mrb[0].mxu0
        %v5287 = vadd.f32 0.0, %v5286
        %v5288 = vpop.f32.mrb[0].mxu0
        %5289 = vmatprep.mubr.bf16.mxu0 0
        %5290 = vmatmul.mubr.bf16.gmra.mrb[0].mxu0 %v5156
        %v5291 = vpop.f32.mrb[0].mxu0
        %v5292 = vadd.f32 0.0, %v5291
        %v5293 = vpop.f32.mrb[0].mxu0
        %v5294 = vpop.f32.mrb[0].mxu0
        %v5295 = vadd.f32 0.0, %v5294
        %v5296 = vpop.f32.mrb[0].mxu0
        %5297 = vmatprep.mubr.bf16.mxu0 0
        %5298 = vmatmul.mubr.bf16.gmra.mrb[0].mxu0 %v5159
        %v5299 = vpop.f32.mrb[0].mxu0
        %v5300 = vadd.f32 0.0, %v5299
        %v5301 = vpop.f32.mrb[0].mxu0
        %v5302 = vpop.f32.mrb[0].mxu0
        %v5303 = vadd.f32 0.0, %v5302
        %v5304 = vpop.f32.mrb[0].mxu0
        %5305 = vmatprep.mubr.bf16.mxu0 0
        %5306 = vmatmul.mubr.bf16.gmra.mrb[0].mxu0 %v5162
        %v5307 = vpop.f32.mrb[0].mxu0
        %v5308 = vadd.f32 0.0, %v5307
        %v5309 = vpop.f32.mrb[0].mxu0
        %v5310 = vpop.f32.mrb[0].mxu0
        %v5311 = vadd.f32 0.0, %v5310
        %v5312 = vpop.f32.mrb[0].mxu0
        %5313 = vmatprep.mubr.bf16.mxu0 0
        %5314 = vmatmul.mubr.bf16.gmra.mrb[0].mxu0 %v5165
        %v5315 = vpop.f32.mrb[0].mxu0
        %v5316 = vadd.f32 0.0, %v5315
        %v5317 = vpop.f32.mrb[0].mxu0
        %v5318 = vpop.f32.mrb[0].mxu0
        %v5319 = vadd.f32 0.0, %v5318
        %v5320 = vpop.f32.mrb[0].mxu0
        %5321 = vmatprep.mubr.bf16.mxu0 0
        %5322 = vmatmul.mubr.bf16.gmra.mrb[0].mxu0 %v5168
        %v5323 = vpop.f32.mrb[0].mxu0
        %v5324 = vadd.f32 0.0, %v5323
        %v5325 = vpop.f32.mrb[0].mxu0
        %v5326 = vpop.f32.mrb[0].mxu0
        %v5327 = vadd.f32 0.0, %v5326
        %v5328 = vpop.f32.mrb[0].mxu0
        %5329 = vmatprep.mubr.bf16.mxu0 0
        %5330 = vmatmul.mubr.bf16.gmra.mrb[0].mxu0 %v5171
        %v5331 = vpop.f32.mrb[0].mxu0
        %v5332 = vadd.f32 0.0, %v5331
        %v5333 = vpop.f32.mrb[0].mxu0
        %v5334 = vpop.f32.mrb[0].mxu0
        %v5335 = vadd.f32 0.0, %v5334
        %v5336 = vpop.f32.mrb[0].mxu0
        %5337 = vmatprep.mubr.bf16.mxu0 0
        %5338 = vmatmul.mubr.bf16.gmra.mrb[0].mxu0 %v5174
        %v5339 = vpop.f32.mrb[0].mxu0
        %v5340 = vadd.f32 0.0, %v5339
        %v5341 = vpop.f32.mrb[0].mxu0
        %v5342 = vpop.f32.mrb[0].mxu0
        %v5343 = vadd.f32 0.0, %v5342
        %v5344 = vpop.f32.mrb[0].mxu0
        %5345 = vmatprep.mubr.bf16.mxu0 0
        %5346 = vmatmul.mubr.bf16.gmra.mrb[0].mxu0 %v5177
        %v5347 = vpop.f32.mrb[0].mxu0
        %v5348 = vadd.f32 0.0, %v5347
        %v5349 = vpop.f32.mrb[0].mxu0
        %v5350 = vpop.f32.mrb[0].mxu0
        %v5351 = vadd.f32 0.0, %v5350
        %v5352 = vpop.f32.mrb[0].mxu0
        %5353 = vmatprep.mubr.bf16.mxu0 0
        %5354 = vmatmul.mubr.bf16.gmra.mrb[0].mxu0 %v5180
        %v5355 = vpop.f32.mrb[0].mxu0
        %v5356 = vadd.f32 0.0, %v5355
        %v5357 = vpop.f32.mrb[0].mxu0
        %v5358 = vpop.f32.mrb[0].mxu0
        %v5359 = vadd.f32 0.0, %v5358
        %v5360 = vpop.f32.mrb[0].mxu0
        %5361 = vmatprep.mubr.bf16.mxu0 0
        %5362 = vmatmul.mubr.bf16.gmra.mrb[0].mxu0 %v5183
        %v5363 = vpop.f32.mrb[0].mxu0
        %v5364 = vadd.f32 0.0, %v5363
        %v5365 = vpop.f32.mrb[0].mxu0
        %v5366 = vpop.f32.mrb[0].mxu0
        %v5367 = vadd.f32 0.0, %v5366
        %v5368 = vpop.f32.mrb[0].mxu0
        %5369 = vmatprep.mubr.bf16.mxu0 0
        %5370 = vmatmul.mubr.bf16.gmra.mrb[0].mxu0 %v5186
        %v5371 = vpop.f32.mrb[0].mxu0
        %v5372 = vadd.f32 0.0, %v5371
        %v5373 = vpop.f32.mrb[0].mxu0
        %v5374 = vpop.f32.mrb[0].mxu0
        %v5375 = vadd.f32 0.0, %v5374
        %v5376 = vpop.f32.mrb[0].mxu0
        %5377 = vmatprep.mubr.bf16.mxu0 0
        %5378 = vmatmul.mubr.bf16.gmra.mrb[0].mxu0 %v5189
        %v5379 = vpop.f32.mrb[0].mxu0
        %v5380 = vadd.f32 0.0, %v5379
        %v5381 = vpop.f32.mrb[0].mxu0
        %v5382 = vpop.f32.mrb[0].mxu0
        %v5383 = vadd.f32 0.0, %v5382
        %v5384 = vpop.f32.mrb[0].mxu0
        %5385 = vmatprep.mubr.bf16.mxu0 0
        %5386 = vmatmul.mubr.bf16.gmra.mrb[0].mxu0 %v5192
        %v5387 = vpop.f32.mrb[0].mxu0
        %v5388 = vadd.f32 0.0, %v5387
        %v5389 = vpop.f32.mrb[0].mxu0
        %v5390 = vpop.f32.mrb[0].mxu0
        %v5391 = vadd.f32 0.0, %v5390
        %v5392 = vpop.f32.mrb[0].mxu0
        %5393 = vmatprep.mubr.bf16.mxu0 0
        %5394 = vmatmul.mubr.bf16.gmra.mrb[0].mxu0 %v5195
        %v5395 = vpop.f32.mrb[0].mxu0
        %v5396 = vadd.f32 0.0, %v5395
        %v5397 = vpop.f32.mrb[0].mxu0
        %v5398 = vpop.f32.mrb[0].mxu0
        %v5399 = vadd.f32 0.0, %v5398
        %v5400 = vpop.f32.mrb[0].mxu0
        %5401 = vmatprep.mubr.bf16.mxu0 0
        %5402 = vmatmul.mubr.bf16.gmra.mrb[0].mxu0 %v5198
        %v5403 = vpop.f32.mrb[0].mxu0
        %v5404 = vadd.f32 0.0, %v5403
        %v5405 = vpop.f32.mrb[0].mxu0
        %v5406 = vpop.f32.mrb[0].mxu0
        %v5407 = vadd.f32 0.0, %v5406
        %v5408 = vpop.f32.mrb[0].mxu0
        %5409 = vmatprep.mubr.bf16.mxu0 0
        %5410 = vmatmul.mubr.bf16.gmra.mrb[0].mxu0 %v5201
        %v5411 = vpop.f32.mrb[0].mxu0
        %v5412 = vadd.f32 0.0, %v5411
        %v5413 = vpop.f32.mrb[0].mxu0
        %v5414 = vpop.f32.mrb[0].mxu0
        %v5415 = vadd.f32 0.0, %v5414
        %v5416 = vpop.f32.mrb[0].mxu0
        %5417 = vmatprep.mubr.bf16.mxu0 0
        %5418 = vmatmul.mubr.bf16.gmra.mrb[0].mxu0 %v5204
        %v5419 = vpop.f32.mrb[0].mxu0
        %v5420 = vadd.f32 0.0, %v5419
        %v5421 = vpop.f32.mrb[0].mxu0
        %v5422 = vpop.f32.mrb[0].mxu0
        %v5423 = vadd.f32 0.0, %v5422
        %v5424 = vpop.f32.mrb[0].mxu0
        %5425 = vmatprep.mubr.bf16.mxu0 0
        %5426 = vmatmul.mubr.bf16.gmra.mrb[0].mxu0 %v5207
        %v5427 = vpop.f32.mrb[0].mxu0
        %v5428 = vadd.f32 0.0, %v5427
        %v5429 = vpop.f32.mrb[0].mxu0
        %v5430 = vpop.f32.mrb[0].mxu0
        %v5431 = vadd.f32 0.0, %v5430
        %v5432 = vpop.f32.mrb[0].mxu0
        %5433 = vmatprep.mubr.bf16.mxu0 0
        %5434 = vmatmul.mubr.bf16.gmra.mrb[0].mxu0 %v5210
        %v5435 = vpop.f32.mrb[0].mxu0
        %v5436 = vadd.f32 0.0, %v5435
        %v5437 = vpop.f32.mrb[0].mxu0
        %v5438 = vpop.f32.mrb[0].mxu0
        %v5439 = vadd.f32 0.0, %v5438
        %v5440 = vpop.f32.mrb[0].mxu0
        %5441 = vmatprep.mubr.bf16.mxu0 0
        %5442 = vmatmul.mubr.bf16.gmra.mrb[0].mxu0 %v5213
        %v5443 = vpop.f32.mrb[0].mxu0
        %v5444 = vadd.f32 0.0, %v5443
        %v5445 = vpop.f32.mrb[0].mxu0
        %v5446 = vpop.f32.mrb[0].mxu0
        %v5447 = vadd.f32 0.0, %v5446
        %v5448 = vpop.f32.mrb[0].mxu0
        %5449 = vmatprep.mubr.bf16.mxu0 0
        %5450 = vmatmul.mubr.bf16.gmra.mrb[0].mxu0 %v5216
        %v5451 = vpop.f32.mrb[0].mxu0
        %v5452 = vadd.f32 0.0, %v5451
        %v5453 = vpop.f32.mrb[0].mxu0
        %v5454 = vpop.f32.mrb[0].mxu0
        %v5455 = vadd.f32 0.0, %v5454
        %v5456 = vpop.f32.mrb[0].mxu0
        %5457 = vmatprep.mubr.bf16.mxu0 0
        %5458 = vmatmul.mubr.bf16.gmra.mrb[0].mxu0 %v5219
        %v5459 = vpop.f32.mrb[0].mxu0
        %v5460 = vadd.f32 0.0, %v5459
        %v5461 = vpop.f32.mrb[0].mxu0
        %v5462 = vpop.f32.mrb[0].mxu0
        %v5463 = vadd.f32 0.0, %v5462
        %v5464 = vpop.f32.mrb[0].mxu0
        %5465 = vmatprep.mubr.bf16.mxu0 0
        %5466 = vmatmul.mubr.bf16.gmra.mrb[0].mxu0 %v5222
        %v5467 = vpop.f32.mrb[0].mxu0
        %v5468 = vadd.f32 0.0, %v5467
        %v5469 = vpop.f32.mrb[0].mxu0
        %v5470 = vpop.f32.mrb[0].mxu0
        %v5471 = vadd.f32 0.0, %v5470
        %v5472 = vpop.f32.mrb[0].mxu0
        %5473 = vmatprep.mubr.bf16.mxu0 0
        %5474 = vmatmul.mubr.bf16.gmra.mrb[0].mxu0 %v5225
        %v5475 = vpop.f32.mrb[0].mxu0
        %v5476 = vadd.f32 0.0, %v5475
        %v5477 = vpop.f32.mrb[0].mxu0
        %v5478 = vpop.f32.mrb[0].mxu0
        %v5479 = vadd.f32 0.0, %v5478
        %v5480 = vpop.f32.mrb[0].mxu0
        %5481 = vmatprep.mubr.bf16.mxu0 0
        %5482 = vmatmul.mubr.bf16.gmra.mrb[0].mxu0 %v5228
        %v5483 = vpop.f32.mrb[0].mxu0
        %v5484 = vadd.f32 0.0, %v5483
        %v5485 = vpop.f32.mrb[0].mxu0
        %v5486 = vpop.f32.mrb[0].mxu0
        %v5487 = vadd.f32 0.0, %v5486
        %v5488 = vpop.f32.mrb[0].mxu0
        %5489 = vdwg.mxu0
        %v5490 = vpack.c.bf16 %v5271, %v5268
        %v5491 = vpack.c.bf16 %v5279, %v5276
        %v5492 = vpack.c.bf16 %v5287, %v5284
        %v5493 = vpack.c.bf16 %v5295, %v5292
        %v5494 = vpack.c.bf16 %v5303, %v5300
        %v5495 = vpack.c.bf16 %v5311, %v5308
        %v5496 = vpack.c.bf16 %v5319, %v5316
        %v5497 = vpack.c.bf16 %v5327, %v5324
        %v5498 = vpack.c.bf16 %v5335, %v5332
        %v5499 = vpack.c.bf16 %v5343, %v5340
        %v5500 = vpack.c.bf16 %v5351, %v5348
        %v5501 = vpack.c.bf16 %v5359, %v5356
        %v5502 = vpack.c.bf16 %v5367, %v5364
        %v5503 = vpack.c.bf16 %v5375, %v5372
        %v5504 = vld [vmem:[%s18] sm:$0xf]
        %v5505 = vld [vmem:[%s18 + $0x4] sm:$0xf]
        %v5506 = vld [vmem:[%s18 + $0x8] sm:$0xf]
        %v5507 = vld [vmem:[%s18 + $0xc] sm:$0xf]
        %v5508 = vld [vmem:[%s18 + $0x10] sm:$0xf]
        %v5509 = vld [vmem:[%s18 + $0x14] sm:$0xf]
        %v5510 = vld [vmem:[%s18 + $0x18] sm:$0xf]
        %v5511 = vld [vmem:[%s18 + $0x1c] sm:$0xf]
        %v5512 = vld [vmem:[%s18 + $0x20] sm:$0xf]
        %v5513 = vld [vmem:[%s18 + $0x24] sm:$0xf]
        %v5514 = vld [vmem:[%s18 + $0x28] sm:$0xf]
        %v5515 = vld [vmem:[%s18 + $0x2c] sm:$0xf]
        %v5516 = vld [vmem:[%s18 + $0x30] sm:$0xf]
        %v5517 = vld [vmem:[%s18 + $0x34] sm:$0xf]
        %v5518 = vld [vmem:[%s18 + $0x38] sm:$0xf]
        %v5519 = vpack.c.bf16 %v5383, %v5380
        %v5520 = vpack.c.bf16 %v5391, %v5388
        %v5521 = vpack.c.bf16 %v5399, %v5396
        %v5522 = vpack.c.bf16 %v5407, %v5404
        %v5523 = vpack.c.bf16 %v5415, %v5412
        %v5524 = vpack.c.bf16 %v5423, %v5420
        %v5525 = vpack.c.bf16 %v5431, %v5428
        %v5526 = vpack.c.bf16 %v5439, %v5436
        %v5527 = vpack.c.bf16 %v5447, %v5444
        %v5528 = vpack.c.bf16 %v5455, %v5452
        %v5529 = vpack.c.bf16 %v5463, %v5460
        %v5530 = vpack.c.bf16 %v5471, %v5468
        %v5531 = vpack.c.bf16 %v5479, %v5476
        %v5532 = vpack.c.bf16 %v5487, %v5484
        %s5533 = scalar_lea.vmem %s18, 60
        %v5534 = vld [vmem:[%s5533] sm:$0xf]
        %v5535 = vld [vmem:[%s5533 + $0x4] sm:$0xf]
        %v5536 = vld [vmem:[%s5533 + $0x8] sm:$0xf]
        %v5537 = vld [vmem:[%s5533 + $0xc] sm:$0xf]
        %v5538 = vld [vmem:[%s5533 + $0x10] sm:$0xf]
        %v5539 = vld [vmem:[%s5533 + $0x14] sm:$0xf]
        %v5540 = vld [vmem:[%s5533 + $0x18] sm:$0xf]
        %v5541 = vld [vmem:[%s5533 + $0x1c] sm:$0xf]
        %v5542 = vld [vmem:[%s5533 + $0x20] sm:$0xf]
        %v5543 = vld [vmem:[%s5533 + $0x24] sm:$0xf]
        %v5544 = vld [vmem:[%s5533 + $0x28] sm:$0xf]
        %v5545 = vld [vmem:[%s5533 + $0x2c] sm:$0xf]
        %v5546 = vld [vmem:[%s5533 + $0x30] sm:$0xf]
        %v5547 = vld [vmem:[%s5533 + $0x34] sm:$0xf]
        %v5548 = vld [vmem:[%s5533 + $0x38] sm:$0xf]
        %v5564 = vunpack.c.l.b16 %v5534
        %v5565 = vunpack.c.l.b16 %v5535
        %v5566 = vunpack.c.l.b16 %v5536
        %v5567 = vunpack.c.l.b16 %v5537
        %v5568 = vunpack.c.l.b16 %v5538
        %v5569 = vunpack.c.l.b16 %v5539
        %v5570 = vunpack.c.l.b16 %v5540
        %v5571 = vunpack.c.l.b16 %v5541
        %v5572 = vunpack.c.l.b16 %v5542
        %v5573 = vunpack.c.l.b16 %v5543
        %v5574 = vunpack.c.l.b16 %v5544
        %v5575 = vunpack.c.l.b16 %v5545
        %v5576 = vunpack.c.l.b16 %v5546
        %v5577 = vunpack.c.l.b16 %v5547
        %v5578 = vunpack.c.l.b16 %v5548
        %v5579 = vpack.c.b16 %v5565, %v5564
        %v5580 = vpack.c.b16 %v5567, %v5566
        %v5581 = vpack.c.b16 %v5569, %v5568
        %v5582 = vpack.c.b16 %v5571, %v5570
        %v5583 = vpack.c.b16 %v5573, %v5572
        %v5584 = vpack.c.b16 %v5575, %v5574
        %v5585 = vpack.c.b16 %v5577, %v5576
        %v5586 = vpack.c.b16 %v5578, %v5578
        %v5595 = vsel %vm5145, %v5519, 0
        %v5598 = vsel %vm5145, %v5520, 0
        %v5601 = vsel %vm5145, %v5521, 0
        %v5604 = vsel %vm5145, %v5522, 0
        %v5607 = vsel %vm5145, %v5523, 0
        %v5610 = vsel %vm5145, %v5524, 0
        %v5613 = vsel %vm5145, %v5525, 0
        %v5616 = vsel %vm5145, %v5526, 0
        %v5619 = vsel %vm5145, %v5527, 0
        %v5622 = vsel %vm5145, %v5528, 0
        %v5625 = vsel %vm5145, %v5529, 0
        %v5628 = vsel %vm5145, %v5530, 0
        %v5631 = vsel %vm5145, %v5531, 0
        %v5634 = vsel %vm5145, %v5532, 0
        %v5637 = vsel %vm2203, %v5586, 0
        %5639 = vmatprep.subr.bf16.mxu0 0
        %5640 = vmatpush1.bf16.msra.mxu0 %v5579
        %5641 = vmatprep.subr.bf16.mxu0 0
        %5642 = vmatpush1.bf16.msra.mxu0 %v5580
        %5643 = vmatprep.subr.bf16.mxu0 0
        %5644 = vmatpush1.bf16.msra.mxu0 %v5581
        %5645 = vmatprep.subr.bf16.mxu0 0
        %5646 = vmatpush1.bf16.msra.mxu0 %v5582
        %5647 = vmatprep.subr.bf16.mxu0 0
        %5648 = vmatpush1.bf16.msra.mxu0 %v5583
        %5649 = vmatprep.subr.bf16.mxu0 0
        %5650 = vmatpush1.bf16.msra.mxu0 %v5584
        %5651 = vmatprep.subr.bf16.mxu0 0
        %5652 = vmatpush1.bf16.msra.mxu0 %v5585
        %5653 = vmatprep.subr.bf16.mxu0 0
        %5654 = vmatpush1.bf16.msra.mxu0 %v5637
        %5655 = vmatprep.subr.bf16.mxu0 0
        %5656 = vmatpush1.bf16.msra.mxu0 0
        %5657 = vmatprep.subr.bf16.mxu0 0
        %5658 = vmatpush1.bf16.msra.mxu0 0
        %5659 = vmatprep.subr.bf16.mxu0 0
        %5660 = vmatpush1.bf16.msra.mxu0 0
        %5661 = vmatprep.subr.bf16.mxu0 0
        %5662 = vmatpush1.bf16.msra.mxu0 0
        %5663 = vmatprep.subr.bf16.mxu0 0
        %5664 = vmatpush1.bf16.msra.mxu0 0
        %5665 = vmatprep.subr.bf16.mxu0 0
        %5666 = vmatpush1.bf16.msra.mxu0 0
        %5667 = vmatprep.subr.bf16.mxu0 0
        %5668 = vmatpush1.bf16.msra.mxu0 0
        %5669 = vmatprep.subr.bf16.mxu0 0
        %5670 = vmatpush1.bf16.msra.mxu0 0
        %5671 = vmatprep.mubr.bf16.mxu0 0
        %5672 = vmatmul.mubr.bf16.gmra.mrb[0].mxu0 %v5595
        %v5673 = vpop.f32.mrb[0].mxu0
        %v5674 = vadd.f32 0.0, %v5673
        %v5675 = vpop.f32.mrb[0].mxu0
        %v5676 = vpop.f32.mrb[0].mxu0
        %v5677 = vadd.f32 0.0, %v5676
        %v5678 = vpop.f32.mrb[0].mxu0
        %5679 = vmatprep.mubr.bf16.mxu0 0
        %5680 = vmatmul.mubr.bf16.gmra.mrb[0].mxu0 %v5598
        %v5681 = vpop.f32.mrb[0].mxu0
        %v5682 = vadd.f32 0.0, %v5681
        %v5683 = vpop.f32.mrb[0].mxu0
        %v5684 = vpop.f32.mrb[0].mxu0
        %v5685 = vadd.f32 0.0, %v5684
        %v5686 = vpop.f32.mrb[0].mxu0
        %5687 = vmatprep.mubr.bf16.mxu0 0
        %5688 = vmatmul.mubr.bf16.gmra.mrb[0].mxu0 %v5601
        %v5689 = vpop.f32.mrb[0].mxu0
        %v5690 = vadd.f32 0.0, %v5689
        %v5691 = vpop.f32.mrb[0].mxu0
        %v5692 = vpop.f32.mrb[0].mxu0
        %v5693 = vadd.f32 0.0, %v5692
        %v5694 = vpop.f32.mrb[0].mxu0
        %5695 = vmatprep.mubr.bf16.mxu0 0
        %5696 = vmatmul.mubr.bf16.gmra.mrb[0].mxu0 %v5604
        %v5697 = vpop.f32.mrb[0].mxu0
        %v5698 = vadd.f32 0.0, %v5697
        %v5699 = vpop.f32.mrb[0].mxu0
        %v5700 = vpop.f32.mrb[0].mxu0
        %v5701 = vadd.f32 0.0, %v5700
        %v5702 = vpop.f32.mrb[0].mxu0
        %5703 = vmatprep.mubr.bf16.mxu0 0
        %5704 = vmatmul.mubr.bf16.gmra.mrb[0].mxu0 %v5607
        %v5705 = vpop.f32.mrb[0].mxu0
        %v5706 = vadd.f32 0.0, %v5705
        %v5707 = vpop.f32.mrb[0].mxu0
        %v5708 = vpop.f32.mrb[0].mxu0
        %v5709 = vadd.f32 0.0, %v5708
        %v5710 = vpop.f32.mrb[0].mxu0
        %5711 = vmatprep.mubr.bf16.mxu0 0
        %5712 = vmatmul.mubr.bf16.gmra.mrb[0].mxu0 %v5610
        %v5713 = vpop.f32.mrb[0].mxu0
        %v5714 = vadd.f32 0.0, %v5713
        %v5715 = vpop.f32.mrb[0].mxu0
        %v5716 = vpop.f32.mrb[0].mxu0
        %v5717 = vadd.f32 0.0, %v5716
        %v5718 = vpop.f32.mrb[0].mxu0
        %5719 = vmatprep.mubr.bf16.mxu0 0
        %5720 = vmatmul.mubr.bf16.gmra.mrb[0].mxu0 %v5613
        %v5721 = vpop.f32.mrb[0].mxu0
        %v5722 = vadd.f32 0.0, %v5721
        %v5723 = vpop.f32.mrb[0].mxu0
        %v5724 = vpop.f32.mrb[0].mxu0
        %v5725 = vadd.f32 0.0, %v5724
        %v5726 = vpop.f32.mrb[0].mxu0
        %5727 = vmatprep.mubr.bf16.mxu0 0
        %5728 = vmatmul.mubr.bf16.gmra.mrb[0].mxu0 %v5616
        %v5729 = vpop.f32.mrb[0].mxu0
        %v5730 = vadd.f32 0.0, %v5729
        %v5731 = vpop.f32.mrb[0].mxu0
        %v5732 = vpop.f32.mrb[0].mxu0
        %v5733 = vadd.f32 0.0, %v5732
        %v5734 = vpop.f32.mrb[0].mxu0
        %5735 = vmatprep.mubr.bf16.mxu0 0
        %5736 = vmatmul.mubr.bf16.gmra.mrb[0].mxu0 %v5619
        %v5737 = vpop.f32.mrb[0].mxu0
        %v5738 = vadd.f32 0.0, %v5737
        %v5739 = vpop.f32.mrb[0].mxu0
        %v5740 = vpop.f32.mrb[0].mxu0
        %v5741 = vadd.f32 0.0, %v5740
        %v5742 = vpop.f32.mrb[0].mxu0
        %5743 = vmatprep.mubr.bf16.mxu0 0
        %5744 = vmatmul.mubr.bf16.gmra.mrb[0].mxu0 %v5622
        %v5745 = vpop.f32.mrb[0].mxu0
        %v5746 = vadd.f32 0.0, %v5745
        %v5747 = vpop.f32.mrb[0].mxu0
        %v5748 = vpop.f32.mrb[0].mxu0
        %v5749 = vadd.f32 0.0, %v5748
        %v5750 = vpop.f32.mrb[0].mxu0
        %5751 = vmatprep.mubr.bf16.mxu0 0
        %5752 = vmatmul.mubr.bf16.gmra.mrb[0].mxu0 %v5625
        %v5753 = vpop.f32.mrb[0].mxu0
        %v5754 = vadd.f32 0.0, %v5753
        %v5755 = vpop.f32.mrb[0].mxu0
        %v5756 = vpop.f32.mrb[0].mxu0
        %v5757 = vadd.f32 0.0, %v5756
        %v5758 = vpop.f32.mrb[0].mxu0
        %5759 = vmatprep.mubr.bf16.mxu0 0
        %5760 = vmatmul.mubr.bf16.gmra.mrb[0].mxu0 %v5628
        %v5761 = vpop.f32.mrb[0].mxu0
        %v5762 = vadd.f32 0.0, %v5761
        %v5763 = vpop.f32.mrb[0].mxu0
        %v5764 = vpop.f32.mrb[0].mxu0
        %v5765 = vadd.f32 0.0, %v5764
        %v5766 = vpop.f32.mrb[0].mxu0
        %5767 = vmatprep.mubr.bf16.mxu0 0
        %5768 = vmatmul.mubr.bf16.gmra.mrb[0].mxu0 %v5631
        %v5769 = vpop.f32.mrb[0].mxu0
        %v5770 = vadd.f32 0.0, %v5769
        %v5771 = vpop.f32.mrb[0].mxu0
        %v5772 = vpop.f32.mrb[0].mxu0
        %v5773 = vadd.f32 0.0, %v5772
        %v5774 = vpop.f32.mrb[0].mxu0
        %5775 = vmatprep.mubr.bf16.mxu0 0
        %5776 = vmatmul.mubr.bf16.gmra.mrb[0].mxu0 %v5634
        %v5777 = vpop.f32.mrb[0].mxu0
        %v5778 = vadd.f32 0.0, %v5777
        %v5779 = vpop.f32.mrb[0].mxu0
        %v5780 = vpop.f32.mrb[0].mxu0
        %v5781 = vadd.f32 0.0, %v5780
        %v5782 = vpop.f32.mrb[0].mxu0
        %5783 = vdwg.mxu0
        %v5799 = vunpack.c.l.b16 %v5504
        %v5800 = vunpack.c.l.b16 %v5505
        %v5801 = vunpack.c.l.b16 %v5506
        %v5802 = vunpack.c.l.b16 %v5507
        %v5803 = vunpack.c.l.b16 %v5508
        %v5804 = vunpack.c.l.b16 %v5509
        %v5805 = vunpack.c.l.b16 %v5510
        %v5806 = vunpack.c.l.b16 %v5511
        %v5807 = vunpack.c.l.b16 %v5512
        %v5808 = vunpack.c.l.b16 %v5513
        %v5809 = vunpack.c.l.b16 %v5514
        %v5810 = vunpack.c.l.b16 %v5515
        %v5811 = vunpack.c.l.b16 %v5516
        %v5812 = vunpack.c.l.b16 %v5517
        %v5813 = vunpack.c.l.b16 %v5518
        %v5814 = vpack.c.b16 %v5800, %v5799
        %v5815 = vpack.c.b16 %v5802, %v5801
        %v5816 = vpack.c.b16 %v5804, %v5803
        %v5817 = vpack.c.b16 %v5806, %v5805
        %v5818 = vpack.c.b16 %v5808, %v5807
        %v5819 = vpack.c.b16 %v5810, %v5809
        %v5820 = vpack.c.b16 %v5812, %v5811
        %v5821 = vpack.c.b16 %v5813, %v5813
        %v5830 = vsel %vm5145, %v5490, 0
        %v5833 = vsel %vm5145, %v5491, 0
        %v5836 = vsel %vm5145, %v5492, 0
        %v5839 = vsel %vm5145, %v5493, 0
        %v5842 = vsel %vm5145, %v5494, 0
        %v5845 = vsel %vm5145, %v5495, 0
        %v5848 = vsel %vm5145, %v5496, 0
        %v5851 = vsel %vm5145, %v5497, 0
        %v5854 = vsel %vm5145, %v5498, 0
        %v5857 = vsel %vm5145, %v5499, 0
        %v5860 = vsel %vm5145, %v5500, 0
        %v5863 = vsel %vm5145, %v5501, 0
        %v5866 = vsel %vm5145, %v5502, 0
        %v5869 = vsel %vm5145, %v5503, 0
        %v5872 = vsel %vm2203, %v5821, 0
        %5874 = vmatprep.subr.bf16.mxu0 0
        %5875 = vmatpush1.bf16.msra.mxu0 %v5814
        %5876 = vmatprep.subr.bf16.mxu0 0
        %5877 = vmatpush1.bf16.msra.mxu0 %v5815
        %5878 = vmatprep.subr.bf16.mxu0 0
        %5879 = vmatpush1.bf16.msra.mxu0 %v5816
        %5880 = vmatprep.subr.bf16.mxu0 0
        %5881 = vmatpush1.bf16.msra.mxu0 %v5817
        %5882 = vmatprep.subr.bf16.mxu0 0
        %5883 = vmatpush1.bf16.msra.mxu0 %v5818
        %5884 = vmatprep.subr.bf16.mxu0 0
        %5885 = vmatpush1.bf16.msra.mxu0 %v5819
        %5886 = vmatprep.subr.bf16.mxu0 0
        %5887 = vmatpush1.bf16.msra.mxu0 %v5820
        %5888 = vmatprep.subr.bf16.mxu0 0
        %5889 = vmatpush1.bf16.msra.mxu0 %v5872
        %5890 = vmatprep.subr.bf16.mxu0 0
        %5891 = vmatpush1.bf16.msra.mxu0 0
        %5892 = vmatprep.subr.bf16.mxu0 0
        %5893 = vmatpush1.bf16.msra.mxu0 0
        %5894 = vmatprep.subr.bf16.mxu0 0
        %5895 = vmatpush1.bf16.msra.mxu0 0
        %5896 = vmatprep.subr.bf16.mxu0 0
        %5897 = vmatpush1.bf16.msra.mxu0 0
        %5898 = vmatprep.subr.bf16.mxu0 0
        %5899 = vmatpush1.bf16.msra.mxu0 0
        %5900 = vmatprep.subr.bf16.mxu0 0
        %5901 = vmatpush1.bf16.msra.mxu0 0
        %5902 = vmatprep.subr.bf16.mxu0 0
        %5903 = vmatpush1.bf16.msra.mxu0 0
        %5904 = vmatprep.subr.bf16.mxu0 0
        %5905 = vmatpush1.bf16.msra.mxu0 0
        %5906 = vmatprep.mubr.bf16.mxu0 0
        %5907 = vmatmul.mubr.bf16.gmra.mrb[0].mxu0 %v5830
        %v5908 = vpop.f32.mrb[0].mxu0
        %v5909 = vadd.f32 %v5674, %v5908
        %v5910 = vpop.f32.mrb[0].mxu0
        %v5911 = vpop.f32.mrb[0].mxu0
        %v5912 = vadd.f32 %v5677, %v5911
        %v5913 = vpop.f32.mrb[0].mxu0
        %5914 = vmatprep.mubr.bf16.mxu0 0
        %5915 = vmatmul.mubr.bf16.gmra.mrb[0].mxu0 %v5833
        %v5916 = vpop.f32.mrb[0].mxu0
        %v5917 = vadd.f32 %v5682, %v5916
        %v5918 = vpop.f32.mrb[0].mxu0
        %v5919 = vpop.f32.mrb[0].mxu0
        %v5920 = vadd.f32 %v5685, %v5919
        %v5921 = vpop.f32.mrb[0].mxu0
        %5922 = vmatprep.mubr.bf16.mxu0 0
        %5923 = vmatmul.mubr.bf16.gmra.mrb[0].mxu0 %v5836
        %v5924 = vpop.f32.mrb[0].mxu0
        %v5925 = vadd.f32 %v5690, %v5924
        %v5926 = vpop.f32.mrb[0].mxu0
        %v5927 = vpop.f32.mrb[0].mxu0
        %v5928 = vadd.f32 %v5693, %v5927
        %v5929 = vpop.f32.mrb[0].mxu0
        %5930 = vmatprep.mubr.bf16.mxu0 0
        %5931 = vmatmul.mubr.bf16.gmra.mrb[0].mxu0 %v5839
        %v5932 = vpop.f32.mrb[0].mxu0
        %v5933 = vadd.f32 %v5698, %v5932
        %v5934 = vpop.f32.mrb[0].mxu0
        %v5935 = vpop.f32.mrb[0].mxu0
        %v5936 = vadd.f32 %v5701, %v5935
        %v5937 = vpop.f32.mrb[0].mxu0
        %5938 = vmatprep.mubr.bf16.mxu0 0
        %5939 = vmatmul.mubr.bf16.gmra.mrb[0].mxu0 %v5842
        %v5940 = vpop.f32.mrb[0].mxu0
        %v5941 = vadd.f32 %v5706, %v5940
        %v5942 = vpop.f32.mrb[0].mxu0
        %v5943 = vpop.f32.mrb[0].mxu0
        %v5944 = vadd.f32 %v5709, %v5943
        %v5945 = vpop.f32.mrb[0].mxu0
        %5946 = vmatprep.mubr.bf16.mxu0 0
        %5947 = vmatmul.mubr.bf16.gmra.mrb[0].mxu0 %v5845
        %v5948 = vpop.f32.mrb[0].mxu0
        %v5949 = vadd.f32 %v5714, %v5948
        %v5950 = vpop.f32.mrb[0].mxu0
        %v5951 = vpop.f32.mrb[0].mxu0
        %v5952 = vadd.f32 %v5717, %v5951
        %v5953 = vpop.f32.mrb[0].mxu0
        %5954 = vmatprep.mubr.bf16.mxu0 0
        %5955 = vmatmul.mubr.bf16.gmra.mrb[0].mxu0 %v5848
        %v5956 = vpop.f32.mrb[0].mxu0
        %v5957 = vadd.f32 %v5722, %v5956
        %v5958 = vpop.f32.mrb[0].mxu0
        %v5959 = vpop.f32.mrb[0].mxu0
        %v5960 = vadd.f32 %v5725, %v5959
        %v5961 = vpop.f32.mrb[0].mxu0
        %5962 = vmatprep.mubr.bf16.mxu0 0
        %5963 = vmatmul.mubr.bf16.gmra.mrb[0].mxu0 %v5851
        %v5964 = vpop.f32.mrb[0].mxu0
        %v5965 = vadd.f32 %v5730, %v5964
        %v5966 = vpop.f32.mrb[0].mxu0
        %v5967 = vpop.f32.mrb[0].mxu0
        %v5968 = vadd.f32 %v5733, %v5967
        %v5969 = vpop.f32.mrb[0].mxu0
        %5970 = vmatprep.mubr.bf16.mxu0 0
        %5971 = vmatmul.mubr.bf16.gmra.mrb[0].mxu0 %v5854
        %v5972 = vpop.f32.mrb[0].mxu0
        %v5973 = vadd.f32 %v5738, %v5972
        %v5974 = vpop.f32.mrb[0].mxu0
        %v5975 = vpop.f32.mrb[0].mxu0
        %v5976 = vadd.f32 %v5741, %v5975
        %v5977 = vpop.f32.mrb[0].mxu0
        %5978 = vmatprep.mubr.bf16.mxu0 0
        %5979 = vmatmul.mubr.bf16.gmra.mrb[0].mxu0 %v5857
        %v5980 = vpop.f32.mrb[0].mxu0
        %v5981 = vadd.f32 %v5746, %v5980
        %v5982 = vpop.f32.mrb[0].mxu0
        %v5983 = vpop.f32.mrb[0].mxu0
        %v5984 = vadd.f32 %v5749, %v5983
        %v5985 = vpop.f32.mrb[0].mxu0
        %5986 = vmatprep.mubr.bf16.mxu0 0
        %5987 = vmatmul.mubr.bf16.gmra.mrb[0].mxu0 %v5860
        %v5988 = vpop.f32.mrb[0].mxu0
        %v5989 = vadd.f32 %v5754, %v5988
        %v5990 = vpop.f32.mrb[0].mxu0
        %v5991 = vpop.f32.mrb[0].mxu0
        %v5992 = vadd.f32 %v5757, %v5991
        %v5993 = vpop.f32.mrb[0].mxu0
        %5994 = vmatprep.mubr.bf16.mxu0 0
        %5995 = vmatmul.mubr.bf16.gmra.mrb[0].mxu0 %v5863
        %v5996 = vpop.f32.mrb[0].mxu0
        %v5997 = vadd.f32 %v5762, %v5996
        %v5998 = vpop.f32.mrb[0].mxu0
        %v5999 = vpop.f32.mrb[0].mxu0
        %v6000 = vadd.f32 %v5765, %v5999
        %v6001 = vpop.f32.mrb[0].mxu0
        %6002 = vmatprep.mubr.bf16.mxu0 0
        %6003 = vmatmul.mubr.bf16.gmra.mrb[0].mxu0 %v5866
        %v6004 = vpop.f32.mrb[0].mxu0
        %v6005 = vadd.f32 %v5770, %v6004
        %v6006 = vpop.f32.mrb[0].mxu0
        %v6007 = vpop.f32.mrb[0].mxu0
        %v6008 = vadd.f32 %v5773, %v6007
        %v6009 = vpop.f32.mrb[0].mxu0
        %6010 = vmatprep.mubr.bf16.mxu0 0
        %6011 = vmatmul.mubr.bf16.gmra.mrb[0].mxu0 %v5869
        %v6012 = vpop.f32.mrb[0].mxu0
        %v6013 = vadd.f32 %v5778, %v6012
        %v6014 = vpop.f32.mrb[0].mxu0
        %v6015 = vpop.f32.mrb[0].mxu0
        %v6016 = vadd.f32 %v5781, %v6015
        %v6017 = vpop.f32.mrb[0].mxu0
        %6018 = vdwg.mxu0
        %v6019 = vld [vmem:[%s19] sm:$0x1]
        %v6021 = vlaneseq
        %v6022 = vshrl.u32 %v6021, 7
        %v6023 = vsub.s32 0, %v6022
        %v6024 = vrot.slane %v6019, %v6023
        %v6026 = vadd.f32 %v5909, %v6024
        %v6027 = vadd.f32 %v5912, %v6024
        %v6028 = vadd.f32 %v5917, %v6024
        %v6029 = vadd.f32 %v5920, %v6024
        %v6030 = vadd.f32 %v5925, %v6024
        %v6031 = vadd.f32 %v5928, %v6024
        %v6032 = vadd.f32 %v5933, %v6024
        %v6033 = vadd.f32 %v5936, %v6024
        %v6034 = vadd.f32 %v5941, %v6024
        %v6035 = vadd.f32 %v5944, %v6024
        %v6036 = vadd.f32 %v5949, %v6024
        %v6037 = vadd.f32 %v5952, %v6024
        %v6038 = vadd.f32 %v5957, %v6024
        %v6039 = vadd.f32 %v5960, %v6024
        %v6040 = vadd.f32 %v5965, %v6024
        %v6041 = vadd.f32 %v5968, %v6024
        %v6042 = vadd.f32 %v5973, %v6024
        %v6043 = vadd.f32 %v5976, %v6024
        %v6044 = vadd.f32 %v5981, %v6024
        %v6045 = vadd.f32 %v5984, %v6024
        %v6046 = vadd.f32 %v5989, %v6024
        %v6047 = vadd.f32 %v5992, %v6024
        %v6048 = vadd.f32 %v5997, %v6024
        %v6049 = vadd.f32 %v6000, %v6024
        %v6050 = vadd.f32 %v6005, %v6024
        %v6051 = vadd.f32 %v6008, %v6024
        %v6052 = vadd.f32 %v6013, %v6024
        %v6053 = vadd.f32 %v6016, %v6024
        %v6054 = vtanh.pop %v6026
        %v6055 = vtanh.pop %v6027
        %v6056 = vtanh.pop %v6028
        %v6057 = vtanh.pop %v6029
        %v6058 = vtanh.pop %v6030
        %v6059 = vtanh.pop %v6031
        %v6060 = vtanh.pop %v6032
        %v6061 = vtanh.pop %v6033
        %v6062 = vtanh.pop %v6034
        %v6063 = vtanh.pop %v6035
        %v6064 = vtanh.pop %v6036
        %v6065 = vtanh.pop %v6037
        %v6066 = vtanh.pop %v6038
        %v6067 = vtanh.pop %v6039
        %v6068 = vtanh.pop %v6040
        %v6069 = vtanh.pop %v6041
        %v6070 = vtanh.pop %v6042
        %v6071 = vtanh.pop %v6043
        %v6072 = vtanh.pop %v6044
        %v6073 = vtanh.pop %v6045
        %v6074 = vtanh.pop %v6046
        %v6075 = vtanh.pop %v6047
        %v6076 = vtanh.pop %v6048
        %v6077 = vtanh.pop %v6049
        %v6078 = vtanh.pop %v6050
        %v6079 = vtanh.pop %v6051
        %v6080 = vtanh.pop %v6052
        %v6081 = vtanh.pop %v6053
        %6082 = vst.msk [vmem:[%s623] sm:$0xff] %vm1145, %v6054
        %6083 = vst.msk [vmem:[%s623 + $0x8] sm:$0xff] %vm1145, %v6055
        %6084 = vst.msk [vmem:[%s623 + $0x10] sm:$0xff] %vm1145, %v6056
        %6085 = vst.msk [vmem:[%s623 + $0x18] sm:$0xff] %vm1145, %v6057
        %6086 = vst.msk [vmem:[%s623 + $0x20] sm:$0xff] %vm1145, %v6058
        %6087 = vst.msk [vmem:[%s623 + $0x28] sm:$0xff] %vm1145, %v6059
        %6088 = vst.msk [vmem:[%s623 + $0x30] sm:$0xff] %vm1145, %v6060
        %6089 = vst.msk [vmem:[%s623 + $0x38] sm:$0xff] %vm1145, %v6061
        %6090 = vst.msk [vmem:[%s623 + $0x40] sm:$0xff] %vm1145, %v6062
        %6091 = vst.msk [vmem:[%s623 + $0x48] sm:$0xff] %vm1145, %v6063
        %6092 = vst.msk [vmem:[%s623 + $0x50] sm:$0xff] %vm1145, %v6064
        %6093 = vst.msk [vmem:[%s623 + $0x58] sm:$0xff] %vm1145, %v6065
        %6094 = vst.msk [vmem:[%s623 + $0x60] sm:$0xff] %vm1145, %v6066
        %6095 = vst.msk [vmem:[%s623 + $0x68] sm:$0xff] %vm1145, %v6067
        %6096 = vst.msk [vmem:[%s623 + $0x70] sm:$0xff] %vm1145, %v6068
        %6097 = vst.msk [vmem:[%s623 + $0x78] sm:$0xff] %vm1145, %v6069
        %6098 = vst.msk [vmem:[%s623 + $0x80] sm:$0xff] %vm1145, %v6070
        %6099 = vst.msk [vmem:[%s623 + $0x88] sm:$0xff] %vm1145, %v6071
        %6100 = vst.msk [vmem:[%s623 + $0x90] sm:$0xff] %vm1145, %v6072
        %6101 = vst.msk [vmem:[%s623 + $0x98] sm:$0xff] %vm1145, %v6073
        %6102 = vst.msk [vmem:[%s623 + $0xa0] sm:$0xff] %vm1145, %v6074
        %6103 = vst.msk [vmem:[%s623 + $0xa8] sm:$0xff] %vm1145, %v6075
        %6104 = vst.msk [vmem:[%s623 + $0xb0] sm:$0xff] %vm1145, %v6076
        %6105 = vst.msk [vmem:[%s623 + $0xb8] sm:$0xff] %vm1145, %v6077
        %6106 = vst.msk [vmem:[%s623 + $0xc0] sm:$0xff] %vm1145, %v6078
        %6107 = vst.msk [vmem:[%s623 + $0xc8] sm:$0xff] %vm1145, %v6079
        %6108 = vst.msk [vmem:[%s623 + $0xd0] sm:$0xff] %vm1145, %v6080
        %6109 = vst.msk [vmem:[%s623 + $0xd8] sm:$0xff] %vm1145, %v6081
        %s6110 = sand.u32 %s467, 1
        %s6111 = scalar_lea.sflag [#allocation3], %s6110
        %s6112 = sand.u32 %s467, 1
        %s6113 = smul.addr %s6112, 224
        %s6114 = scalar_lea.vmem [#allocation2], %s6113
        // Predicated region
        $region101: #{forward.1} parent=99 // pred_check
          %p6115 = pneg %p477
        $region102: #{forward.1} parent=99 // pred_check_branch
          %6117 = sbr.rel (%p6115) target = $region104
        $region103: #{forward.1} parent=99 // pred_region
          %s6118 = smul.u32 28, %s34
          %s6120 = ssub.s32 3584, 3584
          %6121 = vsyncadd %s6111, %s6120
          %s6122 = smul.addr %s6118, 128
          %s6123 = scalar_lea.hbm %s20, %s6122
          %s6124 = sshll.u32 %s6114, 4
          %s6125 = int_to_ptr.vmem [resolvable:$true] %s6124
          %6130 = dma.vmem_to_hbm [thread:$0]  %s6125, 3584, %s6123, %s6111, 128, 128, 8
        $region104: #{forward.1} parent=99 // pred_fallthru
          _
      $region100: #{forward.1} parent=5 // pred_fallthru
        _
      %p6131 = scmp.le.s32.totalorder 2, %s29
      // Predicated region
      $region105: #{forward.1} parent=5 // pred_check
        %p6132 = pneg %p6131
      $region106: #{forward.1} parent=5 // pred_check_branch
        %6134 = sbr.rel (%p6132) target = $region108
      $region107: #{forward.1} parent=5 // pred_region
        %s6135 = ssub.s32 %s29, 2
        // Predicated region
        $region109: #{forward.1} parent=107 // pred_check
          %p6136 = pneg %p483
        $region110: #{forward.1} parent=107 // pred_check_branch
          %6138 = sbr.rel (%p6136) target = $region112
        $region111: #{forward.1} parent=107 // pred_region
          %s6139 = sand.u32 %s468, 1
          %s6140 = scalar_lea.sflag [#allocation3], %s6139
          %s6141 = sand.u32 %s468, 1
          %s6142 = smul.addr %s6141, 224
          %s6143 = scalar_lea.vmem [#allocation2], %s6142
          %6144 = dma.done %s6140, 3584
        $region112: #{forward.1} parent=107 // pred_fallthru
          _
      $region108: #{forward.1} parent=5 // pred_fallthru
        _
    $region6: #{forward.1} parent=1 // loop_footer
      %s33 = sadd.s32 1, %s29
    $region7: #{forward.1} parent=1 // loop_footer_branch
      %28 = sbr.rel target = $region3
    $region8: #{forward.1} parent=1 // loop_exit
      _
    %6145 = vsyncpa [#allocation3], 1
    %s6146 = scalar_lea.sflag [#allocation3], 1
    %6147 = vsyncpa %s6146, 1

</llo_original>
